<compile_context>
chip_gen: v7x
topology: tpu7x:2x2x1
jax: 0.10.0
libtpu: 0.0.40
codegen_flags: <defaults>
</compile_context>

<pallas_src>
import numpy as np

import jax
import jax.numpy as jnp
from jax.experimental import pallas as pl
from jax.experimental.pallas import tpu as pltpu

CP = 128          # padded channel / lane width
K1P = 256         # conv1 im2col K (3*8*8 = 192) padded to a multiple of 128
N1 = 144          # conv1 output positions (12*12)
N2 = 25           # conv2 output positions (5*5)
N2P = 32          # conv2 positions padded to a sublane multiple (8)
N3 = 9            # conv3 output positions (3*3)
N3P = 16          # conv3 positions padded to a sublane multiple (8)


# ----------------------------------------------------------------------------
# Fused Pallas kernel: whole network for one batch element per grid step.
# ----------------------------------------------------------------------------
def _a2c_kernel(p1_ref, g2_ref, g3_ref, w1_ref, b1_ref, w2_ref, b2_ref,
                w3_ref, b3_ref, wall_ref, ball_ref, out_ref):
    f32 = jnp.float32

    # ---- conv1: im2col GEMM + bias + ReLU -> (144, 128) ----
    h1 = jnp.dot(p1_ref[0], w1_ref[...], preferred_element_type=f32)
    h1 = jnp.maximum(h1 + b1_ref[...], 0.0)

    # ---- conv2 (k=4, s=2): ONE gather GEMM (512,144)@(144,128), then 16
    #      per-offset weight matmuls on 32-row tile-aligned slices ----
    patches2 = jnp.dot(g2_ref[...], h1, preferred_element_type=f32)    # (512,128)
    acc2 = jnp.zeros((N2P, CP), f32)
    for kk in range(16):
        acc2 = acc2 + jnp.dot(patches2[kk * N2P:(kk + 1) * N2P, :], w2_ref[kk],
                              preferred_element_type=f32)
    # rows >= 25 of h2 are never referenced by the conv3 gather matrix.
    h2 = jnp.maximum(acc2 + b2_ref[...], 0.0)                          # (32,128)

    # ---- conv3 (k=3, s=1): ONE gather GEMM (144,32)@(32,128), then 9
    #      per-offset weight matmuls on 16-row tile-aligned slices ----
    patches3 = jnp.dot(g3_ref[...], h2, preferred_element_type=f32)    # (144,128)
    acc3 = jnp.zeros((N3P, CP), f32)
    for kk in range(9):
        acc3 = acc3 + jnp.dot(patches3[kk * N3P:(kk + 1) * N3P, :], w3_ref[kk],
                              preferred_element_type=f32)
    # rows >= 9 of h3 are never referenced below.
    h3 = jnp.maximum(acc3 + b3_ref[...], 0.0)                          # (16,128)

    # ---- merged fc1 @ fc2 @ (policy||value): 9 per-spatial blocks, no ReLU ----
    out = ball_ref[...]                                                # (1,128)
    for sp in range(9):
        out = out + jnp.dot(h3[sp:sp + 1, :], wall_ref[sp],
                            preferred_element_type=f32)

    # masked, numerically-stable softmax over the 4 policy lanes
    lane = jax.lax.broadcasted_iota(jnp.int32, (1, CP), 1)
    is_logit = lane < 4
    logits = jnp.where(is_logit, out, jnp.float32(-1e30))
    m = jnp.max(logits, axis=1, keepdims=True)
    e = jnp.exp(logits - m)
    probs = e / jnp.sum(e, axis=1, keepdims=True)

    # lanes 0..3 = probs, lane 4 = value, lanes >= 5 = 0 (zero-padded head)
    out_ref[0] = jnp.where(is_logit, probs, out)


def _a2c_pallas(p1, w):
    """p1: (B, 144, 256) conv1 im2col patches; w: prepared weight dict."""
    B = p1.shape[0]

    def shared(a):
        return pl.BlockSpec(a.shape, lambda i, _n=a.ndim: (0,) * _n)

    shared_inputs = (w["g2"], w["g3"], w["w1"], w["b1"], w["w2"], w["b2"],
                     w["w3"], w["b3"], w["wall"], w["ball"])

    return pl.pallas_call(
        _a2c_kernel,
        out_shape=jax.ShapeDtypeStruct((B, 1, CP), jnp.float32),
        grid=(B,),
        in_specs=[pl.BlockSpec((1, N1, K1P), lambda i: (i, 0, 0))]
                 + [shared(a) for a in shared_inputs],
        out_specs=pl.BlockSpec((1, 1, CP), lambda i: (i, 0, 0)),
        compiler_params=pltpu.CompilerParams(
            dimension_semantics=("parallel",)),
    )(p1, *shared_inputs)


# ----------------------------------------------------------------------------
# One-time parameter preparation (permute / pad / merge weights).
# ----------------------------------------------------------------------------
def _conv1_patch_col_map():
    """Map column q of conv_general_dilated_patches output -> PyTorch
    (Cin,KH,KW)-flattened weight column, derived empirically so we do not
    depend on the op's channel-ordering convention."""
    idx = np.arange(3 * 52 * 52, dtype=np.float32).reshape(1, 3, 52, 52)
    pat = jax.lax.conv_general_dilated_patches(
        jnp.asarray(idx), (8, 8), (4, 4), "VALID")
    flat = np.asarray(pat)[0, :, 0, 0].astype(np.int64)   # source flat index per col
    c, rem = flat // (52 * 52), flat % (52 * 52)
    ki, kj = rem // 52, rem % 52
    return c * 64 + ki * 8 + kj                            # (192,)


def _build_gather_mats():
    """Constant 0/1 selection matrices implementing im2col for conv2/conv3.
    Each kernel-offset block is padded to a sublane multiple (32 / 16 rows) so
    the kernel's static slices of the gathered patches are tile-aligned."""
    g2 = np.zeros((16 * N2P, N1), np.float32)   # conv2: 4x4 offsets, stride 2, 12x12 in
    for ki in range(4):
        for kj in range(4):
            kk = ki * 4 + kj
            for ho in range(5):
                for wo in range(5):
                    g2[kk * N2P + ho * 5 + wo,
                       (2 * ho + ki) * 12 + (2 * wo + kj)] = 1.0
    g3 = np.zeros((9 * N3P, N2P), np.float32)   # conv3: 3x3 offsets, stride 1, 5x5 in
    for ki in range(3):
        for kj in range(3):
            kk = ki * 3 + kj
            for ho in range(3):
                for wo in range(3):
                    g3[kk * N3P + ho * 3 + wo,
                       (ho + ki) * 5 + (wo + kj)] = 1.0
    return jnp.asarray(g2), jnp.asarray(g3)


def prepare_params(p):
    f32 = jnp.float32

    def pad_to(a, shape):
        out = jnp.zeros(shape, f32)
        return out.at[tuple(slice(0, s) for s in a.shape)].set(a)

    colmap = _conv1_patch_col_map()
    g2, g3 = _build_gather_mats()

    w1 = pad_to(p["conv1_w"].reshape(32, 192)[:, colmap].T, (K1P, CP))
    b1 = pad_to(p["conv1_b"].reshape(1, 32), (1, CP))

    w2 = pad_to(jnp.transpose(p["conv2_w"], (2, 3, 1, 0)).reshape(16, 32, 64),
                (16, CP, CP))
    b2 = pad_to(p["conv2_b"].reshape(1, 64), (1, CP))

    w3 = pad_to(jnp.transpose(p["conv3_w"], (2, 3, 1, 0)).reshape(9, 64, 64),
                (9, CP, CP))
    b3 = pad_to(p["conv3_b"].reshape(1, 64), (1, CP))

    # fc1: NCHW flatten index = c*9 + spatial; split into 9 per-spatial blocks.
    wf1 = pad_to(jnp.transpose(p["fc1_w"].reshape(64, 64, 9), (2, 1, 0)),
                 (9, CP, CP))
    bf1 = pad_to(p["fc1_b"].reshape(1, 64), (1, CP))

    wf2 = pad_to(p["fc2_w"].T, (CP, CP))
    bf2 = p["fc2_b"].reshape(1, CP).astype(f32)

    # policy || value projection packed into lanes 0..3 / lane 4 of a 128-lane row
    wh = jnp.zeros((CP, CP), f32)
    wh = wh.at[:, 0:4].set(p["policy_w"].T)
    wh = wh.at[:, 4].set(p["value_w"][0])
    bh = jnp.zeros((1, CP), f32)
    bh = bh.at[0, 0:4].set(p["policy_b"])
    bh = bh.at[0, 4].set(p["value_b"][0])

    # No nonlinearity between fc1, fc2 and the heads (per the reference), so
    # pre-multiply them into 9 per-spatial blocks + one merged bias.
    w_tail = jnp.dot(wf2, wh)                              # (128, 128)
    wall = jnp.einsum("scd,de->sce", wf1, w_tail)          # (9, 128, 128)
    ball = jnp.dot(bf1, w_tail) + jnp.dot(bf2, wh) + bh    # (1, 128)

    return dict(g2=g2, g3=g3, w1=w1, b1=b1, w2=w2, b2=b2, w3=w3, b3=b3,
                wall=wall, ball=ball)


# ----------------------------------------------------------------------------
# Synthetic parameters (PyTorch layouts) and forward pass.
# ----------------------------------------------------------------------------
def init_params(key):
    def dense(key, shape, fan_in):
        return jax.random.normal(key, shape, jnp.float32) / jnp.sqrt(fan_in)

    ks = jax.random.split(key, 14)
    return {
        "conv1_w": dense(ks[0], (32, 3, 8, 8), 3 * 8 * 8),
        "conv1_b": dense(ks[1], (32,), 3 * 8 * 8),
        "conv2_w": dense(ks[2], (64, 32, 4, 4), 32 * 4 * 4),
        "conv2_b": dense(ks[3], (64,), 32 * 4 * 4),
        "conv3_w": dense(ks[4], (64, 64, 3, 3), 64 * 3 * 3),
        "conv3_b": dense(ks[5], (64,), 64 * 3 * 3),
        "fc1_w": dense(ks[6], (64, 576), 576),
        "fc1_b": dense(ks[7], (64,), 576),
        "fc2_w": dense(ks[8], (128, 64), 64),
        "fc2_b": dense(ks[9], (128,), 64),
        "policy_w": dense(ks[10], (4, 128), 128),
        "policy_b": dense(ks[11], (4,), 128),
        "value_w": dense(ks[12], (1, 128), 128),
        "value_b": dense(ks[13], (1,), 128),
    }


@jax.jit
def a2c_forward(prepped, x, hx, cx):
    """x: (B, 3, 52, 52) NCHW. Returns (softmax probs (B,4), value (B,1), (hx, cx))."""
    B = x.shape[0]
    # conv1 im2col in one XLA op (pure data movement), K padded 192 -> 256.
    p1 = jax.lax.conv_general_dilated_patches(x, (8, 8), (4, 4), "VALID")
    p1 = jnp.transpose(p1, (0, 2, 3, 1)).reshape(B, N1, 192)
    p1 = jnp.pad(p1, ((0, 0), (0, 0), (0, K1P - 192)))

    out = _a2c_pallas(p1, prepped)[:, 0, :]        # (B, 128) lane-dense slab
    probs = out[:, :4]
    value = out[:, 4:5]
    # Reference forward passes (hx, cx) through untouched (no LSTM op is applied).
    return probs, value, (hx, cx)


if __name__ == "__main__":
    key = jax.random.PRNGKey(0)
    kp, kx, kh, kc = jax.random.split(key, 4)

    params = init_params(kp)
    prepped = prepare_params(params)

    # Module geometry implies H = W = 52 (conv stack -> 64*3*3 = 576 features).
    B = 2
    x = jax.random.normal(kx, (B, 3, 52, 52), jnp.float32)
    hx = jax.random.normal(kh, (B, 64), jnp.float32)
    cx = jax.random.normal(kc, (B, 64), jnp.float32)

    probs, value, (hx_out, cx_out) = a2c_forward(prepped, x, hx, cx)
    jax.block_until_ready((probs, value, hx_out, cx_out))

    assert probs.shape == (B, 4) and value.shape == (B, 1)
    assert jnp.allclose(jnp.sum(probs, axis=1), 1.0, atol=1e-5)
    assert bool(jnp.all(jnp.isfinite(probs))) and bool(jnp.all(jnp.isfinite(value)))
    print("KERNEL_OK")
</pallas_src>

<mosaic_0001>
module attributes {stable_mosaic.version = 11 : i64} {
  func.func @_a2c_kernel(%arg0: i32, %arg1: memref<1x144x256xf32, #tpu.memory_space<vmem>>, %arg2: memref<512x144xf32, #tpu.memory_space<vmem>>, %arg3: memref<144x32xf32, #tpu.memory_space<vmem>>, %arg4: memref<256x128xf32, #tpu.memory_space<vmem>>, %arg5: memref<1x128xf32, #tpu.memory_space<vmem>>, %arg6: memref<16x128x128xf32, #tpu.memory_space<vmem>>, %arg7: memref<1x128xf32, #tpu.memory_space<vmem>>, %arg8: memref<9x128x128xf32, #tpu.memory_space<vmem>>, %arg9: memref<1x128xf32, #tpu.memory_space<vmem>>, %arg10: memref<9x128x128xf32, #tpu.memory_space<vmem>>, %arg11: memref<1x128xf32, #tpu.memory_space<vmem>>, %arg12: memref<1x1x128xf32, #tpu.memory_space<vmem>>) attributes {dimension_semantics = [#tpu.dimension_semantics<parallel>], iteration_bounds = array<i64: 2>, scalar_prefetch = 0 : i64, scratch_operands = 0 : i64, tpu.core_type = #tpu.core_type<tc>, window_params = [{transform_indices = @transform_0, window_bounds = array<i64: 1, 144, 256>}, {pipeline_mode = #tpu.pipeline_mode<synchronous>, transform_indices = @transform_1, window_bounds = array<i64: 512, 144>}, {pipeline_mode = #tpu.pipeline_mode<synchronous>, transform_indices = @transform_2, window_bounds = array<i64: 144, 32>}, {pipeline_mode = #tpu.pipeline_mode<synchronous>, transform_indices = @transform_3, window_bounds = array<i64: 256, 128>}, {pipeline_mode = #tpu.pipeline_mode<synchronous>, transform_indices = @transform_4, window_bounds = array<i64: 1, 128>}, {pipeline_mode = #tpu.pipeline_mode<synchronous>, transform_indices = @transform_5, window_bounds = array<i64: 16, 128, 128>}, {pipeline_mode = #tpu.pipeline_mode<synchronous>, transform_indices = @transform_6, window_bounds = array<i64: 1, 128>}, {pipeline_mode = #tpu.pipeline_mode<synchronous>, transform_indices = @transform_7, window_bounds = array<i64: 9, 128, 128>}, {pipeline_mode = #tpu.pipeline_mode<synchronous>, transform_indices = @transform_8, window_bounds = array<i64: 1, 128>}, {pipeline_mode = #tpu.pipeline_mode<synchronous>, transform_indices = @transform_9, window_bounds = array<i64: 9, 128, 128>}, {pipeline_mode = #tpu.pipeline_mode<synchronous>, transform_indices = @transform_10, window_bounds = array<i64: 1, 128>}, {transform_indices = @transform_11, window_bounds = array<i64: 1, 1, 128>}]} {
    %c0 = arith.constant 0 : index
    %c0_0 = arith.constant 0 : index
    %c0_1 = arith.constant 0 : index
    %0 = vector.load %arg1[%c0, %c0_0, %c0_1] : memref<1x144x256xf32, #tpu.memory_space<vmem>>, vector<1x144x256xf32>
    %1 = vector.shape_cast %0 : vector<1x144x256xf32> to vector<144x256xf32>
    %c0_2 = arith.constant 0 : index
    %c0_3 = arith.constant 0 : index
    %2 = vector.load %arg4[%c0_2, %c0_3] : memref<256x128xf32, #tpu.memory_space<vmem>>, vector<256x128xf32>
    %cst = arith.constant dense<0.000000e+00> : vector<144x128xf32>
    %3 = tpu.matmul %1, %2, %cst {dimension_numbers = #tpu.dot_dimension_numbers<[1], [0], [0], [1], [0, 0, 1, 1], [], []>} : vector<144x256xf32>, vector<256x128xf32>, vector<144x128xf32> -> vector<144x128xf32>
    %c0_4 = arith.constant 0 : index
    %c0_5 = arith.constant 0 : index
    %4 = vector.load %arg5[%c0_4, %c0_5] : memref<1x128xf32, #tpu.memory_space<vmem>>, vector<1x128xf32>
    %5 = vector.broadcast %4 : vector<1x128xf32> to vector<144x128xf32>
    %6 = arith.addf %3, %5 : vector<144x128xf32>
    %cst_6 = arith.constant 0.000000e+00 : f32
    %7 = vector.broadcast %cst_6 : f32 to vector<144x128xf32>
    %8 = arith.maximumf %6, %7 : vector<144x128xf32>
    %c0_7 = arith.constant 0 : index
    %c0_8 = arith.constant 0 : index
    %9 = vector.load %arg2[%c0_7, %c0_8] : memref<512x144xf32, #tpu.memory_space<vmem>>, vector<512x144xf32>
    %cst_9 = arith.constant dense<0.000000e+00> : vector<512x128xf32>
    %10 = tpu.matmul %9, %8, %cst_9 {dimension_numbers = #tpu.dot_dimension_numbers<[1], [0], [0], [1], [0, 0, 1, 1], [], []>} : vector<512x144xf32>, vector<144x128xf32>, vector<512x128xf32> -> vector<512x128xf32>
    %cst_10 = arith.constant 0.000000e+00 : f32
    %11 = vector.broadcast %cst_10 : f32 to vector<32x128xf32>
    %12 = vector.extract_strided_slice %10 {offsets = [0, 0], sizes = [32, 128], strides = [1, 1]} : vector<512x128xf32> to vector<32x128xf32>
    %c0_11 = arith.constant 0 : index
    %c0_12 = arith.constant 0 : index
    %c0_13 = arith.constant 0 : index
    %13 = vector.load %arg6[%c0_11, %c0_12, %c0_13] : memref<16x128x128xf32, #tpu.memory_space<vmem>>, vector<1x128x128xf32>
    %14 = vector.shape_cast %13 : vector<1x128x128xf32> to vector<128x128xf32>
    %cst_14 = arith.constant dense<0.000000e+00> : vector<32x128xf32>
    %15 = tpu.matmul %12, %14, %cst_14 {dimension_numbers = #tpu.dot_dimension_numbers<[1], [0], [0], [1], [0, 0, 1, 1], [], []>} : vector<32x128xf32>, vector<128x128xf32>, vector<32x128xf32> -> vector<32x128xf32>
    %16 = arith.addf %11, %15 : vector<32x128xf32>
    %17 = vector.extract_strided_slice %10 {offsets = [32, 0], sizes = [32, 128], strides = [1, 1]} : vector<512x128xf32> to vector<32x128xf32>
    %c1 = arith.constant 1 : index
    %c0_15 = arith.constant 0 : index
    %c0_16 = arith.constant 0 : index
    %18 = vector.load %arg6[%c1, %c0_15, %c0_16] : memref<16x128x128xf32, #tpu.memory_space<vmem>>, vector<1x128x128xf32>
    %19 = vector.shape_cast %18 : vector<1x128x128xf32> to vector<128x128xf32>
    %cst_17 = arith.constant dense<0.000000e+00> : vector<32x128xf32>
    %20 = tpu.matmul %17, %19, %cst_17 {dimension_numbers = #tpu.dot_dimension_numbers<[1], [0], [0], [1], [0, 0, 1, 1], [], []>} : vector<32x128xf32>, vector<128x128xf32>, vector<32x128xf32> -> vector<32x128xf32>
    %21 = arith.addf %16, %20 : vector<32x128xf32>
    %22 = vector.extract_strided_slice %10 {offsets = [64, 0], sizes = [32, 128], strides = [1, 1]} : vector<512x128xf32> to vector<32x128xf32>
    %c2 = arith.constant 2 : index
    %c0_18 = arith.constant 0 : index
    %c0_19 = arith.constant 0 : index
    %23 = vector.load %arg6[%c2, %c0_18, %c0_19] : memref<16x128x128xf32, #tpu.memory_space<vmem>>, vector<1x128x128xf32>
    %24 = vector.shape_cast %23 : vector<1x128x128xf32> to vector<128x128xf32>
    %cst_20 = arith.constant dense<0.000000e+00> : vector<32x128xf32>
    %25 = tpu.matmul %22, %24, %cst_20 {dimension_numbers = #tpu.dot_dimension_numbers<[1], [0], [0], [1], [0, 0, 1, 1], [], []>} : vector<32x128xf32>, vector<128x128xf32>, vector<32x128xf32> -> vector<32x128xf32>
    %26 = arith.addf %21, %25 : vector<32x128xf32>
    %27 = vector.extract_strided_slice %10 {offsets = [96, 0], sizes = [32, 128], strides = [1, 1]} : vector<512x128xf32> to vector<32x128xf32>
    %c3 = arith.constant 3 : index
    %c0_21 = arith.constant 0 : index
    %c0_22 = arith.constant 0 : index
    %28 = vector.load %arg6[%c3, %c0_21, %c0_22] : memref<16x128x128xf32, #tpu.memory_space<vmem>>, vector<1x128x128xf32>
    %29 = vector.shape_cast %28 : vector<1x128x128xf32> to vector<128x128xf32>
    %cst_23 = arith.constant dense<0.000000e+00> : vector<32x128xf32>
    %30 = tpu.matmul %27, %29, %cst_23 {dimension_numbers = #tpu.dot_dimension_numbers<[1], [0], [0], [1], [0, 0, 1, 1], [], []>} : vector<32x128xf32>, vector<128x128xf32>, vector<32x128xf32> -> vector<32x128xf32>
    %31 = arith.addf %26, %30 : vector<32x128xf32>
    %32 = vector.extract_strided_slice %10 {offsets = [128, 0], sizes = [32, 128], strides = [1, 1]} : vector<512x128xf32> to vector<32x128xf32>
    %c4 = arith.constant 4 : index
    %c0_24 = arith.constant 0 : index
    %c0_25 = arith.constant 0 : index
    %33 = vector.load %arg6[%c4, %c0_24, %c0_25] : memref<16x128x128xf32, #tpu.memory_space<vmem>>, vector<1x128x128xf32>
    %34 = vector.shape_cast %33 : vector<1x128x128xf32> to vector<128x128xf32>
    %cst_26 = arith.constant dense<0.000000e+00> : vector<32x128xf32>
    %35 = tpu.matmul %32, %34, %cst_26 {dimension_numbers = #tpu.dot_dimension_numbers<[1], [0], [0], [1], [0, 0, 1, 1], [], []>} : vector<32x128xf32>, vector<128x128xf32>, vector<32x128xf32> -> vector<32x128xf32>
    %36 = arith.addf %31, %35 : vector<32x128xf32>
    %37 = vector.extract_strided_slice %10 {offsets = [160, 0], sizes = [32, 128], strides = [1, 1]} : vector<512x128xf32> to vector<32x128xf32>
    %c5 = arith.constant 5 : index
    %c0_27 = arith.constant 0 : index
    %c0_28 = arith.constant 0 : index
    %38 = vector.load %arg6[%c5, %c0_27, %c0_28] : memref<16x128x128xf32, #tpu.memory_space<vmem>>, vector<1x128x128xf32>
    %39 = vector.shape_cast %38 : vector<1x128x128xf32> to vector<128x128xf32>
    %cst_29 = arith.constant dense<0.000000e+00> : vector<32x128xf32>
    %40 = tpu.matmul %37, %39, %cst_29 {dimension_numbers = #tpu.dot_dimension_numbers<[1], [0], [0], [1], [0, 0, 1, 1], [], []>} : vector<32x128xf32>, vector<128x128xf32>, vector<32x128xf32> -> vector<32x128xf32>
    %41 = arith.addf %36, %40 : vector<32x128xf32>
    %42 = vector.extract_strided_slice %10 {offsets = [192, 0], sizes = [32, 128], strides = [1, 1]} : vector<512x128xf32> to vector<32x128xf32>
    %c6 = arith.constant 6 : index
    %c0_30 = arith.constant 0 : index
    %c0_31 = arith.constant 0 : index
    %43 = vector.load %arg6[%c6, %c0_30, %c0_31] : memref<16x128x128xf32, #tpu.memory_space<vmem>>, vector<1x128x128xf32>
    %44 = vector.shape_cast %43 : vector<1x128x128xf32> to vector<128x128xf32>
    %cst_32 = arith.constant dense<0.000000e+00> : vector<32x128xf32>
    %45 = tpu.matmul %42, %44, %cst_32 {dimension_numbers = #tpu.dot_dimension_numbers<[1], [0], [0], [1], [0, 0, 1, 1], [], []>} : vector<32x128xf32>, vector<128x128xf32>, vector<32x128xf32> -> vector<32x128xf32>
    %46 = arith.addf %41, %45 : vector<32x128xf32>
    %47 = vector.extract_strided_slice %10 {offsets = [224, 0], sizes = [32, 128], strides = [1, 1]} : vector<512x128xf32> to vector<32x128xf32>
    %c7 = arith.constant 7 : index
    %c0_33 = arith.constant 0 : index
    %c0_34 = arith.constant 0 : index
    %48 = vector.load %arg6[%c7, %c0_33, %c0_34] : memref<16x128x128xf32, #tpu.memory_space<vmem>>, vector<1x128x128xf32>
    %49 = vector.shape_cast %48 : vector<1x128x128xf32> to vector<128x128xf32>
    %cst_35 = arith.constant dense<0.000000e+00> : vector<32x128xf32>
    %50 = tpu.matmul %47, %49, %cst_35 {dimension_numbers = #tpu.dot_dimension_numbers<[1], [0], [0], [1], [0, 0, 1, 1], [], []>} : vector<32x128xf32>, vector<128x128xf32>, vector<32x128xf32> -> vector<32x128xf32>
    %51 = arith.addf %46, %50 : vector<32x128xf32>
    %52 = vector.extract_strided_slice %10 {offsets = [256, 0], sizes = [32, 128], strides = [1, 1]} : vector<512x128xf32> to vector<32x128xf32>
    %c8 = arith.constant 8 : index
    %c0_36 = arith.constant 0 : index
    %c0_37 = arith.constant 0 : index
    %53 = vector.load %arg6[%c8, %c0_36, %c0_37] : memref<16x128x128xf32, #tpu.memory_space<vmem>>, vector<1x128x128xf32>
    %54 = vector.shape_cast %53 : vector<1x128x128xf32> to vector<128x128xf32>
    %cst_38 = arith.constant dense<0.000000e+00> : vector<32x128xf32>
    %55 = tpu.matmul %52, %54, %cst_38 {dimension_numbers = #tpu.dot_dimension_numbers<[1], [0], [0], [1], [0, 0, 1, 1], [], []>} : vector<32x128xf32>, vector<128x128xf32>, vector<32x128xf32> -> vector<32x128xf32>
    %56 = arith.addf %51, %55 : vector<32x128xf32>
    %57 = vector.extract_strided_slice %10 {offsets = [288, 0], sizes = [32, 128], strides = [1, 1]} : vector<512x128xf32> to vector<32x128xf32>
    %c9 = arith.constant 9 : index
    %c0_39 = arith.constant 0 : index
    %c0_40 = arith.constant 0 : index
    %58 = vector.load %arg6[%c9, %c0_39, %c0_40] : memref<16x128x128xf32, #tpu.memory_space<vmem>>, vector<1x128x128xf32>
    %59 = vector.shape_cast %58 : vector<1x128x128xf32> to vector<128x128xf32>
    %cst_41 = arith.constant dense<0.000000e+00> : vector<32x128xf32>
    %60 = tpu.matmul %57, %59, %cst_41 {dimension_numbers = #tpu.dot_dimension_numbers<[1], [0], [0], [1], [0, 0, 1, 1], [], []>} : vector<32x128xf32>, vector<128x128xf32>, vector<32x128xf32> -> vector<32x128xf32>
    %61 = arith.addf %56, %60 : vector<32x128xf32>
    %62 = vector.extract_strided_slice %10 {offsets = [320, 0], sizes = [32, 128], strides = [1, 1]} : vector<512x128xf32> to vector<32x128xf32>
    %c10 = arith.constant 10 : index
    %c0_42 = arith.constant 0 : index
    %c0_43 = arith.constant 0 : index
    %63 = vector.load %arg6[%c10, %c0_42, %c0_43] : memref<16x128x128xf32, #tpu.memory_space<vmem>>, vector<1x128x128xf32>
    %64 = vector.shape_cast %63 : vector<1x128x128xf32> to vector<128x128xf32>
    %cst_44 = arith.constant dense<0.000000e+00> : vector<32x128xf32>
    %65 = tpu.matmul %62, %64, %cst_44 {dimension_numbers = #tpu.dot_dimension_numbers<[1], [0], [0], [1], [0, 0, 1, 1], [], []>} : vector<32x128xf32>, vector<128x128xf32>, vector<32x128xf32> -> vector<32x128xf32>
    %66 = arith.addf %61, %65 : vector<32x128xf32>
    %67 = vector.extract_strided_slice %10 {offsets = [352, 0], sizes = [32, 128], strides = [1, 1]} : vector<512x128xf32> to vector<32x128xf32>
    %c11 = arith.constant 11 : index
    %c0_45 = arith.constant 0 : index
    %c0_46 = arith.constant 0 : index
    %68 = vector.load %arg6[%c11, %c0_45, %c0_46] : memref<16x128x128xf32, #tpu.memory_space<vmem>>, vector<1x128x128xf32>
    %69 = vector.shape_cast %68 : vector<1x128x128xf32> to vector<128x128xf32>
    %cst_47 = arith.constant dense<0.000000e+00> : vector<32x128xf32>
    %70 = tpu.matmul %67, %69, %cst_47 {dimension_numbers = #tpu.dot_dimension_numbers<[1], [0], [0], [1], [0, 0, 1, 1], [], []>} : vector<32x128xf32>, vector<128x128xf32>, vector<32x128xf32> -> vector<32x128xf32>
    %71 = arith.addf %66, %70 : vector<32x128xf32>
    %72 = vector.extract_strided_slice %10 {offsets = [384, 0], sizes = [32, 128], strides = [1, 1]} : vector<512x128xf32> to vector<32x128xf32>
    %c12 = arith.constant 12 : index
    %c0_48 = arith.constant 0 : index
    %c0_49 = arith.constant 0 : index
    %73 = vector.load %arg6[%c12, %c0_48, %c0_49] : memref<16x128x128xf32, #tpu.memory_space<vmem>>, vector<1x128x128xf32>
    %74 = vector.shape_cast %73 : vector<1x128x128xf32> to vector<128x128xf32>
    %cst_50 = arith.constant dense<0.000000e+00> : vector<32x128xf32>
    %75 = tpu.matmul %72, %74, %cst_50 {dimension_numbers = #tpu.dot_dimension_numbers<[1], [0], [0], [1], [0, 0, 1, 1], [], []>} : vector<32x128xf32>, vector<128x128xf32>, vector<32x128xf32> -> vector<32x128xf32>
    %76 = arith.addf %71, %75 : vector<32x128xf32>
    %77 = vector.extract_strided_slice %10 {offsets = [416, 0], sizes = [32, 128], strides = [1, 1]} : vector<512x128xf32> to vector<32x128xf32>
    %c13 = arith.constant 13 : index
    %c0_51 = arith.constant 0 : index
    %c0_52 = arith.constant 0 : index
    %78 = vector.load %arg6[%c13, %c0_51, %c0_52] : memref<16x128x128xf32, #tpu.memory_space<vmem>>, vector<1x128x128xf32>
    %79 = vector.shape_cast %78 : vector<1x128x128xf32> to vector<128x128xf32>
    %cst_53 = arith.constant dense<0.000000e+00> : vector<32x128xf32>
    %80 = tpu.matmul %77, %79, %cst_53 {dimension_numbers = #tpu.dot_dimension_numbers<[1], [0], [0], [1], [0, 0, 1, 1], [], []>} : vector<32x128xf32>, vector<128x128xf32>, vector<32x128xf32> -> vector<32x128xf32>
    %81 = arith.addf %76, %80 : vector<32x128xf32>
    %82 = vector.extract_strided_slice %10 {offsets = [448, 0], sizes = [32, 128], strides = [1, 1]} : vector<512x128xf32> to vector<32x128xf32>
    %c14 = arith.constant 14 : index
    %c0_54 = arith.constant 0 : index
    %c0_55 = arith.constant 0 : index
    %83 = vector.load %arg6[%c14, %c0_54, %c0_55] : memref<16x128x128xf32, #tpu.memory_space<vmem>>, vector<1x128x128xf32>
    %84 = vector.shape_cast %83 : vector<1x128x128xf32> to vector<128x128xf32>
    %cst_56 = arith.constant dense<0.000000e+00> : vector<32x128xf32>
    %85 = tpu.matmul %82, %84, %cst_56 {dimension_numbers = #tpu.dot_dimension_numbers<[1], [0], [0], [1], [0, 0, 1, 1], [], []>} : vector<32x128xf32>, vector<128x128xf32>, vector<32x128xf32> -> vector<32x128xf32>
    %86 = arith.addf %81, %85 : vector<32x128xf32>
    %87 = vector.extract_strided_slice %10 {offsets = [480, 0], sizes = [32, 128], strides = [1, 1]} : vector<512x128xf32> to vector<32x128xf32>
    %c15 = arith.constant 15 : index
    %c0_57 = arith.constant 0 : index
    %c0_58 = arith.constant 0 : index
    %88 = vector.load %arg6[%c15, %c0_57, %c0_58] : memref<16x128x128xf32, #tpu.memory_space<vmem>>, vector<1x128x128xf32>
    %89 = vector.shape_cast %88 : vector<1x128x128xf32> to vector<128x128xf32>
    %cst_59 = arith.constant dense<0.000000e+00> : vector<32x128xf32>
    %90 = tpu.matmul %87, %89, %cst_59 {dimension_numbers = #tpu.dot_dimension_numbers<[1], [0], [0], [1], [0, 0, 1, 1], [], []>} : vector<32x128xf32>, vector<128x128xf32>, vector<32x128xf32> -> vector<32x128xf32>
    %91 = arith.addf %86, %90 : vector<32x128xf32>
    %c0_60 = arith.constant 0 : index
    %c0_61 = arith.constant 0 : index
    %92 = vector.load %arg7[%c0_60, %c0_61] : memref<1x128xf32, #tpu.memory_space<vmem>>, vector<1x128xf32>
    %93 = vector.broadcast %92 : vector<1x128xf32> to vector<32x128xf32>
    %94 = arith.addf %91, %93 : vector<32x128xf32>
    %cst_62 = arith.constant 0.000000e+00 : f32
    %95 = vector.broadcast %cst_62 : f32 to vector<32x128xf32>
    %96 = arith.maximumf %94, %95 : vector<32x128xf32>
    %c0_63 = arith.constant 0 : index
    %c0_64 = arith.constant 0 : index
    %97 = vector.load %arg3[%c0_63, %c0_64] : memref<144x32xf32, #tpu.memory_space<vmem>>, vector<144x32xf32>
    %cst_65 = arith.constant dense<0.000000e+00> : vector<144x128xf32>
    %98 = tpu.matmul %97, %96, %cst_65 {dimension_numbers = #tpu.dot_dimension_numbers<[1], [0], [0], [1], [0, 0, 1, 1], [], []>} : vector<144x32xf32>, vector<32x128xf32>, vector<144x128xf32> -> vector<144x128xf32>
    %cst_66 = arith.constant 0.000000e+00 : f32
    %99 = vector.broadcast %cst_66 : f32 to vector<16x128xf32>
    %100 = vector.extract_strided_slice %98 {offsets = [0, 0], sizes = [16, 128], strides = [1, 1]} : vector<144x128xf32> to vector<16x128xf32>
    %c0_67 = arith.constant 0 : index
    %c0_68 = arith.constant 0 : index
    %c0_69 = arith.constant 0 : index
    %101 = vector.load %arg8[%c0_67, %c0_68, %c0_69] : memref<9x128x128xf32, #tpu.memory_space<vmem>>, vector<1x128x128xf32>
    %102 = vector.shape_cast %101 : vector<1x128x128xf32> to vector<128x128xf32>
    %cst_70 = arith.constant dense<0.000000e+00> : vector<16x128xf32>
    %103 = tpu.matmul %100, %102, %cst_70 {dimension_numbers = #tpu.dot_dimension_numbers<[1], [0], [0], [1], [0, 0, 1, 1], [], []>} : vector<16x128xf32>, vector<128x128xf32>, vector<16x128xf32> -> vector<16x128xf32>
    %104 = arith.addf %99, %103 : vector<16x128xf32>
    %105 = vector.extract_strided_slice %98 {offsets = [16, 0], sizes = [16, 128], strides = [1, 1]} : vector<144x128xf32> to vector<16x128xf32>
    %c1_71 = arith.constant 1 : index
    %c0_72 = arith.constant 0 : index
    %c0_73 = arith.constant 0 : index
    %106 = vector.load %arg8[%c1_71, %c0_72, %c0_73] : memref<9x128x128xf32, #tpu.memory_space<vmem>>, vector<1x128x128xf32>
    %107 = vector.shape_cast %106 : vector<1x128x128xf32> to vector<128x128xf32>
    %cst_74 = arith.constant dense<0.000000e+00> : vector<16x128xf32>
    %108 = tpu.matmul %105, %107, %cst_74 {dimension_numbers = #tpu.dot_dimension_numbers<[1], [0], [0], [1], [0, 0, 1, 1], [], []>} : vector<16x128xf32>, vector<128x128xf32>, vector<16x128xf32> -> vector<16x128xf32>
    %109 = arith.addf %104, %108 : vector<16x128xf32>
    %110 = vector.extract_strided_slice %98 {offsets = [32, 0], sizes = [16, 128], strides = [1, 1]} : vector<144x128xf32> to vector<16x128xf32>
    %c2_75 = arith.constant 2 : index
    %c0_76 = arith.constant 0 : index
    %c0_77 = arith.constant 0 : index
    %111 = vector.load %arg8[%c2_75, %c0_76, %c0_77] : memref<9x128x128xf32, #tpu.memory_space<vmem>>, vector<1x128x128xf32>
    %112 = vector.shape_cast %111 : vector<1x128x128xf32> to vector<128x128xf32>
    %cst_78 = arith.constant dense<0.000000e+00> : vector<16x128xf32>
    %113 = tpu.matmul %110, %112, %cst_78 {dimension_numbers = #tpu.dot_dimension_numbers<[1], [0], [0], [1], [0, 0, 1, 1], [], []>} : vector<16x128xf32>, vector<128x128xf32>, vector<16x128xf32> -> vector<16x128xf32>
    %114 = arith.addf %109, %113 : vector<16x128xf32>
    %115 = vector.extract_strided_slice %98 {offsets = [48, 0], sizes = [16, 128], strides = [1, 1]} : vector<144x128xf32> to vector<16x128xf32>
    %c3_79 = arith.constant 3 : index
    %c0_80 = arith.constant 0 : index
    %c0_81 = arith.constant 0 : index
    %116 = vector.load %arg8[%c3_79, %c0_80, %c0_81] : memref<9x128x128xf32, #tpu.memory_space<vmem>>, vector<1x128x128xf32>
    %117 = vector.shape_cast %116 : vector<1x128x128xf32> to vector<128x128xf32>
    %cst_82 = arith.constant dense<0.000000e+00> : vector<16x128xf32>
    %118 = tpu.matmul %115, %117, %cst_82 {dimension_numbers = #tpu.dot_dimension_numbers<[1], [0], [0], [1], [0, 0, 1, 1], [], []>} : vector<16x128xf32>, vector<128x128xf32>, vector<16x128xf32> -> vector<16x128xf32>
    %119 = arith.addf %114, %118 : vector<16x128xf32>
    %120 = vector.extract_strided_slice %98 {offsets = [64, 0], sizes = [16, 128], strides = [1, 1]} : vector<144x128xf32> to vector<16x128xf32>
    %c4_83 = arith.constant 4 : index
    %c0_84 = arith.constant 0 : index
    %c0_85 = arith.constant 0 : index
    %121 = vector.load %arg8[%c4_83, %c0_84, %c0_85] : memref<9x128x128xf32, #tpu.memory_space<vmem>>, vector<1x128x128xf32>
    %122 = vector.shape_cast %121 : vector<1x128x128xf32> to vector<128x128xf32>
    %cst_86 = arith.constant dense<0.000000e+00> : vector<16x128xf32>
    %123 = tpu.matmul %120, %122, %cst_86 {dimension_numbers = #tpu.dot_dimension_numbers<[1], [0], [0], [1], [0, 0, 1, 1], [], []>} : vector<16x128xf32>, vector<128x128xf32>, vector<16x128xf32> -> vector<16x128xf32>
    %124 = arith.addf %119, %123 : vector<16x128xf32>
    %125 = vector.extract_strided_slice %98 {offsets = [80, 0], sizes = [16, 128], strides = [1, 1]} : vector<144x128xf32> to vector<16x128xf32>
    %c5_87 = arith.constant 5 : index
    %c0_88 = arith.constant 0 : index
    %c0_89 = arith.constant 0 : index
    %126 = vector.load %arg8[%c5_87, %c0_88, %c0_89] : memref<9x128x128xf32, #tpu.memory_space<vmem>>, vector<1x128x128xf32>
    %127 = vector.shape_cast %126 : vector<1x128x128xf32> to vector<128x128xf32>
    %cst_90 = arith.constant dense<0.000000e+00> : vector<16x128xf32>
    %128 = tpu.matmul %125, %127, %cst_90 {dimension_numbers = #tpu.dot_dimension_numbers<[1], [0], [0], [1], [0, 0, 1, 1], [], []>} : vector<16x128xf32>, vector<128x128xf32>, vector<16x128xf32> -> vector<16x128xf32>
    %129 = arith.addf %124, %128 : vector<16x128xf32>
    %130 = vector.extract_strided_slice %98 {offsets = [96, 0], sizes = [16, 128], strides = [1, 1]} : vector<144x128xf32> to vector<16x128xf32>
    %c6_91 = arith.constant 6 : index
    %c0_92 = arith.constant 0 : index
    %c0_93 = arith.constant 0 : index
    %131 = vector.load %arg8[%c6_91, %c0_92, %c0_93] : memref<9x128x128xf32, #tpu.memory_space<vmem>>, vector<1x128x128xf32>
    %132 = vector.shape_cast %131 : vector<1x128x128xf32> to vector<128x128xf32>
    %cst_94 = arith.constant dense<0.000000e+00> : vector<16x128xf32>
    %133 = tpu.matmul %130, %132, %cst_94 {dimension_numbers = #tpu.dot_dimension_numbers<[1], [0], [0], [1], [0, 0, 1, 1], [], []>} : vector<16x128xf32>, vector<128x128xf32>, vector<16x128xf32> -> vector<16x128xf32>
    %134 = arith.addf %129, %133 : vector<16x128xf32>
    %135 = vector.extract_strided_slice %98 {offsets = [112, 0], sizes = [16, 128], strides = [1, 1]} : vector<144x128xf32> to vector<16x128xf32>
    %c7_95 = arith.constant 7 : index
    %c0_96 = arith.constant 0 : index
    %c0_97 = arith.constant 0 : index
    %136 = vector.load %arg8[%c7_95, %c0_96, %c0_97] : memref<9x128x128xf32, #tpu.memory_space<vmem>>, vector<1x128x128xf32>
    %137 = vector.shape_cast %136 : vector<1x128x128xf32> to vector<128x128xf32>
    %cst_98 = arith.constant dense<0.000000e+00> : vector<16x128xf32>
    %138 = tpu.matmul %135, %137, %cst_98 {dimension_numbers = #tpu.dot_dimension_numbers<[1], [0], [0], [1], [0, 0, 1, 1], [], []>} : vector<16x128xf32>, vector<128x128xf32>, vector<16x128xf32> -> vector<16x128xf32>
    %139 = arith.addf %134, %138 : vector<16x128xf32>
    %140 = vector.extract_strided_slice %98 {offsets = [128, 0], sizes = [16, 128], strides = [1, 1]} : vector<144x128xf32> to vector<16x128xf32>
    %c8_99 = arith.constant 8 : index
    %c0_100 = arith.constant 0 : index
    %c0_101 = arith.constant 0 : index
    %141 = vector.load %arg8[%c8_99, %c0_100, %c0_101] : memref<9x128x128xf32, #tpu.memory_space<vmem>>, vector<1x128x128xf32>
    %142 = vector.shape_cast %141 : vector<1x128x128xf32> to vector<128x128xf32>
    %cst_102 = arith.constant dense<0.000000e+00> : vector<16x128xf32>
    %143 = tpu.matmul %140, %142, %cst_102 {dimension_numbers = #tpu.dot_dimension_numbers<[1], [0], [0], [1], [0, 0, 1, 1], [], []>} : vector<16x128xf32>, vector<128x128xf32>, vector<16x128xf32> -> vector<16x128xf32>
    %144 = arith.addf %139, %143 : vector<16x128xf32>
    %c0_103 = arith.constant 0 : index
    %c0_104 = arith.constant 0 : index
    %145 = vector.load %arg9[%c0_103, %c0_104] : memref<1x128xf32, #tpu.memory_space<vmem>>, vector<1x128xf32>
    %146 = vector.broadcast %145 : vector<1x128xf32> to vector<16x128xf32>
    %147 = arith.addf %144, %146 : vector<16x128xf32>
    %cst_105 = arith.constant 0.000000e+00 : f32
    %148 = vector.broadcast %cst_105 : f32 to vector<16x128xf32>
    %149 = arith.maximumf %147, %148 : vector<16x128xf32>
    %c0_106 = arith.constant 0 : index
    %c0_107 = arith.constant 0 : index
    %150 = vector.load %arg11[%c0_106, %c0_107] : memref<1x128xf32, #tpu.memory_space<vmem>>, vector<1x128xf32>
    %151 = vector.extract_strided_slice %149 {offsets = [0, 0], sizes = [1, 128], strides = [1, 1]} : vector<16x128xf32> to vector<1x128xf32>
    %c0_108 = arith.constant 0 : index
    %c0_109 = arith.constant 0 : index
    %c0_110 = arith.constant 0 : index
    %152 = vector.load %arg10[%c0_108, %c0_109, %c0_110] : memref<9x128x128xf32, #tpu.memory_space<vmem>>, vector<1x128x128xf32>
    %153 = vector.shape_cast %152 : vector<1x128x128xf32> to vector<128x128xf32>
    %cst_111 = arith.constant dense<0.000000e+00> : vector<1x128xf32>
    %154 = tpu.matmul %151, %153, %cst_111 {dimension_numbers = #tpu.dot_dimension_numbers<[1], [0], [0], [1], [0, 0, 1, 1], [], []>} : vector<1x128xf32>, vector<128x128xf32>, vector<1x128xf32> -> vector<1x128xf32>
    %155 = arith.addf %150, %154 : vector<1x128xf32>
    %156 = vector.extract_strided_slice %149 {offsets = [1, 0], sizes = [1, 128], strides = [1, 1]} : vector<16x128xf32> to vector<1x128xf32>
    %c1_112 = arith.constant 1 : index
    %c0_113 = arith.constant 0 : index
    %c0_114 = arith.constant 0 : index
    %157 = vector.load %arg10[%c1_112, %c0_113, %c0_114] : memref<9x128x128xf32, #tpu.memory_space<vmem>>, vector<1x128x128xf32>
    %158 = vector.shape_cast %157 : vector<1x128x128xf32> to vector<128x128xf32>
    %cst_115 = arith.constant dense<0.000000e+00> : vector<1x128xf32>
    %159 = tpu.matmul %156, %158, %cst_115 {dimension_numbers = #tpu.dot_dimension_numbers<[1], [0], [0], [1], [0, 0, 1, 1], [], []>} : vector<1x128xf32>, vector<128x128xf32>, vector<1x128xf32> -> vector<1x128xf32>
    %160 = arith.addf %155, %159 : vector<1x128xf32>
    %161 = vector.extract_strided_slice %149 {offsets = [2, 0], sizes = [1, 128], strides = [1, 1]} : vector<16x128xf32> to vector<1x128xf32>
    %c2_116 = arith.constant 2 : index
    %c0_117 = arith.constant 0 : index
    %c0_118 = arith.constant 0 : index
    %162 = vector.load %arg10[%c2_116, %c0_117, %c0_118] : memref<9x128x128xf32, #tpu.memory_space<vmem>>, vector<1x128x128xf32>
    %163 = vector.shape_cast %162 : vector<1x128x128xf32> to vector<128x128xf32>
    %cst_119 = arith.constant dense<0.000000e+00> : vector<1x128xf32>
    %164 = tpu.matmul %161, %163, %cst_119 {dimension_numbers = #tpu.dot_dimension_numbers<[1], [0], [0], [1], [0, 0, 1, 1], [], []>} : vector<1x128xf32>, vector<128x128xf32>, vector<1x128xf32> -> vector<1x128xf32>
    %165 = arith.addf %160, %164 : vector<1x128xf32>
    %166 = vector.extract_strided_slice %149 {offsets = [3, 0], sizes = [1, 128], strides = [1, 1]} : vector<16x128xf32> to vector<1x128xf32>
    %c3_120 = arith.constant 3 : index
    %c0_121 = arith.constant 0 : index
    %c0_122 = arith.constant 0 : index
    %167 = vector.load %arg10[%c3_120, %c0_121, %c0_122] : memref<9x128x128xf32, #tpu.memory_space<vmem>>, vector<1x128x128xf32>
    %168 = vector.shape_cast %167 : vector<1x128x128xf32> to vector<128x128xf32>
    %cst_123 = arith.constant dense<0.000000e+00> : vector<1x128xf32>
    %169 = tpu.matmul %166, %168, %cst_123 {dimension_numbers = #tpu.dot_dimension_numbers<[1], [0], [0], [1], [0, 0, 1, 1], [], []>} : vector<1x128xf32>, vector<128x128xf32>, vector<1x128xf32> -> vector<1x128xf32>
    %170 = arith.addf %165, %169 : vector<1x128xf32>
    %171 = vector.extract_strided_slice %149 {offsets = [4, 0], sizes = [1, 128], strides = [1, 1]} : vector<16x128xf32> to vector<1x128xf32>
    %c4_124 = arith.constant 4 : index
    %c0_125 = arith.constant 0 : index
    %c0_126 = arith.constant 0 : index
    %172 = vector.load %arg10[%c4_124, %c0_125, %c0_126] : memref<9x128x128xf32, #tpu.memory_space<vmem>>, vector<1x128x128xf32>
    %173 = vector.shape_cast %172 : vector<1x128x128xf32> to vector<128x128xf32>
    %cst_127 = arith.constant dense<0.000000e+00> : vector<1x128xf32>
    %174 = tpu.matmul %171, %173, %cst_127 {dimension_numbers = #tpu.dot_dimension_numbers<[1], [0], [0], [1], [0, 0, 1, 1], [], []>} : vector<1x128xf32>, vector<128x128xf32>, vector<1x128xf32> -> vector<1x128xf32>
    %175 = arith.addf %170, %174 : vector<1x128xf32>
    %176 = vector.extract_strided_slice %149 {offsets = [5, 0], sizes = [1, 128], strides = [1, 1]} : vector<16x128xf32> to vector<1x128xf32>
    %c5_128 = arith.constant 5 : index
    %c0_129 = arith.constant 0 : index
    %c0_130 = arith.constant 0 : index
    %177 = vector.load %arg10[%c5_128, %c0_129, %c0_130] : memref<9x128x128xf32, #tpu.memory_space<vmem>>, vector<1x128x128xf32>
    %178 = vector.shape_cast %177 : vector<1x128x128xf32> to vector<128x128xf32>
    %cst_131 = arith.constant dense<0.000000e+00> : vector<1x128xf32>
    %179 = tpu.matmul %176, %178, %cst_131 {dimension_numbers = #tpu.dot_dimension_numbers<[1], [0], [0], [1], [0, 0, 1, 1], [], []>} : vector<1x128xf32>, vector<128x128xf32>, vector<1x128xf32> -> vector<1x128xf32>
    %180 = arith.addf %175, %179 : vector<1x128xf32>
    %181 = vector.extract_strided_slice %149 {offsets = [6, 0], sizes = [1, 128], strides = [1, 1]} : vector<16x128xf32> to vector<1x128xf32>
    %c6_132 = arith.constant 6 : index
    %c0_133 = arith.constant 0 : index
    %c0_134 = arith.constant 0 : index
    %182 = vector.load %arg10[%c6_132, %c0_133, %c0_134] : memref<9x128x128xf32, #tpu.memory_space<vmem>>, vector<1x128x128xf32>
    %183 = vector.shape_cast %182 : vector<1x128x128xf32> to vector<128x128xf32>
    %cst_135 = arith.constant dense<0.000000e+00> : vector<1x128xf32>
    %184 = tpu.matmul %181, %183, %cst_135 {dimension_numbers = #tpu.dot_dimension_numbers<[1], [0], [0], [1], [0, 0, 1, 1], [], []>} : vector<1x128xf32>, vector<128x128xf32>, vector<1x128xf32> -> vector<1x128xf32>
    %185 = arith.addf %180, %184 : vector<1x128xf32>
    %186 = vector.extract_strided_slice %149 {offsets = [7, 0], sizes = [1, 128], strides = [1, 1]} : vector<16x128xf32> to vector<1x128xf32>
    %c7_136 = arith.constant 7 : index
    %c0_137 = arith.constant 0 : index
    %c0_138 = arith.constant 0 : index
    %187 = vector.load %arg10[%c7_136, %c0_137, %c0_138] : memref<9x128x128xf32, #tpu.memory_space<vmem>>, vector<1x128x128xf32>
    %188 = vector.shape_cast %187 : vector<1x128x128xf32> to vector<128x128xf32>
    %cst_139 = arith.constant dense<0.000000e+00> : vector<1x128xf32>
    %189 = tpu.matmul %186, %188, %cst_139 {dimension_numbers = #tpu.dot_dimension_numbers<[1], [0], [0], [1], [0, 0, 1, 1], [], []>} : vector<1x128xf32>, vector<128x128xf32>, vector<1x128xf32> -> vector<1x128xf32>
    %190 = arith.addf %185, %189 : vector<1x128xf32>
    %191 = vector.extract_strided_slice %149 {offsets = [8, 0], sizes = [1, 128], strides = [1, 1]} : vector<16x128xf32> to vector<1x128xf32>
    %c8_140 = arith.constant 8 : index
    %c0_141 = arith.constant 0 : index
    %c0_142 = arith.constant 0 : index
    %192 = vector.load %arg10[%c8_140, %c0_141, %c0_142] : memref<9x128x128xf32, #tpu.memory_space<vmem>>, vector<1x128x128xf32>
    %193 = vector.shape_cast %192 : vector<1x128x128xf32> to vector<128x128xf32>
    %cst_143 = arith.constant dense<0.000000e+00> : vector<1x128xf32>
    %194 = tpu.matmul %191, %193, %cst_143 {dimension_numbers = #tpu.dot_dimension_numbers<[1], [0], [0], [1], [0, 0, 1, 1], [], []>} : vector<1x128xf32>, vector<128x128xf32>, vector<1x128xf32> -> vector<1x128xf32>
    %195 = arith.addf %190, %194 : vector<1x128xf32>
    %196 = tpu.iota {dimensions = array<i32: 1>} : vector<1x128xi32>
    %c4_i32 = arith.constant 4 : i32
    %197 = vector.broadcast %c4_i32 : i32 to vector<1x128xi32>
    %198 = arith.cmpi slt, %196, %197 : vector<1x128xi32>
    %cst_144 = arith.constant -1.000000e+30 : f32
    %199 = vector.broadcast %cst_144 : f32 to vector<1x128xf32>
    %200 = arith.select %198, %195, %199 : vector<1x128xi1>, vector<1x128xf32>
    %cst_145 = arith.constant dense<0xFF800000> : vector<1xf32>
    %201 = vector.multi_reduction <maximumf>, %200, %cst_145 [1] : vector<1x128xf32> to vector<1xf32>
    %202 = vector.shape_cast %201 : vector<1xf32> to vector<1x1xf32>
    %203 = vector.broadcast %202 : vector<1x1xf32> to vector<1x128xf32>
    %204 = arith.subf %200, %203 : vector<1x128xf32>
    %205 = math.exp %204 : vector<1x128xf32>
    %cst_146 = arith.constant dense<0.000000e+00> : vector<1xf32>
    %206 = vector.multi_reduction <add>, %205, %cst_146 [1] : vector<1x128xf32> to vector<1xf32>
    %207 = vector.shape_cast %206 : vector<1xf32> to vector<1x1xf32>
    %208 = vector.broadcast %207 : vector<1x1xf32> to vector<1x128xf32>
    %209 = arith.divf %205, %208 : vector<1x128xf32>
    %210 = arith.select %198, %209, %195 : vector<1x128xi1>, vector<1x128xf32>
    %c0_147 = arith.constant 0 : index
    %c0_148 = arith.constant 0 : index
    %c0_149 = arith.constant 0 : index
    %211 = vector.load %arg12[%c0_147, %c0_148, %c0_149] : memref<1x1x128xf32, #tpu.memory_space<vmem>>, vector<1x1x128xf32>
    %212 = vector.shape_cast %211 : vector<1x1x128xf32> to vector<1x128xf32>
    %213 = vector.shape_cast %210 : vector<1x128xf32> to vector<1x1x128xf32>
    tpu.vector_store %arg12[%c0_147, %c0_148, %c0_149], %213 {strides = array<i32>} : memref<1x1x128xf32, #tpu.memory_space<vmem>>, vector<1x1x128xf32>,
    return
  }
  func.func @transform_0(%arg0: i32) -> (i32, i32, i32) {
    %c0_i32 = arith.constant 0 : i32
    %c0_i32_0 = arith.constant 0 : i32
    %c0_i32_1 = arith.constant 0 : i32
    return %arg0, %c0_i32, %c0_i32_0 : i32, i32, i32
  }
  func.func @transform_1(%arg0: i32) -> (i32, i32) {
    %c0_i32 = arith.constant 0 : i32
    %c0_i32_0 = arith.constant 0 : i32
    %c0_i32_1 = arith.constant 0 : i32
    return %c0_i32, %c0_i32_0 : i32, i32
  }
  func.func @transform_2(%arg0: i32) -> (i32, i32) {
    %c0_i32 = arith.constant 0 : i32
    %c0_i32_0 = arith.constant 0 : i32
    %c0_i32_1 = arith.constant 0 : i32
    return %c0_i32, %c0_i32_0 : i32, i32
  }
  func.func @transform_3(%arg0: i32) -> (i32, i32) {
    %c0_i32 = arith.constant 0 : i32
    %c0_i32_0 = arith.constant 0 : i32
    %c0_i32_1 = arith.constant 0 : i32
    return %c0_i32, %c0_i32_0 : i32, i32
  }
  func.func @transform_4(%arg0: i32) -> (i32, i32) {
    %c0_i32 = arith.constant 0 : i32
    %c0_i32_0 = arith.constant 0 : i32
    %c0_i32_1 = arith.constant 0 : i32
    return %c0_i32, %c0_i32_0 : i32, i32
  }
  func.func @transform_5(%arg0: i32) -> (i32, i32, i32) {
    %c0_i32 = arith.constant 0 : i32
    %c0_i32_0 = arith.constant 0 : i32
    %c0_i32_1 = arith.constant 0 : i32
    %c0_i32_2 = arith.constant 0 : i32
    return %c0_i32, %c0_i32_0, %c0_i32_1 : i32, i32, i32
  }
  func.func @transform_6(%arg0: i32) -> (i32, i32) {
    %c0_i32 = arith.constant 0 : i32
    %c0_i32_0 = arith.constant 0 : i32
    %c0_i32_1 = arith.constant 0 : i32
    return %c0_i32, %c0_i32_0 : i32, i32
  }
  func.func @transform_7(%arg0: i32) -> (i32, i32, i32) {
    %c0_i32 = arith.constant 0 : i32
    %c0_i32_0 = arith.constant 0 : i32
    %c0_i32_1 = arith.constant 0 : i32
    %c0_i32_2 = arith.constant 0 : i32
    return %c0_i32, %c0_i32_0, %c0_i32_1 : i32, i32, i32
  }
  func.func @transform_8(%arg0: i32) -> (i32, i32) {
    %c0_i32 = arith.constant 0 : i32
    %c0_i32_0 = arith.constant 0 : i32
    %c0_i32_1 = arith.constant 0 : i32
    return %c0_i32, %c0_i32_0 : i32, i32
  }
  func.func @transform_9(%arg0: i32) -> (i32, i32, i32) {
    %c0_i32 = arith.constant 0 : i32
    %c0_i32_0 = arith.constant 0 : i32
    %c0_i32_1 = arith.constant 0 : i32
    %c0_i32_2 = arith.constant 0 : i32
    return %c0_i32, %c0_i32_0, %c0_i32_1 : i32, i32, i32
  }
  func.func @transform_10(%arg0: i32) -> (i32, i32) {
    %c0_i32 = arith.constant 0 : i32
    %c0_i32_0 = arith.constant 0 : i32
    %c0_i32_1 = arith.constant 0 : i32
    return %c0_i32, %c0_i32_0 : i32, i32
  }
  func.func @transform_11(%arg0: i32) -> (i32, i32, i32) {
    %c0_i32 = arith.constant 0 : i32
    %c0_i32_0 = arith.constant 0 : i32
    %c0_i32_1 = arith.constant 0 : i32
    return %arg0, %c0_i32, %c0_i32_0 : i32, i32, i32
  }
}

</mosaic_0001>

<llo_original>
// kernel: a2c_forward.1
$region0: #{a2c_forward.1}
  #allocation0 [shape = 'u32[]', space=smem, size = 0x4, offset = 0x4, fixed_abs, tag = 'smem constant byte address 0x4 - core index']
  #allocation1 [shape = 'u32[144,128]{1,0:T(1,128)}', space=vmem, size = 0x12000, scoped, tag = 'internal scratch']
  %s0 = inlined_call_operand.vmem [shape: f32[2,144,256], index: 0, kind: input, shape index: {}]
  %s1 = inlined_call_operand.vmem [shape: f32[512,144], index: 1, kind: input, shape index: {}]
  %s2 = inlined_call_operand.vmem [shape: f32[144,32], index: 2, kind: input, shape index: {}]
  %s3 = inlined_call_operand.vmem [shape: f32[256,128], index: 3, kind: input, shape index: {}]
  %s4 = inlined_call_operand.vmem [shape: f32[1,128], index: 4, kind: input, shape index: {}]
  %s5 = inlined_call_operand.vmem [shape: f32[16,128,128], index: 5, kind: input, shape index: {}]
  %s6 = inlined_call_operand.vmem [shape: f32[1,128], index: 6, kind: input, shape index: {}]
  %s7 = inlined_call_operand.vmem [shape: f32[9,128,128], index: 7, kind: input, shape index: {}]
  %s8 = inlined_call_operand.vmem [shape: f32[1,128], index: 8, kind: input, shape index: {}]
  %s9 = inlined_call_operand.vmem [shape: f32[9,128,128], index: 9, kind: input, shape index: {}]
  %s10 = inlined_call_operand.vmem [shape: f32[1,128], index: 10, kind: input, shape index: {}]
  %s11 = inlined_call_operand.vmem [shape: f32[2,1,128], index: 11, kind: output, shape index: {}]
  %s12 = sld [smem:[#allocation0]]
  $region77: #{a2c_forward.1} parent=0
    _
  %s14 = ssub.s32 1, %s12
  %s15 = scalar_select 0, %s14, %s12
  loop: start=0, step=1, limit=4
  $region2: #{a2c_forward.1} parent=0 // loop_pre_header
    _
  $region3: #{a2c_forward.1} parent=0 // loop_header
    %s17 = sphi 0, %s21
    %p18 = scmp.ge.s32.totalorder %s17, 4
    %s27 = sphi 0, %s29
    %s30 = sphi 0, %s27
    %s31 = sphi 0, %s30
    %s47 = sphi 0, %s31
    %s51 = sphi 0, %s51
    %s53 = sphi 0, %s51
    %s54 = sphi 0, %s53
    %s68 = sphi 0, %s54
    %s72 = sphi 0, %s72
    %s74 = sphi 0, %s72
    %s75 = sphi 0, %s74
    %s89 = sphi 0, %s75
    %s93 = sphi 0, %s93
    %s95 = sphi 0, %s93
    %s96 = sphi 0, %s95
    %s110 = sphi 0, %s96
    %s114 = sphi 0, %s114
    %s116 = sphi 0, %s114
    %s117 = sphi 0, %s116
    %s131 = sphi 0, %s117
    %s135 = sphi 0, %s135
    %s137 = sphi 0, %s135
    %s138 = sphi 0, %s137
    %s152 = sphi 0, %s138
    %s156 = sphi 0, %s156
    %s158 = sphi 0, %s156
    %s159 = sphi 0, %s158
    %s173 = sphi 0, %s159
    %s177 = sphi 0, %s177
    %s179 = sphi 0, %s177
    %s180 = sphi 0, %s179
    %s194 = sphi 0, %s180
    %s198 = sphi 0, %s198
    %s200 = sphi 0, %s198
    %s201 = sphi 0, %s200
    %s215 = sphi 0, %s201
    %s219 = sphi 0, %s219
    %s221 = sphi 0, %s219
    %s222 = sphi 0, %s221
    %s236 = sphi 0, %s222
    %s240 = sphi 0, %s240
    %s242 = sphi 0, %s240
    %s243 = sphi 0, %s242
    %s257 = sphi 0, %s243
    %s263 = sphi 0, %s265
    %s266 = sphi 0, %s263
    %s267 = sphi 0, %s266
    %s283 = sphi 0, %s267
  $region4: #{a2c_forward.1} parent=0 // loop_header_branch
    %20 = sbr.rel (%p18) target = $region8
  $region5: #{a2c_forward.1} parent=0 // loop_body
    %s22 = ssub.s32 %s17, 1
    %s23 = ssub.s32 %s17, 2
    %s24 = sadd.s32 %s17, 1
    %s25 = ssub.s32 %s17, %s24
    %p26 = scmp.eq.s32.totalorder %s25, 0
    %s28 = sadd.s32 %s27, 1
    %s29 = scalar_select %p26, %s27, %s28
    %p32 = pneg %p26
    %p33 = scmp.eq.s32.totalorder %s17, 1
    %p34 = por %p32, %p33
    %p35 = scmp.ne.s32.totalorder %s27, %s30
    %p36 = scmp.eq.s32.totalorder %s17, 0
    %p37 = por %p35, %p36
    %p38 = scmp.ne.s32.totalorder %s27, %s30
    %p39 = scmp.eq.s32.totalorder %s22, 1
    %p40 = por %p38, %p39
    %p41 = scmp.ne.s32.totalorder %s30, %s31
    %p42 = scmp.eq.s32.totalorder %s22, 0
    %p43 = por %p41, %p42
    %p44 = scmp.ne.s32.totalorder %s30, %s31
    %p45 = scmp.eq.s32.totalorder %s23, 1
    %p46 = por %p44, %p45
    %p48 = scmp.ne.s32.totalorder %s31, %s47
    %p49 = scmp.eq.s32.totalorder %s23, 0
    %p50 = por %p48, %p49
    %s52 = sadd.s32 %s51, 1
    %p55 = scmp.eq.s32.totalorder %s17, 1
    %p56 = scmp.ne.s32.totalorder %s51, %s53
    %p57 = scmp.eq.s32.totalorder %s17, 0
    %p58 = por %p56, %p57
    %p59 = scmp.ne.s32.totalorder %s51, %s53
    %p60 = scmp.eq.s32.totalorder %s22, 1
    %p61 = por %p59, %p60
    %p62 = scmp.ne.s32.totalorder %s53, %s54
    %p63 = scmp.eq.s32.totalorder %s22, 0
    %p64 = por %p62, %p63
    %p65 = scmp.ne.s32.totalorder %s53, %s54
    %p66 = scmp.eq.s32.totalorder %s23, 1
    %p67 = por %p65, %p66
    %p69 = scmp.ne.s32.totalorder %s54, %s68
    %p70 = scmp.eq.s32.totalorder %s23, 0
    %p71 = por %p69, %p70
    %s73 = sadd.s32 %s72, 1
    %p76 = scmp.eq.s32.totalorder %s17, 1
    %p77 = scmp.ne.s32.totalorder %s72, %s74
    %p78 = scmp.eq.s32.totalorder %s17, 0
    %p79 = por %p77, %p78
    %p80 = scmp.ne.s32.totalorder %s72, %s74
    %p81 = scmp.eq.s32.totalorder %s22, 1
    %p82 = por %p80, %p81
    %p83 = scmp.ne.s32.totalorder %s74, %s75
    %p84 = scmp.eq.s32.totalorder %s22, 0
    %p85 = por %p83, %p84
    %p86 = scmp.ne.s32.totalorder %s74, %s75
    %p87 = scmp.eq.s32.totalorder %s23, 1
    %p88 = por %p86, %p87
    %p90 = scmp.ne.s32.totalorder %s75, %s89
    %p91 = scmp.eq.s32.totalorder %s23, 0
    %p92 = por %p90, %p91
    %s94 = sadd.s32 %s93, 1
    %p97 = scmp.eq.s32.totalorder %s17, 1
    %p98 = scmp.ne.s32.totalorder %s93, %s95
    %p99 = scmp.eq.s32.totalorder %s17, 0
    %p100 = por %p98, %p99
    %p101 = scmp.ne.s32.totalorder %s93, %s95
    %p102 = scmp.eq.s32.totalorder %s22, 1
    %p103 = por %p101, %p102
    %p104 = scmp.ne.s32.totalorder %s95, %s96
    %p105 = scmp.eq.s32.totalorder %s22, 0
    %p106 = por %p104, %p105
    %p107 = scmp.ne.s32.totalorder %s95, %s96
    %p108 = scmp.eq.s32.totalorder %s23, 1
    %p109 = por %p107, %p108
    %p111 = scmp.ne.s32.totalorder %s96, %s110
    %p112 = scmp.eq.s32.totalorder %s23, 0
    %p113 = por %p111, %p112
    %s115 = sadd.s32 %s114, 1
    %p118 = scmp.eq.s32.totalorder %s17, 1
    %p119 = scmp.ne.s32.totalorder %s114, %s116
    %p120 = scmp.eq.s32.totalorder %s17, 0
    %p121 = por %p119, %p120
    %p122 = scmp.ne.s32.totalorder %s114, %s116
    %p123 = scmp.eq.s32.totalorder %s22, 1
    %p124 = por %p122, %p123
    %p125 = scmp.ne.s32.totalorder %s116, %s117
    %p126 = scmp.eq.s32.totalorder %s22, 0
    %p127 = por %p125, %p126
    %p128 = scmp.ne.s32.totalorder %s116, %s117
    %p129 = scmp.eq.s32.totalorder %s23, 1
    %p130 = por %p128, %p129
    %p132 = scmp.ne.s32.totalorder %s117, %s131
    %p133 = scmp.eq.s32.totalorder %s23, 0
    %p134 = por %p132, %p133
    %s136 = sadd.s32 %s135, 1
    %p139 = scmp.eq.s32.totalorder %s17, 1
    %p140 = scmp.ne.s32.totalorder %s135, %s137
    %p141 = scmp.eq.s32.totalorder %s17, 0
    %p142 = por %p140, %p141
    %p143 = scmp.ne.s32.totalorder %s135, %s137
    %p144 = scmp.eq.s32.totalorder %s22, 1
    %p145 = por %p143, %p144
    %p146 = scmp.ne.s32.totalorder %s137, %s138
    %p147 = scmp.eq.s32.totalorder %s22, 0
    %p148 = por %p146, %p147
    %p149 = scmp.ne.s32.totalorder %s137, %s138
    %p150 = scmp.eq.s32.totalorder %s23, 1
    %p151 = por %p149, %p150
    %p153 = scmp.ne.s32.totalorder %s138, %s152
    %p154 = scmp.eq.s32.totalorder %s23, 0
    %p155 = por %p153, %p154
    %s157 = sadd.s32 %s156, 1
    %p160 = scmp.eq.s32.totalorder %s17, 1
    %p161 = scmp.ne.s32.totalorder %s156, %s158
    %p162 = scmp.eq.s32.totalorder %s17, 0
    %p163 = por %p161, %p162
    %p164 = scmp.ne.s32.totalorder %s156, %s158
    %p165 = scmp.eq.s32.totalorder %s22, 1
    %p166 = por %p164, %p165
    %p167 = scmp.ne.s32.totalorder %s158, %s159
    %p168 = scmp.eq.s32.totalorder %s22, 0
    %p169 = por %p167, %p168
    %p170 = scmp.ne.s32.totalorder %s158, %s159
    %p171 = scmp.eq.s32.totalorder %s23, 1
    %p172 = por %p170, %p171
    %p174 = scmp.ne.s32.totalorder %s159, %s173
    %p175 = scmp.eq.s32.totalorder %s23, 0
    %p176 = por %p174, %p175
    %s178 = sadd.s32 %s177, 1
    %p181 = scmp.eq.s32.totalorder %s17, 1
    %p182 = scmp.ne.s32.totalorder %s177, %s179
    %p183 = scmp.eq.s32.totalorder %s17, 0
    %p184 = por %p182, %p183
    %p185 = scmp.ne.s32.totalorder %s177, %s179
    %p186 = scmp.eq.s32.totalorder %s22, 1
    %p187 = por %p185, %p186
    %p188 = scmp.ne.s32.totalorder %s179, %s180
    %p189 = scmp.eq.s32.totalorder %s22, 0
    %p190 = por %p188, %p189
    %p191 = scmp.ne.s32.totalorder %s179, %s180
    %p192 = scmp.eq.s32.totalorder %s23, 1
    %p193 = por %p191, %p192
    %p195 = scmp.ne.s32.totalorder %s180, %s194
    %p196 = scmp.eq.s32.totalorder %s23, 0
    %p197 = por %p195, %p196
    %s199 = sadd.s32 %s198, 1
    %p202 = scmp.eq.s32.totalorder %s17, 1
    %p203 = scmp.ne.s32.totalorder %s198, %s200
    %p204 = scmp.eq.s32.totalorder %s17, 0
    %p205 = por %p203, %p204
    %p206 = scmp.ne.s32.totalorder %s198, %s200
    %p207 = scmp.eq.s32.totalorder %s22, 1
    %p208 = por %p206, %p207
    %p209 = scmp.ne.s32.totalorder %s200, %s201
    %p210 = scmp.eq.s32.totalorder %s22, 0
    %p211 = por %p209, %p210
    %p212 = scmp.ne.s32.totalorder %s200, %s201
    %p213 = scmp.eq.s32.totalorder %s23, 1
    %p214 = por %p212, %p213
    %p216 = scmp.ne.s32.totalorder %s201, %s215
    %p217 = scmp.eq.s32.totalorder %s23, 0
    %p218 = por %p216, %p217
    %s220 = sadd.s32 %s219, 1
    %p223 = scmp.eq.s32.totalorder %s17, 1
    %p224 = scmp.ne.s32.totalorder %s219, %s221
    %p225 = scmp.eq.s32.totalorder %s17, 0
    %p226 = por %p224, %p225
    %p227 = scmp.ne.s32.totalorder %s219, %s221
    %p228 = scmp.eq.s32.totalorder %s22, 1
    %p229 = por %p227, %p228
    %p230 = scmp.ne.s32.totalorder %s221, %s222
    %p231 = scmp.eq.s32.totalorder %s22, 0
    %p232 = por %p230, %p231
    %p233 = scmp.ne.s32.totalorder %s221, %s222
    %p234 = scmp.eq.s32.totalorder %s23, 1
    %p235 = por %p233, %p234
    %p237 = scmp.ne.s32.totalorder %s222, %s236
    %p238 = scmp.eq.s32.totalorder %s23, 0
    %p239 = por %p237, %p238
    %s241 = sadd.s32 %s240, 1
    %p244 = scmp.eq.s32.totalorder %s17, 1
    %p245 = scmp.ne.s32.totalorder %s240, %s242
    %p246 = scmp.eq.s32.totalorder %s17, 0
    %p247 = por %p245, %p246
    %p248 = scmp.ne.s32.totalorder %s240, %s242
    %p249 = scmp.eq.s32.totalorder %s22, 1
    %p250 = por %p248, %p249
    %p251 = scmp.ne.s32.totalorder %s242, %s243
    %p252 = scmp.eq.s32.totalorder %s22, 0
    %p253 = por %p251, %p252
    %p254 = scmp.ne.s32.totalorder %s242, %s243
    %p255 = scmp.eq.s32.totalorder %s23, 1
    %p256 = por %p254, %p255
    %p258 = scmp.ne.s32.totalorder %s243, %s257
    %p259 = scmp.eq.s32.totalorder %s23, 0
    %p260 = por %p258, %p259
    %s261 = ssub.s32 %s17, %s24
    %p262 = scmp.eq.s32.totalorder %s261, 0
    %s264 = sadd.s32 %s263, 1
    %s265 = scalar_select %p262, %s263, %s264
    %p268 = pneg %p262
    %p269 = scmp.eq.s32.totalorder %s17, 1
    %p270 = por %p268, %p269
    %p271 = scmp.ne.s32.totalorder %s263, %s266
    %p272 = scmp.eq.s32.totalorder %s17, 0
    %p273 = por %p271, %p272
    %p274 = scmp.ne.s32.totalorder %s263, %s266
    %p275 = scmp.eq.s32.totalorder %s22, 1
    %p276 = por %p274, %p275
    %p277 = scmp.ne.s32.totalorder %s266, %s267
    %p278 = scmp.eq.s32.totalorder %s22, 0
    %p279 = por %p277, %p278
    %p280 = scmp.ne.s32.totalorder %s266, %s267
    %p281 = scmp.eq.s32.totalorder %s23, 1
    %p282 = por %p280, %p281
    %p284 = scmp.ne.s32.totalorder %s267, %s283
    %p285 = scmp.eq.s32.totalorder %s23, 0
    %p286 = por %p284, %p285
    %p287 = scmp.le.s32.totalorder 1, %s17
    %p288 = scmp.lt.s32.totalorder %s17, 3
    %p289 = pnand %p287, %p288
    %p290 = pneg %p289
    // Predicated region
    $region9: #{a2c_forward.1} parent=5 // pred_check
      _
    $region10: #{a2c_forward.1} parent=5 // pred_check_branch
      %292 = sbr.rel (%p289) target = $region12
    $region11: #{a2c_forward.1} parent=5 // pred_region
      %s293 = ssub.s32 %s17, 1
      // Predicated region
      $region13: #{a2c_forward.1} parent=11 // pred_check
        %p294 = pneg %p64
      $region14: #{a2c_forward.1} parent=11 // pred_check_branch
        %296 = sbr.rel (%p294) target = $region16
      $region15: #{a2c_forward.1} parent=11 // pred_region
        _
      $region16: #{a2c_forward.1} parent=11 // pred_fallthru
        _
      // Predicated region
      $region17: #{a2c_forward.1} parent=11 // pred_check
        %p297 = pneg %p85
      $region18: #{a2c_forward.1} parent=11 // pred_check_branch
        %299 = sbr.rel (%p297) target = $region20
      $region19: #{a2c_forward.1} parent=11 // pred_region
        _
      $region20: #{a2c_forward.1} parent=11 // pred_fallthru
        _
      // Predicated region
      $region21: #{a2c_forward.1} parent=11 // pred_check
        %p300 = pneg %p106
      $region22: #{a2c_forward.1} parent=11 // pred_check_branch
        %302 = sbr.rel (%p300) target = $region24
      $region23: #{a2c_forward.1} parent=11 // pred_region
        _
      $region24: #{a2c_forward.1} parent=11 // pred_fallthru
        _
      // Predicated region
      $region25: #{a2c_forward.1} parent=11 // pred_check
        %p303 = pneg %p127
      $region26: #{a2c_forward.1} parent=11 // pred_check_branch
        %305 = sbr.rel (%p303) target = $region28
      $region27: #{a2c_forward.1} parent=11 // pred_region
        _
      $region28: #{a2c_forward.1} parent=11 // pred_fallthru
        _
      // Predicated region
      $region29: #{a2c_forward.1} parent=11 // pred_check
        %p306 = pneg %p148
      $region30: #{a2c_forward.1} parent=11 // pred_check_branch
        %308 = sbr.rel (%p306) target = $region32
      $region31: #{a2c_forward.1} parent=11 // pred_region
        _
      $region32: #{a2c_forward.1} parent=11 // pred_fallthru
        _
      // Predicated region
      $region33: #{a2c_forward.1} parent=11 // pred_check
        %p309 = pneg %p169
      $region34: #{a2c_forward.1} parent=11 // pred_check_branch
        %311 = sbr.rel (%p309) target = $region36
      $region35: #{a2c_forward.1} parent=11 // pred_region
        _
      $region36: #{a2c_forward.1} parent=11 // pred_fallthru
        _
      // Predicated region
      $region37: #{a2c_forward.1} parent=11 // pred_check
        %p312 = pneg %p190
      $region38: #{a2c_forward.1} parent=11 // pred_check_branch
        %314 = sbr.rel (%p312) target = $region40
      $region39: #{a2c_forward.1} parent=11 // pred_region
        _
      $region40: #{a2c_forward.1} parent=11 // pred_fallthru
        _
      // Predicated region
      $region41: #{a2c_forward.1} parent=11 // pred_check
        %p315 = pneg %p211
      $region42: #{a2c_forward.1} parent=11 // pred_check_branch
        %317 = sbr.rel (%p315) target = $region44
      $region43: #{a2c_forward.1} parent=11 // pred_region
        _
      $region44: #{a2c_forward.1} parent=11 // pred_fallthru
        _
      // Predicated region
      $region45: #{a2c_forward.1} parent=11 // pred_check
        %p318 = pneg %p232
      $region46: #{a2c_forward.1} parent=11 // pred_check_branch
        %320 = sbr.rel (%p318) target = $region48
      $region47: #{a2c_forward.1} parent=11 // pred_region
        _
      $region48: #{a2c_forward.1} parent=11 // pred_fallthru
        _
      // Predicated region
      $region49: #{a2c_forward.1} parent=11 // pred_check
        %p321 = pneg %p253
      $region50: #{a2c_forward.1} parent=11 // pred_check_branch
        %323 = sbr.rel (%p321) target = $region52
      $region51: #{a2c_forward.1} parent=11 // pred_region
        _
      $region52: #{a2c_forward.1} parent=11 // pred_fallthru
        _
    $region12: #{a2c_forward.1} parent=5 // pred_fallthru
      _
    %p324 = scmp.lt.s32.totalorder %s17, 2
    // Predicated region
    $region53: #{a2c_forward.1} parent=5 // pred_check
      %p325 = pneg %p324
    $region54: #{a2c_forward.1} parent=5 // pred_check_branch
      %327 = sbr.rel (%p325) target = $region56
    $region55: #{a2c_forward.1} parent=5 // pred_region
      // Predicated region
      $region57: #{a2c_forward.1} parent=55 // pred_check
        %p328 = pneg %p37
      $region58: #{a2c_forward.1} parent=55 // pred_check_branch
        %330 = sbr.rel (%p328) target = $region60
      $region59: #{a2c_forward.1} parent=55 // pred_region
        %p331 = scmp.lt.s32.totalorder %s17, 1
        %s332 = scalar_select %p331, %s17, 1
        %s333 = smul.addr %s332, 36
        %s334 = smul.addr %s333, 8
        %s335 = scalar_lea.vmem %s0, %s334
      $region60: #{a2c_forward.1} parent=55 // pred_fallthru
        _
    $region56: #{a2c_forward.1} parent=5 // pred_fallthru
      _
    %p336 = scmp.le.s32.totalorder 1, %s17
    %p337 = scmp.lt.s32.totalorder %s17, 3
    %p338 = pnand %p336, %p337
    %p339 = pneg %p338
    // Predicated region
    $region61: #{a2c_forward.1} parent=5 // pred_check
      _
    $region62: #{a2c_forward.1} parent=5 // pred_check_branch
      %341 = sbr.rel (%p338) target = $region64
    $region63: #{a2c_forward.1} parent=5 // pred_region
      %s342 = ssub.s32 %s17, 1
      %p343 = scmp.lt.s32.totalorder %s22, 1
      %s344 = scalar_select %p343, %s22, 1
      %s345 = smul.addr %s344, 36
      %s346 = smul.addr %s345, 8
      %s347 = scalar_lea.vmem %s0, %s346
      %p348 = pneg %p43
      %p349 = pneg %p40
      %p350 = pneg %p64
      %p351 = pneg %p61
      %p352 = pneg %p85
      %p353 = pneg %p82
      %p354 = pneg %p106
      %p355 = pneg %p103
      %p356 = pneg %p127
      %p357 = pneg %p124
      %p358 = pneg %p148
      %p359 = pneg %p145
      %p360 = pneg %p169
      %p361 = pneg %p166
      %p362 = pneg %p190
      %p363 = pneg %p187
      %p364 = pneg %p211
      %p365 = pneg %p208
      %p366 = pneg %p232
      %p367 = pneg %p229
      %p368 = pneg %p253
      %p369 = pneg %p250
      %p370 = pneg %p279
      %p371 = pneg %p276
      %p372 = scmp.lt.s32.totalorder %s22, 1
      %s373 = scalar_select %p372, %s22, 1
      %s374 = scalar_lea.vmem %s11, %s373
      %p375 = scmp.lt.s32.totalorder %s22, 1
      %s376 = scalar_select %p375, %s22, 1
      %s377 = smul.addr %s376, 36
      %s378 = smul.addr %s377, 8
      %s379 = scalar_lea.vmem %s0, %s378
      %p380 = scmp.lt.s32.totalorder %s22, 1
      %s381 = scalar_select %p380, %s22, 1
      %s382 = scalar_lea.vmem %s11, %s381
      %v383 = vld [vmem:[%s379] sm:$0xff]
      %v384 = vld [vmem:[%s379 + $0x8] sm:$0xff]
      %v385 = vld [vmem:[%s379 + $0x10] sm:$0xff]
      %v386 = vld [vmem:[%s379 + $0x18] sm:$0xff]
      %v387 = vld [vmem:[%s379 + $0x20] sm:$0xff]
      %v388 = vld [vmem:[%s379 + $0x28] sm:$0xff]
      %v389 = vld [vmem:[%s379 + $0x30] sm:$0xff]
      %v390 = vld [vmem:[%s379 + $0x38] sm:$0xff]
      %v391 = vld [vmem:[%s379 + $0x40] sm:$0xff]
      %v392 = vld [vmem:[%s379 + $0x48] sm:$0xff]
      %v393 = vld [vmem:[%s379 + $0x50] sm:$0xff]
      %v394 = vld [vmem:[%s379 + $0x58] sm:$0xff]
      %v395 = vld [vmem:[%s379 + $0x60] sm:$0xff]
      %v396 = vld [vmem:[%s379 + $0x68] sm:$0xff]
      %v397 = vld [vmem:[%s379 + $0x70] sm:$0xff]
      %v398 = vld [vmem:[%s379 + $0x78] sm:$0xff]
      %v399 = vld [vmem:[%s379 + $0x80] sm:$0xff]
      %v400 = vld [vmem:[%s379 + $0x88] sm:$0xff]
      %v401 = vld [vmem:[%s379 + $0x90] sm:$0xff]
      %v402 = vld [vmem:[%s379 + $0x98] sm:$0xff]
      %v403 = vld [vmem:[%s379 + $0xa0] sm:$0xff]
      %v404 = vld [vmem:[%s379 + $0xa8] sm:$0xff]
      %v405 = vld [vmem:[%s379 + $0xb0] sm:$0xff]
      %v406 = vld [vmem:[%s379 + $0xb8] sm:$0xff]
      %v407 = vld [vmem:[%s379 + $0xc0] sm:$0xff]
      %v408 = vld [vmem:[%s379 + $0xc8] sm:$0xff]
      %v409 = vld [vmem:[%s379 + $0xd0] sm:$0xff]
      %v410 = vld [vmem:[%s379 + $0xd8] sm:$0xff]
      %v411 = vld [vmem:[%s379 + $0xe0] sm:$0xff]
      %v412 = vld [vmem:[%s379 + $0xe8] sm:$0xff]
      %v413 = vld [vmem:[%s379 + $0xf0] sm:$0xff]
      %v414 = vld [vmem:[%s379 + $0xf8] sm:$0xff]
      %v415 = vld [vmem:[%s379 + $0x100] sm:$0xff]
      %v416 = vld [vmem:[%s379 + $0x108] sm:$0xff]
      %v417 = vld [vmem:[%s379 + $0x110] sm:$0xff]
      %v418 = vld [vmem:[%s379 + $0x118] sm:$0xff]
      %v419 = vld [vmem:[%s3] sm:$0xff]
      %v420 = vld [vmem:[%s3 + $0x8] sm:$0xff]
      %v421 = vld [vmem:[%s3 + $0x10] sm:$0xff]
      %v422 = vld [vmem:[%s3 + $0x18] sm:$0xff]
      %v423 = vld [vmem:[%s3 + $0x20] sm:$0xff]
      %v424 = vld [vmem:[%s3 + $0x28] sm:$0xff]
      %v425 = vld [vmem:[%s3 + $0x30] sm:$0xff]
      %v426 = vld [vmem:[%s3 + $0x38] sm:$0xff]
      %v427 = vld [vmem:[%s3 + $0x40] sm:$0xff]
      %v428 = vld [vmem:[%s3 + $0x48] sm:$0xff]
      %v429 = vld [vmem:[%s3 + $0x50] sm:$0xff]
      %v430 = vld [vmem:[%s3 + $0x58] sm:$0xff]
      %v431 = vld [vmem:[%s3 + $0x60] sm:$0xff]
      %v432 = vld [vmem:[%s3 + $0x68] sm:$0xff]
      %v433 = vld [vmem:[%s3 + $0x70] sm:$0xff]
      %v434 = vld [vmem:[%s3 + $0x78] sm:$0xff]
      %v435 = vld [vmem:[%s3 + $0x80] sm:$0xff]
      %v436 = vld [vmem:[%s3 + $0x88] sm:$0xff]
      %v437 = vld [vmem:[%s3 + $0x90] sm:$0xff]
      %v438 = vld [vmem:[%s3 + $0x98] sm:$0xff]
      %v439 = vld [vmem:[%s3 + $0xa0] sm:$0xff]
      %v440 = vld [vmem:[%s3 + $0xa8] sm:$0xff]
      %v441 = vld [vmem:[%s3 + $0xb0] sm:$0xff]
      %v442 = vld [vmem:[%s3 + $0xb8] sm:$0xff]
      %v443 = vld [vmem:[%s3 + $0xc0] sm:$0xff]
      %v444 = vld [vmem:[%s3 + $0xc8] sm:$0xff]
      %v445 = vld [vmem:[%s3 + $0xd0] sm:$0xff]
      %v446 = vld [vmem:[%s3 + $0xd8] sm:$0xff]
      %v447 = vld [vmem:[%s3 + $0xe0] sm:$0xff]
      %v448 = vld [vmem:[%s3 + $0xe8] sm:$0xff]
      %v449 = vld [vmem:[%s3 + $0xf0] sm:$0xff]
      %v450 = vld [vmem:[%s3 + $0xf8] sm:$0xff]
      %v451 = vld [vmem:[%s4] sm:$0x1]
      %v453 = vlaneseq
      %v454 = vshrl.u32 %v453, 7
      %v455 = vsub.s32 0, %v454
      %v456 = vrot.slane %v451, %v455
      %458 = vmatprep.subr.mxu0 0.0
      %459 = vmatpush1.msra.mxu0 %v419
      %460 = vmatprep.subr.mxu0 0.0
      %461 = vmatpush1.msra.mxu0 %v420
      %462 = vmatprep.subr.mxu0 0.0
      %463 = vmatpush1.msra.mxu0 %v421
      %464 = vmatprep.subr.mxu0 0.0
      %465 = vmatpush1.msra.mxu0 %v422
      %466 = vmatprep.subr.mxu0 0.0
      %467 = vmatpush1.msra.mxu0 %v423
      %468 = vmatprep.subr.mxu0 0.0
      %469 = vmatpush1.msra.mxu0 %v424
      %470 = vmatprep.subr.mxu0 0.0
      %471 = vmatpush1.msra.mxu0 %v425
      %472 = vmatprep.subr.mxu0 0.0
      %473 = vmatpush1.msra.mxu0 %v426
      %474 = vmatprep.subr.mxu0 0.0
      %475 = vmatpush1.msra.mxu0 %v427
      %476 = vmatprep.subr.mxu0 0.0
      %477 = vmatpush1.msra.mxu0 %v428
      %478 = vmatprep.subr.mxu0 0.0
      %479 = vmatpush1.msra.mxu0 %v429
      %480 = vmatprep.subr.mxu0 0.0
      %481 = vmatpush1.msra.mxu0 %v430
      %482 = vmatprep.subr.mxu0 0.0
      %483 = vmatpush1.msra.mxu0 %v431
      %484 = vmatprep.subr.mxu0 0.0
      %485 = vmatpush1.msra.mxu0 %v432
      %486 = vmatprep.subr.mxu0 0.0
      %487 = vmatpush1.msra.mxu0 %v433
      %488 = vmatprep.subr.mxu0 0.0
      %489 = vmatpush1.msra.mxu0 %v434
      %490 = vmatprep.subr.mxu0 0.0
      %491 = vmatpush1.msra.mxu0 %v435
      %492 = vmatprep.subr.mxu0 0.0
      %493 = vmatpush1.msra.mxu0 %v436
      %494 = vmatprep.subr.mxu0 0.0
      %495 = vmatpush1.msra.mxu0 %v437
      %496 = vmatprep.subr.mxu0 0.0
      %497 = vmatpush1.msra.mxu0 %v438
      %498 = vmatprep.subr.mxu0 0.0
      %499 = vmatpush1.msra.mxu0 %v439
      %500 = vmatprep.subr.mxu0 0.0
      %501 = vmatpush1.msra.mxu0 %v440
      %502 = vmatprep.subr.mxu0 0.0
      %503 = vmatpush1.msra.mxu0 %v441
      %504 = vmatprep.subr.mxu0 0.0
      %505 = vmatpush1.msra.mxu0 %v442
      %506 = vmatprep.subr.mxu0 0.0
      %507 = vmatpush1.msra.mxu0 %v443
      %508 = vmatprep.subr.mxu0 0.0
      %509 = vmatpush1.msra.mxu0 %v444
      %510 = vmatprep.subr.mxu0 0.0
      %511 = vmatpush1.msra.mxu0 %v445
      %512 = vmatprep.subr.mxu0 0.0
      %513 = vmatpush1.msra.mxu0 %v446
      %514 = vmatprep.subr.mxu0 0.0
      %515 = vmatpush1.msra.mxu0 %v447
      %516 = vmatprep.subr.mxu0 0.0
      %517 = vmatpush1.msra.mxu0 %v448
      %518 = vmatprep.subr.mxu0 0.0
      %519 = vmatpush1.msra.mxu0 %v449
      %520 = vmatprep.subr.mxu0 0.0
      %521 = vmatpush1.msra.mxu0 %v450
      %522 = vmatprep.mubr.f32.mxu0 %v384
      %523 = vmatmul.mubr.f32.gmra.mrb[0].mxu0 %v383
      %v524 = vpop.f32.mrb[0].mxu0
      %v525 = vadd.f32 %v456, %v524
      %v526 = vpop.f32.mrb[0].mxu0
      %527 = vmatprep.mubr.f32.mxu0 %v386
      %528 = vmatmul.mubr.f32.gmra.mrb[0].mxu0 %v385
      %v529 = vpop.f32.mrb[0].mxu0
      %v530 = vadd.f32 %v456, %v529
      %v531 = vpop.f32.mrb[0].mxu0
      %532 = vmatprep.mubr.f32.mxu0 %v388
      %533 = vmatmul.mubr.f32.gmra.mrb[0].mxu0 %v387
      %v534 = vpop.f32.mrb[0].mxu0
      %v535 = vadd.f32 %v456, %v534
      %v536 = vpop.f32.mrb[0].mxu0
      %537 = vmatprep.mubr.f32.mxu0 %v390
      %538 = vmatmul.mubr.f32.gmra.mrb[0].mxu0 %v389
      %v539 = vpop.f32.mrb[0].mxu0
      %v540 = vadd.f32 %v456, %v539
      %v541 = vpop.f32.mrb[0].mxu0
      %542 = vmatprep.mubr.f32.mxu0 %v392
      %543 = vmatmul.mubr.f32.gmra.mrb[0].mxu0 %v391
      %v544 = vpop.f32.mrb[0].mxu0
      %v545 = vadd.f32 %v456, %v544
      %v546 = vpop.f32.mrb[0].mxu0
      %547 = vmatprep.mubr.f32.mxu0 %v394
      %548 = vmatmul.mubr.f32.gmra.mrb[0].mxu0 %v393
      %v549 = vpop.f32.mrb[0].mxu0
      %v550 = vadd.f32 %v456, %v549
      %v551 = vpop.f32.mrb[0].mxu0
      %552 = vmatprep.mubr.f32.mxu0 %v396
      %553 = vmatmul.mubr.f32.gmra.mrb[0].mxu0 %v395
      %v554 = vpop.f32.mrb[0].mxu0
      %v555 = vadd.f32 %v456, %v554
      %v556 = vpop.f32.mrb[0].mxu0
      %557 = vmatprep.mubr.f32.mxu0 %v398
      %558 = vmatmul.mubr.f32.gmra.mrb[0].mxu0 %v397
      %v559 = vpop.f32.mrb[0].mxu0
      %v560 = vadd.f32 %v456, %v559
      %v561 = vpop.f32.mrb[0].mxu0
      %562 = vmatprep.mubr.f32.mxu0 %v400
      %563 = vmatmul.mubr.f32.gmra.mrb[0].mxu0 %v399
      %v564 = vpop.f32.mrb[0].mxu0
      %v565 = vadd.f32 %v456, %v564
      %v566 = vpop.f32.mrb[0].mxu0
      %567 = vmatprep.mubr.f32.mxu0 %v402
      %568 = vmatmul.mubr.f32.gmra.mrb[0].mxu0 %v401
      %v569 = vpop.f32.mrb[0].mxu0
      %v570 = vadd.f32 %v456, %v569
      %v571 = vpop.f32.mrb[0].mxu0
      %572 = vmatprep.mubr.f32.mxu0 %v404
      %573 = vmatmul.mubr.f32.gmra.mrb[0].mxu0 %v403
      %v574 = vpop.f32.mrb[0].mxu0
      %v575 = vadd.f32 %v456, %v574
      %v576 = vpop.f32.mrb[0].mxu0
      %577 = vmatprep.mubr.f32.mxu0 %v406
      %578 = vmatmul.mubr.f32.gmra.mrb[0].mxu0 %v405
      %v579 = vpop.f32.mrb[0].mxu0
      %v580 = vadd.f32 %v456, %v579
      %v581 = vpop.f32.mrb[0].mxu0
      %582 = vmatprep.mubr.f32.mxu0 %v408
      %583 = vmatmul.mubr.f32.gmra.mrb[0].mxu0 %v407
      %v584 = vpop.f32.mrb[0].mxu0
      %v585 = vadd.f32 %v456, %v584
      %v586 = vpop.f32.mrb[0].mxu0
      %587 = vmatprep.mubr.f32.mxu0 %v410
      %588 = vmatmul.mubr.f32.gmra.mrb[0].mxu0 %v409
      %v589 = vpop.f32.mrb[0].mxu0
      %v590 = vadd.f32 %v456, %v589
      %v591 = vpop.f32.mrb[0].mxu0
      %592 = vmatprep.mubr.f32.mxu0 %v412
      %593 = vmatmul.mubr.f32.gmra.mrb[0].mxu0 %v411
      %v594 = vpop.f32.mrb[0].mxu0
      %v595 = vadd.f32 %v456, %v594
      %v596 = vpop.f32.mrb[0].mxu0
      %597 = vmatprep.mubr.f32.mxu0 %v414
      %598 = vmatmul.mubr.f32.gmra.mrb[0].mxu0 %v413
      %v599 = vpop.f32.mrb[0].mxu0
      %v600 = vadd.f32 %v456, %v599
      %v601 = vpop.f32.mrb[0].mxu0
      %602 = vmatprep.mubr.f32.mxu0 %v416
      %603 = vmatmul.mubr.f32.gmra.mrb[0].mxu0 %v415
      %v604 = vpop.f32.mrb[0].mxu0
      %v605 = vadd.f32 %v456, %v604
      %v606 = vpop.f32.mrb[0].mxu0
      %607 = vmatprep.mubr.f32.mxu0 %v418
      %608 = vmatmul.mubr.f32.gmra.mrb[0].mxu0 %v417
      %v609 = vpop.f32.mrb[0].mxu0
      %v610 = vadd.f32 %v456, %v609
      %v611 = vpop.f32.mrb[0].mxu0
      %612 = vdwg.mxu0
      %v613 = vmax.f32 %v525, 0.0
      %v614 = vmax.f32 %v530, 0.0
      %v615 = vmax.f32 %v535, 0.0
      %v616 = vmax.f32 %v540, 0.0
      %v617 = vmax.f32 %v545, 0.0
      %v618 = vmax.f32 %v550, 0.0
      %v619 = vmax.f32 %v555, 0.0
      %v620 = vmax.f32 %v560, 0.0
      %v621 = vmax.f32 %v565, 0.0
      %v622 = vmax.f32 %v570, 0.0
      %v623 = vmax.f32 %v575, 0.0
      %v624 = vmax.f32 %v580, 0.0
      %v625 = vmax.f32 %v585, 0.0
      %v626 = vmax.f32 %v590, 0.0
      %v627 = vmax.f32 %v595, 0.0
      %v628 = vmax.f32 %v600, 0.0
      %v629 = vmax.f32 %v605, 0.0
      %v630 = vmax.f32 %v610, 0.0
      %v631 = vld [vmem:[%s1] sm:$0xff]
      %v632 = vld [vmem:[%s1 + $0x8] sm:$0xff]
      %v633 = vld [vmem:[%s1 + $0x10] sm:$0xff]
      %v634 = vld [vmem:[%s1 + $0x18] sm:$0xff]
      %v635 = vld [vmem:[%s1 + $0x20] sm:$0xff]
      %v636 = vld [vmem:[%s1 + $0x28] sm:$0xff]
      %v637 = vld [vmem:[%s1 + $0x30] sm:$0xff]
      %v638 = vld [vmem:[%s1 + $0x38] sm:$0xff]
      %v639 = vld [vmem:[%s1 + $0x40] sm:$0xff]
      %v640 = vld [vmem:[%s1 + $0x48] sm:$0xff]
      %v641 = vld [vmem:[%s1 + $0x50] sm:$0xff]
      %v642 = vld [vmem:[%s1 + $0x58] sm:$0xff]
      %v643 = vld [vmem:[%s1 + $0x60] sm:$0xff]
      %v644 = vld [vmem:[%s1 + $0x68] sm:$0xff]
      %v645 = vld [vmem:[%s1 + $0x70] sm:$0xff]
      %v646 = vld [vmem:[%s1 + $0x78] sm:$0xff]
      %v647 = vld [vmem:[%s1 + $0x80] sm:$0xff]
      %v648 = vld [vmem:[%s1 + $0x88] sm:$0xff]
      %v649 = vld [vmem:[%s1 + $0x90] sm:$0xff]
      %v650 = vld [vmem:[%s1 + $0x98] sm:$0xff]
      %v651 = vld [vmem:[%s1 + $0xa0] sm:$0xff]
      %v652 = vld [vmem:[%s1 + $0xa8] sm:$0xff]
      %v653 = vld [vmem:[%s1 + $0xb0] sm:$0xff]
      %v654 = vld [vmem:[%s1 + $0xb8] sm:$0xff]
      %v655 = vld [vmem:[%s1 + $0xc0] sm:$0xff]
      %v656 = vld [vmem:[%s1 + $0xc8] sm:$0xff]
      %v657 = vld [vmem:[%s1 + $0xd0] sm:$0xff]
      %v658 = vld [vmem:[%s1 + $0xd8] sm:$0xff]
      %v659 = vld [vmem:[%s1 + $0xe0] sm:$0xff]
      %v660 = vld [vmem:[%s1 + $0xe8] sm:$0xff]
      %v661 = vld [vmem:[%s1 + $0xf0] sm:$0xff]
      %v662 = vld [vmem:[%s1 + $0xf8] sm:$0xff]
      %v663 = vld [vmem:[%s1 + $0x100] sm:$0xff]
      %v664 = vld [vmem:[%s1 + $0x108] sm:$0xff]
      %v665 = vld [vmem:[%s1 + $0x110] sm:$0xff]
      %v666 = vld [vmem:[%s1 + $0x118] sm:$0xff]
      %v667 = vld [vmem:[%s1 + $0x120] sm:$0xff]
      %v668 = vld [vmem:[%s1 + $0x128] sm:$0xff]
      %v669 = vld [vmem:[%s1 + $0x130] sm:$0xff]
      %v670 = vld [vmem:[%s1 + $0x138] sm:$0xff]
      %v671 = vld [vmem:[%s1 + $0x140] sm:$0xff]
      %v672 = vld [vmem:[%s1 + $0x148] sm:$0xff]
      %v673 = vld [vmem:[%s1 + $0x150] sm:$0xff]
      %v674 = vld [vmem:[%s1 + $0x158] sm:$0xff]
      %v675 = vld [vmem:[%s1 + $0x160] sm:$0xff]
      %v676 = vld [vmem:[%s1 + $0x168] sm:$0xff]
      %v677 = vld [vmem:[%s1 + $0x170] sm:$0xff]
      %v678 = vld [vmem:[%s1 + $0x178] sm:$0xff]
      %v679 = vld [vmem:[%s1 + $0x180] sm:$0xff]
      %v680 = vld [vmem:[%s1 + $0x188] sm:$0xff]
      %v681 = vld [vmem:[%s1 + $0x190] sm:$0xff]
      %v682 = vld [vmem:[%s1 + $0x198] sm:$0xff]
      %v683 = vld [vmem:[%s1 + $0x1a0] sm:$0xff]
      %v684 = vld [vmem:[%s1 + $0x1a8] sm:$0xff]
      %v685 = vld [vmem:[%s1 + $0x1b0] sm:$0xff]
      %v686 = vld [vmem:[%s1 + $0x1b8] sm:$0xff]
      %v687 = vld [vmem:[%s1 + $0x1c0] sm:$0xff]
      %v688 = vld [vmem:[%s1 + $0x1c8] sm:$0xff]
      %v689 = vld [vmem:[%s1 + $0x1d0] sm:$0xff]
      %v690 = vld [vmem:[%s1 + $0x1d8] sm:$0xff]
      %v691 = vld [vmem:[%s1 + $0x1e0] sm:$0xff]
      %v692 = vld [vmem:[%s1 + $0x1e8] sm:$0xff]
      %v693 = vld [vmem:[%s1 + $0x1f0] sm:$0xff]
      %v694 = vld [vmem:[%s1 + $0x1f8] sm:$0xff]
      %v695 = vld [vmem:[%s1 + $0x200] sm:$0xff]
      %v696 = vld [vmem:[%s1 + $0x208] sm:$0xff]
      %v697 = vld [vmem:[%s1 + $0x210] sm:$0xff]
      %v698 = vld [vmem:[%s1 + $0x218] sm:$0xff]
      %v699 = vld [vmem:[%s1 + $0x220] sm:$0xff]
      %v700 = vld [vmem:[%s1 + $0x228] sm:$0xff]
      %v701 = vld [vmem:[%s1 + $0x230] sm:$0xff]
      %v702 = vld [vmem:[%s1 + $0x238] sm:$0xff]
      %v703 = vld [vmem:[%s1 + $0x240] sm:$0xff]
      %v704 = vld [vmem:[%s1 + $0x248] sm:$0xff]
      %v705 = vld [vmem:[%s1 + $0x250] sm:$0xff]
      %v706 = vld [vmem:[%s1 + $0x258] sm:$0xff]
      %v707 = vld [vmem:[%s1 + $0x260] sm:$0xff]
      %v708 = vld [vmem:[%s1 + $0x268] sm:$0xff]
      %v709 = vld [vmem:[%s1 + $0x270] sm:$0xff]
      %v710 = vld [vmem:[%s1 + $0x278] sm:$0xff]
      %v711 = vld [vmem:[%s1 + $0x280] sm:$0xff]
      %v712 = vld [vmem:[%s1 + $0x288] sm:$0xff]
      %v713 = vld [vmem:[%s1 + $0x290] sm:$0xff]
      %v714 = vld [vmem:[%s1 + $0x298] sm:$0xff]
      %v715 = vld [vmem:[%s1 + $0x2a0] sm:$0xff]
      %v716 = vld [vmem:[%s1 + $0x2a8] sm:$0xff]
      %v717 = vld [vmem:[%s1 + $0x2b0] sm:$0xff]
      %v718 = vld [vmem:[%s1 + $0x2b8] sm:$0xff]
      %v719 = vld [vmem:[%s1 + $0x2c0] sm:$0xff]
      %v720 = vld [vmem:[%s1 + $0x2c8] sm:$0xff]
      %v721 = vld [vmem:[%s1 + $0x2d0] sm:$0xff]
      %v722 = vld [vmem:[%s1 + $0x2d8] sm:$0xff]
      %v723 = vld [vmem:[%s1 + $0x2e0] sm:$0xff]
      %v724 = vld [vmem:[%s1 + $0x2e8] sm:$0xff]
      %v725 = vld [vmem:[%s1 + $0x2f0] sm:$0xff]
      %v726 = vld [vmem:[%s1 + $0x2f8] sm:$0xff]
      %v727 = vld [vmem:[%s1 + $0x300] sm:$0xff]
      %v728 = vld [vmem:[%s1 + $0x308] sm:$0xff]
      %v729 = vld [vmem:[%s1 + $0x310] sm:$0xff]
      %v730 = vld [vmem:[%s1 + $0x318] sm:$0xff]
      %v731 = vld [vmem:[%s1 + $0x320] sm:$0xff]
      %v732 = vld [vmem:[%s1 + $0x328] sm:$0xff]
      %v733 = vld [vmem:[%s1 + $0x330] sm:$0xff]
      %v734 = vld [vmem:[%s1 + $0x338] sm:$0xff]
      %v735 = vld [vmem:[%s1 + $0x340] sm:$0xff]
      %v736 = vld [vmem:[%s1 + $0x348] sm:$0xff]
      %v737 = vld [vmem:[%s1 + $0x350] sm:$0xff]
      %v738 = vld [vmem:[%s1 + $0x358] sm:$0xff]
      %v739 = vld [vmem:[%s1 + $0x360] sm:$0xff]
      %v740 = vld [vmem:[%s1 + $0x368] sm:$0xff]
      %v741 = vld [vmem:[%s1 + $0x370] sm:$0xff]
      %v742 = vld [vmem:[%s1 + $0x378] sm:$0xff]
      %v743 = vld [vmem:[%s1 + $0x380] sm:$0xff]
      %v744 = vld [vmem:[%s1 + $0x388] sm:$0xff]
      %v745 = vld [vmem:[%s1 + $0x390] sm:$0xff]
      %v746 = vld [vmem:[%s1 + $0x398] sm:$0xff]
      %v747 = vld [vmem:[%s1 + $0x3a0] sm:$0xff]
      %v748 = vld [vmem:[%s1 + $0x3a8] sm:$0xff]
      %v749 = vld [vmem:[%s1 + $0x3b0] sm:$0xff]
      %v750 = vld [vmem:[%s1 + $0x3b8] sm:$0xff]
      %v751 = vld [vmem:[%s1 + $0x3c0] sm:$0xff]
      %v752 = vld [vmem:[%s1 + $0x3c8] sm:$0xff]
      %v753 = vld [vmem:[%s1 + $0x3d0] sm:$0xff]
      %v754 = vld [vmem:[%s1 + $0x3d8] sm:$0xff]
      %v755 = vld [vmem:[%s1 + $0x3e0] sm:$0xff]
      %v756 = vld [vmem:[%s1 + $0x3e8] sm:$0xff]
      %v757 = vld [vmem:[%s1 + $0x3f0] sm:$0xff]
      %v758 = vld [vmem:[%s1 + $0x3f8] sm:$0xff]
      %vm759 = vcmask 130048
      %v761 = vsel %vm759, %v632, 0
      %v764 = vsel %vm759, %v634, 0
      %v767 = vsel %vm759, %v636, 0
      %v770 = vsel %vm759, %v638, 0
      %v773 = vsel %vm759, %v640, 0
      %v776 = vsel %vm759, %v642, 0
      %v779 = vsel %vm759, %v644, 0
      %v782 = vsel %vm759, %v646, 0
      %v785 = vsel %vm759, %v648, 0
      %v788 = vsel %vm759, %v650, 0
      %v791 = vsel %vm759, %v652, 0
      %v794 = vsel %vm759, %v654, 0
      %v797 = vsel %vm759, %v656, 0
      %v800 = vsel %vm759, %v658, 0
      %v803 = vsel %vm759, %v660, 0
      %v806 = vsel %vm759, %v662, 0
      %v809 = vsel %vm759, %v664, 0
      %v812 = vsel %vm759, %v666, 0
      %v815 = vsel %vm759, %v668, 0
      %v818 = vsel %vm759, %v670, 0
      %v821 = vsel %vm759, %v672, 0
      %v824 = vsel %vm759, %v674, 0
      %v827 = vsel %vm759, %v676, 0
      %v830 = vsel %vm759, %v678, 0
      %v833 = vsel %vm759, %v680, 0
      %v836 = vsel %vm759, %v682, 0
      %v839 = vsel %vm759, %v684, 0
      %v842 = vsel %vm759, %v686, 0
      %v845 = vsel %vm759, %v688, 0
      %v848 = vsel %vm759, %v690, 0
      %v851 = vsel %vm759, %v692, 0
      %v854 = vsel %vm759, %v694, 0
      %v857 = vsel %vm759, %v696, 0
      %v860 = vsel %vm759, %v698, 0
      %v863 = vsel %vm759, %v700, 0
      %v866 = vsel %vm759, %v702, 0
      %v869 = vsel %vm759, %v704, 0
      %v872 = vsel %vm759, %v706, 0
      %v875 = vsel %vm759, %v708, 0
      %v878 = vsel %vm759, %v710, 0
      %v881 = vsel %vm759, %v712, 0
      %v884 = vsel %vm759, %v714, 0
      %v887 = vsel %vm759, %v716, 0
      %v890 = vsel %vm759, %v718, 0
      %v893 = vsel %vm759, %v720, 0
      %v896 = vsel %vm759, %v722, 0
      %v899 = vsel %vm759, %v724, 0
      %v902 = vsel %vm759, %v726, 0
      %v905 = vsel %vm759, %v728, 0
      %v908 = vsel %vm759, %v730, 0
      %v911 = vsel %vm759, %v732, 0
      %v914 = vsel %vm759, %v734, 0
      %v917 = vsel %vm759, %v736, 0
      %v920 = vsel %vm759, %v738, 0
      %v923 = vsel %vm759, %v740, 0
      %v926 = vsel %vm759, %v742, 0
      %v929 = vsel %vm759, %v744, 0
      %v932 = vsel %vm759, %v746, 0
      %v935 = vsel %vm759, %v748, 0
      %v938 = vsel %vm759, %v750, 0
      %v941 = vsel %vm759, %v752, 0
      %v944 = vsel %vm759, %v754, 0
      %v947 = vsel %vm759, %v756, 0
      %v950 = vsel %vm759, %v758, 0
      %952 = vmatprep.subr.mxu0 0.0
      %953 = vmatpush1.msra.mxu0 %v613
      %954 = vmatprep.subr.mxu0 0.0
      %955 = vmatpush1.msra.mxu0 %v614
      %956 = vmatprep.subr.mxu0 0.0
      %957 = vmatpush1.msra.mxu0 %v615
      %958 = vmatprep.subr.mxu0 0.0
      %959 = vmatpush1.msra.mxu0 %v616
      %960 = vmatprep.subr.mxu0 0.0
      %961 = vmatpush1.msra.mxu0 %v617
      %962 = vmatprep.subr.mxu0 0.0
      %963 = vmatpush1.msra.mxu0 %v618
      %964 = vmatprep.subr.mxu0 0.0
      %965 = vmatpush1.msra.mxu0 %v619
      %966 = vmatprep.subr.mxu0 0.0
      %967 = vmatpush1.msra.mxu0 %v620
      %968 = vmatprep.subr.mxu0 0.0
      %969 = vmatpush1.msra.mxu0 %v621
      %970 = vmatprep.subr.mxu0 0.0
      %971 = vmatpush1.msra.mxu0 %v622
      %972 = vmatprep.subr.mxu0 0.0
      %973 = vmatpush1.msra.mxu0 %v623
      %974 = vmatprep.subr.mxu0 0.0
      %975 = vmatpush1.msra.mxu0 %v624
      %976 = vmatprep.subr.mxu0 0.0
      %977 = vmatpush1.msra.mxu0 %v625
      %978 = vmatprep.subr.mxu0 0.0
      %979 = vmatpush1.msra.mxu0 %v626
      %980 = vmatprep.subr.mxu0 0.0
      %981 = vmatpush1.msra.mxu0 %v627
      %982 = vmatprep.subr.mxu0 0.0
      %983 = vmatpush1.msra.mxu0 %v628
      %984 = vmatprep.subr.mxu0 0.0
      %985 = vmatpush1.msra.mxu0 %v629
      %986 = vmatprep.subr.mxu0 0.0
      %987 = vmatpush1.msra.mxu0 %v630
      %988 = vmatprep.subr.mxu0 0.0
      %989 = vmatpush1.msra.mxu0 0.0
      %990 = vmatprep.subr.mxu0 0.0
      %991 = vmatpush1.msra.mxu0 0.0
      %992 = vmatprep.subr.mxu0 0.0
      %993 = vmatpush1.msra.mxu0 0.0
      %994 = vmatprep.subr.mxu0 0.0
      %995 = vmatpush1.msra.mxu0 0.0
      %996 = vmatprep.subr.mxu0 0.0
      %997 = vmatpush1.msra.mxu0 0.0
      %998 = vmatprep.subr.mxu0 0.0
      %999 = vmatpush1.msra.mxu0 0.0
      %1000 = vmatprep.subr.mxu0 0.0
      %1001 = vmatpush1.msra.mxu0 0.0
      %1002 = vmatprep.subr.mxu0 0.0
      %1003 = vmatpush1.msra.mxu0 0.0
      %1004 = vmatprep.subr.mxu0 0.0
      %1005 = vmatpush1.msra.mxu0 0.0
      %1006 = vmatprep.subr.mxu0 0.0
      %1007 = vmatpush1.msra.mxu0 0.0
      %1008 = vmatprep.subr.mxu0 0.0
      %1009 = vmatpush1.msra.mxu0 0.0
      %1010 = vmatprep.subr.mxu0 0.0
      %1011 = vmatpush1.msra.mxu0 0.0
      %1012 = vmatprep.subr.mxu0 0.0
      %1013 = vmatpush1.msra.mxu0 0.0
      %1014 = vmatprep.subr.mxu0 0.0
      %1015 = vmatpush1.msra.mxu0 0.0
      %1016 = vmatprep.mubr.f32.mxu0 %v761
      %1017 = vmatmul.mubr.f32.gmra.mrb[0].mxu0 %v631
      %v1018 = vpop.f32.mrb[0].mxu0
      %v1019 = vadd.f32 0.0, %v1018
      %v1020 = vpop.f32.mrb[0].mxu0
      %1021 = vmatprep.mubr.f32.mxu0 %v764
      %1022 = vmatmul.mubr.f32.gmra.mrb[0].mxu0 %v633
      %v1023 = vpop.f32.mrb[0].mxu0
      %v1024 = vadd.f32 0.0, %v1023
      %v1025 = vpop.f32.mrb[0].mxu0
      %1026 = vmatprep.mubr.f32.mxu0 %v767
      %1027 = vmatmul.mubr.f32.gmra.mrb[0].mxu0 %v635
      %v1028 = vpop.f32.mrb[0].mxu0
      %v1029 = vadd.f32 0.0, %v1028
      %v1030 = vpop.f32.mrb[0].mxu0
      %1031 = vmatprep.mubr.f32.mxu0 %v770
      %1032 = vmatmul.mubr.f32.gmra.mrb[0].mxu0 %v637
      %v1033 = vpop.f32.mrb[0].mxu0
      %v1034 = vadd.f32 0.0, %v1033
      %v1035 = vpop.f32.mrb[0].mxu0
      %1036 = vmatprep.mubr.f32.mxu0 %v773
      %1037 = vmatmul.mubr.f32.gmra.mrb[0].mxu0 %v639
      %v1038 = vpop.f32.mrb[0].mxu0
      %v1039 = vadd.f32 0.0, %v1038
      %v1040 = vpop.f32.mrb[0].mxu0
      %1041 = vmatprep.mubr.f32.mxu0 %v776
      %1042 = vmatmul.mubr.f32.gmra.mrb[0].mxu0 %v641
      %v1043 = vpop.f32.mrb[0].mxu0
      %v1044 = vadd.f32 0.0, %v1043
      %v1045 = vpop.f32.mrb[0].mxu0
      %1046 = vmatprep.mubr.f32.mxu0 %v779
      %1047 = vmatmul.mubr.f32.gmra.mrb[0].mxu0 %v643
      %v1048 = vpop.f32.mrb[0].mxu0
      %v1049 = vadd.f32 0.0, %v1048
      %v1050 = vpop.f32.mrb[0].mxu0
      %1051 = vmatprep.mubr.f32.mxu0 %v782
      %1052 = vmatmul.mubr.f32.gmra.mrb[0].mxu0 %v645
      %v1053 = vpop.f32.mrb[0].mxu0
      %v1054 = vadd.f32 0.0, %v1053
      %v1055 = vpop.f32.mrb[0].mxu0
      %1056 = vmatprep.mubr.f32.mxu0 %v785
      %1057 = vmatmul.mubr.f32.gmra.mrb[0].mxu0 %v647
      %v1058 = vpop.f32.mrb[0].mxu0
      %v1059 = vadd.f32 0.0, %v1058
      %v1060 = vpop.f32.mrb[0].mxu0
      %1061 = vmatprep.mubr.f32.mxu0 %v788
      %1062 = vmatmul.mubr.f32.gmra.mrb[0].mxu0 %v649
      %v1063 = vpop.f32.mrb[0].mxu0
      %v1064 = vadd.f32 0.0, %v1063
      %v1065 = vpop.f32.mrb[0].mxu0
      %1066 = vmatprep.mubr.f32.mxu0 %v791
      %1067 = vmatmul.mubr.f32.gmra.mrb[0].mxu0 %v651
      %v1068 = vpop.f32.mrb[0].mxu0
      %v1069 = vadd.f32 0.0, %v1068
      %v1070 = vpop.f32.mrb[0].mxu0
      %1071 = vmatprep.mubr.f32.mxu0 %v794
      %1072 = vmatmul.mubr.f32.gmra.mrb[0].mxu0 %v653
      %v1073 = vpop.f32.mrb[0].mxu0
      %v1074 = vadd.f32 0.0, %v1073
      %v1075 = vpop.f32.mrb[0].mxu0
      %1076 = vmatprep.mubr.f32.mxu0 %v797
      %1077 = vmatmul.mubr.f32.gmra.mrb[0].mxu0 %v655
      %v1078 = vpop.f32.mrb[0].mxu0
      %v1079 = vadd.f32 0.0, %v1078
      %v1080 = vpop.f32.mrb[0].mxu0
      %1081 = vmatprep.mubr.f32.mxu0 %v800
      %1082 = vmatmul.mubr.f32.gmra.mrb[0].mxu0 %v657
      %v1083 = vpop.f32.mrb[0].mxu0
      %v1084 = vadd.f32 0.0, %v1083
      %v1085 = vpop.f32.mrb[0].mxu0
      %1086 = vmatprep.mubr.f32.mxu0 %v803
      %1087 = vmatmul.mubr.f32.gmra.mrb[0].mxu0 %v659
      %v1088 = vpop.f32.mrb[0].mxu0
      %v1089 = vadd.f32 0.0, %v1088
      %v1090 = vpop.f32.mrb[0].mxu0
      %1091 = vmatprep.mubr.f32.mxu0 %v806
      %1092 = vmatmul.mubr.f32.gmra.mrb[0].mxu0 %v661
      %v1093 = vpop.f32.mrb[0].mxu0
      %v1094 = vadd.f32 0.0, %v1093
      %v1095 = vpop.f32.mrb[0].mxu0
      %1096 = vmatprep.mubr.f32.mxu0 %v809
      %1097 = vmatmul.mubr.f32.gmra.mrb[0].mxu0 %v663
      %v1098 = vpop.f32.mrb[0].mxu0
      %v1099 = vadd.f32 0.0, %v1098
      %v1100 = vpop.f32.mrb[0].mxu0
      %1101 = vmatprep.mubr.f32.mxu0 %v812
      %1102 = vmatmul.mubr.f32.gmra.mrb[0].mxu0 %v665
      %v1103 = vpop.f32.mrb[0].mxu0
      %v1104 = vadd.f32 0.0, %v1103
      %v1105 = vpop.f32.mrb[0].mxu0
      %1106 = vmatprep.mubr.f32.mxu0 %v815
      %1107 = vmatmul.mubr.f32.gmra.mrb[0].mxu0 %v667
      %v1108 = vpop.f32.mrb[0].mxu0
      %v1109 = vadd.f32 0.0, %v1108
      %v1110 = vpop.f32.mrb[0].mxu0
      %1111 = vmatprep.mubr.f32.mxu0 %v818
      %1112 = vmatmul.mubr.f32.gmra.mrb[0].mxu0 %v669
      %v1113 = vpop.f32.mrb[0].mxu0
      %v1114 = vadd.f32 0.0, %v1113
      %v1115 = vpop.f32.mrb[0].mxu0
      %1116 = vmatprep.mubr.f32.mxu0 %v821
      %1117 = vmatmul.mubr.f32.gmra.mrb[0].mxu0 %v671
      %v1118 = vpop.f32.mrb[0].mxu0
      %v1119 = vadd.f32 0.0, %v1118
      %v1120 = vpop.f32.mrb[0].mxu0
      %1121 = vmatprep.mubr.f32.mxu0 %v824
      %1122 = vmatmul.mubr.f32.gmra.mrb[0].mxu0 %v673
      %v1123 = vpop.f32.mrb[0].mxu0
      %v1124 = vadd.f32 0.0, %v1123
      %v1125 = vpop.f32.mrb[0].mxu0
      %1126 = vmatprep.mubr.f32.mxu0 %v827
      %1127 = vmatmul.mubr.f32.gmra.mrb[0].mxu0 %v675
      %v1128 = vpop.f32.mrb[0].mxu0
      %v1129 = vadd.f32 0.0, %v1128
      %v1130 = vpop.f32.mrb[0].mxu0
      %1131 = vmatprep.mubr.f32.mxu0 %v830
      %1132 = vmatmul.mubr.f32.gmra.mrb[0].mxu0 %v677
      %v1133 = vpop.f32.mrb[0].mxu0
      %v1134 = vadd.f32 0.0, %v1133
      %v1135 = vpop.f32.mrb[0].mxu0
      %1136 = vmatprep.mubr.f32.mxu0 %v833
      %1137 = vmatmul.mubr.f32.gmra.mrb[0].mxu0 %v679
      %v1138 = vpop.f32.mrb[0].mxu0
      %v1139 = vadd.f32 0.0, %v1138
      %v1140 = vpop.f32.mrb[0].mxu0
      %1141 = vmatprep.mubr.f32.mxu0 %v836
      %1142 = vmatmul.mubr.f32.gmra.mrb[0].mxu0 %v681
      %v1143 = vpop.f32.mrb[0].mxu0
      %v1144 = vadd.f32 0.0, %v1143
      %v1145 = vpop.f32.mrb[0].mxu0
      %1146 = vmatprep.mubr.f32.mxu0 %v839
      %1147 = vmatmul.mubr.f32.gmra.mrb[0].mxu0 %v683
      %v1148 = vpop.f32.mrb[0].mxu0
      %v1149 = vadd.f32 0.0, %v1148
      %v1150 = vpop.f32.mrb[0].mxu0
      %1151 = vmatprep.mubr.f32.mxu0 %v842
      %1152 = vmatmul.mubr.f32.gmra.mrb[0].mxu0 %v685
      %v1153 = vpop.f32.mrb[0].mxu0
      %v1154 = vadd.f32 0.0, %v1153
      %v1155 = vpop.f32.mrb[0].mxu0
      %1156 = vmatprep.mubr.f32.mxu0 %v845
      %1157 = vmatmul.mubr.f32.gmra.mrb[0].mxu0 %v687
      %v1158 = vpop.f32.mrb[0].mxu0
      %v1159 = vadd.f32 0.0, %v1158
      %v1160 = vpop.f32.mrb[0].mxu0
      %1161 = vmatprep.mubr.f32.mxu0 %v848
      %1162 = vmatmul.mubr.f32.gmra.mrb[0].mxu0 %v689
      %v1163 = vpop.f32.mrb[0].mxu0
      %v1164 = vadd.f32 0.0, %v1163
      %v1165 = vpop.f32.mrb[0].mxu0
      %1166 = vmatprep.mubr.f32.mxu0 %v851
      %1167 = vmatmul.mubr.f32.gmra.mrb[0].mxu0 %v691
      %v1168 = vpop.f32.mrb[0].mxu0
      %v1169 = vadd.f32 0.0, %v1168
      %v1170 = vpop.f32.mrb[0].mxu0
      %1171 = vmatprep.mubr.f32.mxu0 %v854
      %1172 = vmatmul.mubr.f32.gmra.mrb[0].mxu0 %v693
      %v1173 = vpop.f32.mrb[0].mxu0
      %v1174 = vadd.f32 0.0, %v1173
      %v1175 = vpop.f32.mrb[0].mxu0
      %1176 = vmatprep.mubr.f32.mxu0 %v857
      %1177 = vmatmul.mubr.f32.gmra.mrb[0].mxu0 %v695
      %v1178 = vpop.f32.mrb[0].mxu0
      %v1179 = vadd.f32 0.0, %v1178
      %v1180 = vpop.f32.mrb[0].mxu0
      %1181 = vmatprep.mubr.f32.mxu0 %v860
      %1182 = vmatmul.mubr.f32.gmra.mrb[0].mxu0 %v697
      %v1183 = vpop.f32.mrb[0].mxu0
      %v1184 = vadd.f32 0.0, %v1183
      %v1185 = vpop.f32.mrb[0].mxu0
      %1186 = vmatprep.mubr.f32.mxu0 %v863
      %1187 = vmatmul.mubr.f32.gmra.mrb[0].mxu0 %v699
      %v1188 = vpop.f32.mrb[0].mxu0
      %v1189 = vadd.f32 0.0, %v1188
      %v1190 = vpop.f32.mrb[0].mxu0
      %1191 = vmatprep.mubr.f32.mxu0 %v866
      %1192 = vmatmul.mubr.f32.gmra.mrb[0].mxu0 %v701
      %v1193 = vpop.f32.mrb[0].mxu0
      %v1194 = vadd.f32 0.0, %v1193
      %v1195 = vpop.f32.mrb[0].mxu0
      %1196 = vmatprep.mubr.f32.mxu0 %v869
      %1197 = vmatmul.mubr.f32.gmra.mrb[0].mxu0 %v703
      %v1198 = vpop.f32.mrb[0].mxu0
      %v1199 = vadd.f32 0.0, %v1198
      %v1200 = vpop.f32.mrb[0].mxu0
      %1201 = vmatprep.mubr.f32.mxu0 %v872
      %1202 = vmatmul.mubr.f32.gmra.mrb[0].mxu0 %v705
      %v1203 = vpop.f32.mrb[0].mxu0
      %v1204 = vadd.f32 0.0, %v1203
      %v1205 = vpop.f32.mrb[0].mxu0
      %1206 = vmatprep.mubr.f32.mxu0 %v875
      %1207 = vmatmul.mubr.f32.gmra.mrb[0].mxu0 %v707
      %v1208 = vpop.f32.mrb[0].mxu0
      %v1209 = vadd.f32 0.0, %v1208
      %v1210 = vpop.f32.mrb[0].mxu0
      %1211 = vmatprep.mubr.f32.mxu0 %v878
      %1212 = vmatmul.mubr.f32.gmra.mrb[0].mxu0 %v709
      %v1213 = vpop.f32.mrb[0].mxu0
      %v1214 = vadd.f32 0.0, %v1213
      %v1215 = vpop.f32.mrb[0].mxu0
      %1216 = vmatprep.mubr.f32.mxu0 %v881
      %1217 = vmatmul.mubr.f32.gmra.mrb[0].mxu0 %v711
      %v1218 = vpop.f32.mrb[0].mxu0
      %v1219 = vadd.f32 0.0, %v1218
      %v1220 = vpop.f32.mrb[0].mxu0
      %1221 = vmatprep.mubr.f32.mxu0 %v884
      %1222 = vmatmul.mubr.f32.gmra.mrb[0].mxu0 %v713
      %v1223 = vpop.f32.mrb[0].mxu0
      %v1224 = vadd.f32 0.0, %v1223
      %v1225 = vpop.f32.mrb[0].mxu0
      %1226 = vmatprep.mubr.f32.mxu0 %v887
      %1227 = vmatmul.mubr.f32.gmra.mrb[0].mxu0 %v715
      %v1228 = vpop.f32.mrb[0].mxu0
      %v1229 = vadd.f32 0.0, %v1228
      %v1230 = vpop.f32.mrb[0].mxu0
      %1231 = vmatprep.mubr.f32.mxu0 %v890
      %1232 = vmatmul.mubr.f32.gmra.mrb[0].mxu0 %v717
      %v1233 = vpop.f32.mrb[0].mxu0
      %v1234 = vadd.f32 0.0, %v1233
      %v1235 = vpop.f32.mrb[0].mxu0
      %1236 = vmatprep.mubr.f32.mxu0 %v893
      %1237 = vmatmul.mubr.f32.gmra.mrb[0].mxu0 %v719
      %v1238 = vpop.f32.mrb[0].mxu0
      %v1239 = vadd.f32 0.0, %v1238
      %v1240 = vpop.f32.mrb[0].mxu0
      %1241 = vmatprep.mubr.f32.mxu0 %v896
      %1242 = vmatmul.mubr.f32.gmra.mrb[0].mxu0 %v721
      %v1243 = vpop.f32.mrb[0].mxu0
      %v1244 = vadd.f32 0.0, %v1243
      %v1245 = vpop.f32.mrb[0].mxu0
      %1246 = vmatprep.mubr.f32.mxu0 %v899
      %1247 = vmatmul.mubr.f32.gmra.mrb[0].mxu0 %v723
      %v1248 = vpop.f32.mrb[0].mxu0
      %v1249 = vadd.f32 0.0, %v1248
      %v1250 = vpop.f32.mrb[0].mxu0
      %1251 = vmatprep.mubr.f32.mxu0 %v902
      %1252 = vmatmul.mubr.f32.gmra.mrb[0].mxu0 %v725
      %v1253 = vpop.f32.mrb[0].mxu0
      %v1254 = vadd.f32 0.0, %v1253
      %v1255 = vpop.f32.mrb[0].mxu0
      %1256 = vmatprep.mubr.f32.mxu0 %v905
      %1257 = vmatmul.mubr.f32.gmra.mrb[0].mxu0 %v727
      %v1258 = vpop.f32.mrb[0].mxu0
      %v1259 = vadd.f32 0.0, %v1258
      %v1260 = vpop.f32.mrb[0].mxu0
      %1261 = vmatprep.mubr.f32.mxu0 %v908
      %1262 = vmatmul.mubr.f32.gmra.mrb[0].mxu0 %v729
      %v1263 = vpop.f32.mrb[0].mxu0
      %v1264 = vadd.f32 0.0, %v1263
      %v1265 = vpop.f32.mrb[0].mxu0
      %1266 = vmatprep.mubr.f32.mxu0 %v911
      %1267 = vmatmul.mubr.f32.gmra.mrb[0].mxu0 %v731
      %v1268 = vpop.f32.mrb[0].mxu0
      %v1269 = vadd.f32 0.0, %v1268
      %v1270 = vpop.f32.mrb[0].mxu0
      %1271 = vmatprep.mubr.f32.mxu0 %v914
      %1272 = vmatmul.mubr.f32.gmra.mrb[0].mxu0 %v733
      %v1273 = vpop.f32.mrb[0].mxu0
      %v1274 = vadd.f32 0.0, %v1273
      %v1275 = vpop.f32.mrb[0].mxu0
      %1276 = vmatprep.mubr.f32.mxu0 %v917
      %1277 = vmatmul.mubr.f32.gmra.mrb[0].mxu0 %v735
      %v1278 = vpop.f32.mrb[0].mxu0
      %v1279 = vadd.f32 0.0, %v1278
      %v1280 = vpop.f32.mrb[0].mxu0
      %1281 = vmatprep.mubr.f32.mxu0 %v920
      %1282 = vmatmul.mubr.f32.gmra.mrb[0].mxu0 %v737
      %v1283 = vpop.f32.mrb[0].mxu0
      %v1284 = vadd.f32 0.0, %v1283
      %v1285 = vpop.f32.mrb[0].mxu0
      %1286 = vmatprep.mubr.f32.mxu0 %v923
      %1287 = vmatmul.mubr.f32.gmra.mrb[0].mxu0 %v739
      %v1288 = vpop.f32.mrb[0].mxu0
      %v1289 = vadd.f32 0.0, %v1288
      %v1290 = vpop.f32.mrb[0].mxu0
      %1291 = vmatprep.mubr.f32.mxu0 %v926
      %1292 = vmatmul.mubr.f32.gmra.mrb[0].mxu0 %v741
      %v1293 = vpop.f32.mrb[0].mxu0
      %v1294 = vadd.f32 0.0, %v1293
      %v1295 = vpop.f32.mrb[0].mxu0
      %1296 = vmatprep.mubr.f32.mxu0 %v929
      %1297 = vmatmul.mubr.f32.gmra.mrb[0].mxu0 %v743
      %v1298 = vpop.f32.mrb[0].mxu0
      %v1299 = vadd.f32 0.0, %v1298
      %v1300 = vpop.f32.mrb[0].mxu0
      %1301 = vmatprep.mubr.f32.mxu0 %v932
      %1302 = vmatmul.mubr.f32.gmra.mrb[0].mxu0 %v745
      %v1303 = vpop.f32.mrb[0].mxu0
      %v1304 = vadd.f32 0.0, %v1303
      %v1305 = vpop.f32.mrb[0].mxu0
      %1306 = vmatprep.mubr.f32.mxu0 %v935
      %1307 = vmatmul.mubr.f32.gmra.mrb[0].mxu0 %v747
      %v1308 = vpop.f32.mrb[0].mxu0
      %v1309 = vadd.f32 0.0, %v1308
      %v1310 = vpop.f32.mrb[0].mxu0
      %1311 = vmatprep.mubr.f32.mxu0 %v938
      %1312 = vmatmul.mubr.f32.gmra.mrb[0].mxu0 %v749
      %v1313 = vpop.f32.mrb[0].mxu0
      %v1314 = vadd.f32 0.0, %v1313
      %v1315 = vpop.f32.mrb[0].mxu0
      %1316 = vmatprep.mubr.f32.mxu0 %v941
      %1317 = vmatmul.mubr.f32.gmra.mrb[0].mxu0 %v751
      %v1318 = vpop.f32.mrb[0].mxu0
      %v1319 = vadd.f32 0.0, %v1318
      %v1320 = vpop.f32.mrb[0].mxu0
      %1321 = vmatprep.mubr.f32.mxu0 %v944
      %1322 = vmatmul.mubr.f32.gmra.mrb[0].mxu0 %v753
      %v1323 = vpop.f32.mrb[0].mxu0
      %v1324 = vadd.f32 0.0, %v1323
      %v1325 = vpop.f32.mrb[0].mxu0
      %1326 = vmatprep.mubr.f32.mxu0 %v947
      %1327 = vmatmul.mubr.f32.gmra.mrb[0].mxu0 %v755
      %v1328 = vpop.f32.mrb[0].mxu0
      %v1329 = vadd.f32 0.0, %v1328
      %v1330 = vpop.f32.mrb[0].mxu0
      %1331 = vmatprep.mubr.f32.mxu0 %v950
      %1332 = vmatmul.mubr.f32.gmra.mrb[0].mxu0 %v757
      %v1333 = vpop.f32.mrb[0].mxu0
      %v1334 = vadd.f32 0.0, %v1333
      %v1335 = vpop.f32.mrb[0].mxu0
      %1336 = vdwg.mxu0
      %v1337 = vld [vmem:[%s5] sm:$0xff]
      %v1338 = vld [vmem:[%s5 + $0x8] sm:$0xff]
      %v1339 = vld [vmem:[%s5 + $0x10] sm:$0xff]
      %v1340 = vld [vmem:[%s5 + $0x18] sm:$0xff]
      %v1341 = vld [vmem:[%s5 + $0x20] sm:$0xff]
      %v1342 = vld [vmem:[%s5 + $0x28] sm:$0xff]
      %v1343 = vld [vmem:[%s5 + $0x30] sm:$0xff]
      %v1344 = vld [vmem:[%s5 + $0x38] sm:$0xff]
      %v1345 = vld [vmem:[%s5 + $0x40] sm:$0xff]
      %v1346 = vld [vmem:[%s5 + $0x48] sm:$0xff]
      %v1347 = vld [vmem:[%s5 + $0x50] sm:$0xff]
      %v1348 = vld [vmem:[%s5 + $0x58] sm:$0xff]
      %v1349 = vld [vmem:[%s5 + $0x60] sm:$0xff]
      %v1350 = vld [vmem:[%s5 + $0x68] sm:$0xff]
      %v1351 = vld [vmem:[%s5 + $0x70] sm:$0xff]
      %v1352 = vld [vmem:[%s5 + $0x78] sm:$0xff]
      %s1353 = scalar_lea.vmem %s5, 128
      %v1354 = vld [vmem:[%s1353] sm:$0xff]
      %v1355 = vld [vmem:[%s1353 + $0x8] sm:$0xff]
      %v1356 = vld [vmem:[%s1353 + $0x10] sm:$0xff]
      %v1357 = vld [vmem:[%s1353 + $0x18] sm:$0xff]
      %v1358 = vld [vmem:[%s1353 + $0x20] sm:$0xff]
      %v1359 = vld [vmem:[%s1353 + $0x28] sm:$0xff]
      %v1360 = vld [vmem:[%s1353 + $0x30] sm:$0xff]
      %v1361 = vld [vmem:[%s1353 + $0x38] sm:$0xff]
      %v1362 = vld [vmem:[%s1353 + $0x40] sm:$0xff]
      %v1363 = vld [vmem:[%s1353 + $0x48] sm:$0xff]
      %v1364 = vld [vmem:[%s1353 + $0x50] sm:$0xff]
      %v1365 = vld [vmem:[%s1353 + $0x58] sm:$0xff]
      %v1366 = vld [vmem:[%s1353 + $0x60] sm:$0xff]
      %v1367 = vld [vmem:[%s1353 + $0x68] sm:$0xff]
      %v1368 = vld [vmem:[%s1353 + $0x70] sm:$0xff]
      %v1369 = vld [vmem:[%s1353 + $0x78] sm:$0xff]
      %1370 = vmatprep.subr.mxu0 0.0
      %1371 = vmatpush1.msra.mxu0 %v1354
      %1372 = vmatprep.subr.mxu0 0.0
      %1373 = vmatpush1.msra.mxu0 %v1355
      %1374 = vmatprep.subr.mxu0 0.0
      %1375 = vmatpush1.msra.mxu0 %v1356
      %1376 = vmatprep.subr.mxu0 0.0
      %1377 = vmatpush1.msra.mxu0 %v1357
      %1378 = vmatprep.subr.mxu0 0.0
      %1379 = vmatpush1.msra.mxu0 %v1358
      %1380 = vmatprep.subr.mxu0 0.0
      %1381 = vmatpush1.msra.mxu0 %v1359
      %1382 = vmatprep.subr.mxu0 0.0
      %1383 = vmatpush1.msra.mxu0 %v1360
      %1384 = vmatprep.subr.mxu0 0.0
      %1385 = vmatpush1.msra.mxu0 %v1361
      %1386 = vmatprep.subr.mxu0 0.0
      %1387 = vmatpush1.msra.mxu0 %v1362
      %1388 = vmatprep.subr.mxu0 0.0
      %1389 = vmatpush1.msra.mxu0 %v1363
      %1390 = vmatprep.subr.mxu0 0.0
      %1391 = vmatpush1.msra.mxu0 %v1364
      %1392 = vmatprep.subr.mxu0 0.0
      %1393 = vmatpush1.msra.mxu0 %v1365
      %1394 = vmatprep.subr.mxu0 0.0
      %1395 = vmatpush1.msra.mxu0 %v1366
      %1396 = vmatprep.subr.mxu0 0.0
      %1397 = vmatpush1.msra.mxu0 %v1367
      %1398 = vmatprep.subr.mxu0 0.0
      %1399 = vmatpush1.msra.mxu0 %v1368
      %1400 = vmatprep.subr.mxu0 0.0
      %1401 = vmatpush1.msra.mxu0 %v1369
      %1402 = vmatprep.subr.mxu0 0.0
      %1403 = vmatpush1.msra.mxu0 0.0
      %1404 = vmatprep.subr.mxu0 0.0
      %1405 = vmatpush1.msra.mxu0 0.0
      %1406 = vmatprep.subr.mxu0 0.0
      %1407 = vmatpush1.msra.mxu0 0.0
      %1408 = vmatprep.subr.mxu0 0.0
      %1409 = vmatpush1.msra.mxu0 0.0
      %1410 = vmatprep.subr.mxu0 0.0
      %1411 = vmatpush1.msra.mxu0 0.0
      %1412 = vmatprep.subr.mxu0 0.0
      %1413 = vmatpush1.msra.mxu0 0.0
      %1414 = vmatprep.subr.mxu0 0.0
      %1415 = vmatpush1.msra.mxu0 0.0
      %1416 = vmatprep.subr.mxu0 0.0
      %1417 = vmatpush1.msra.mxu0 0.0
      %1418 = vmatprep.subr.mxu0 0.0
      %1419 = vmatpush1.msra.mxu0 0.0
      %1420 = vmatprep.subr.mxu0 0.0
      %1421 = vmatpush1.msra.mxu0 0.0
      %1422 = vmatprep.subr.mxu0 0.0
      %1423 = vmatpush1.msra.mxu0 0.0
      %1424 = vmatprep.subr.mxu0 0.0
      %1425 = vmatpush1.msra.mxu0 0.0
      %1426 = vmatprep.subr.mxu0 0.0
      %1427 = vmatpush1.msra.mxu0 0.0
      %1428 = vmatprep.subr.mxu0 0.0
      %1429 = vmatpush1.msra.mxu0 0.0
      %1430 = vmatprep.subr.mxu0 0.0
      %1431 = vmatpush1.msra.mxu0 0.0
      %1432 = vmatprep.subr.mxu0 0.0
      %1433 = vmatpush1.msra.mxu0 0.0
      %1434 = vmatprep.mubr.f32.mxu0 0.0
      %1435 = vmatmul.mubr.f32.gmra.mrb[0].mxu0 %v1039
      %v1436 = vpop.f32.mrb[0].mxu0
      %v1437 = vadd.f32 0.0, %v1436
      %v1438 = vpop.f32.mrb[0].mxu0
      %1439 = vmatprep.mubr.f32.mxu0 0.0
      %1440 = vmatmul.mubr.f32.gmra.mrb[0].mxu0 %v1044
      %v1441 = vpop.f32.mrb[0].mxu0
      %v1442 = vadd.f32 0.0, %v1441
      %v1443 = vpop.f32.mrb[0].mxu0
      %1444 = vmatprep.mubr.f32.mxu0 0.0
      %1445 = vmatmul.mubr.f32.gmra.mrb[0].mxu0 %v1049
      %v1446 = vpop.f32.mrb[0].mxu0
      %v1447 = vadd.f32 0.0, %v1446
      %v1448 = vpop.f32.mrb[0].mxu0
      %1449 = vmatprep.mubr.f32.mxu0 0.0
      %1450 = vmatmul.mubr.f32.gmra.mrb[0].mxu0 %v1054
      %v1451 = vpop.f32.mrb[0].mxu0
      %v1452 = vadd.f32 0.0, %v1451
      %v1453 = vpop.f32.mrb[0].mxu0
      %1454 = vdwg.mxu0
      %1455 = vmatprep.subr.mxu0 0.0
      %1456 = vmatpush1.msra.mxu0 %v1337
      %1457 = vmatprep.subr.mxu0 0.0
      %1458 = vmatpush1.msra.mxu0 %v1338
      %1459 = vmatprep.subr.mxu0 0.0
      %1460 = vmatpush1.msra.mxu0 %v1339
      %1461 = vmatprep.subr.mxu0 0.0
      %1462 = vmatpush1.msra.mxu0 %v1340
      %1463 = vmatprep.subr.mxu0 0.0
      %1464 = vmatpush1.msra.mxu0 %v1341
      %1465 = vmatprep.subr.mxu0 0.0
      %1466 = vmatpush1.msra.mxu0 %v1342
      %1467 = vmatprep.subr.mxu0 0.0
      %1468 = vmatpush1.msra.mxu0 %v1343
      %1469 = vmatprep.subr.mxu0 0.0
      %1470 = vmatpush1.msra.mxu0 %v1344
      %1471 = vmatprep.subr.mxu0 0.0
      %1472 = vmatpush1.msra.mxu0 %v1345
      %1473 = vmatprep.subr.mxu0 0.0
      %1474 = vmatpush1.msra.mxu0 %v1346
      %1475 = vmatprep.subr.mxu0 0.0
      %1476 = vmatpush1.msra.mxu0 %v1347
      %1477 = vmatprep.subr.mxu0 0.0
      %1478 = vmatpush1.msra.mxu0 %v1348
      %1479 = vmatprep.subr.mxu0 0.0
      %1480 = vmatpush1.msra.mxu0 %v1349
      %1481 = vmatprep.subr.mxu0 0.0
      %1482 = vmatpush1.msra.mxu0 %v1350
      %1483 = vmatprep.subr.mxu0 0.0
      %1484 = vmatpush1.msra.mxu0 %v1351
      %1485 = vmatprep.subr.mxu0 0.0
      %1486 = vmatpush1.msra.mxu0 %v1352
      %1487 = vmatprep.subr.mxu0 0.0
      %1488 = vmatpush1.msra.mxu0 0.0
      %1489 = vmatprep.subr.mxu0 0.0
      %1490 = vmatpush1.msra.mxu0 0.0
      %1491 = vmatprep.subr.mxu0 0.0
      %1492 = vmatpush1.msra.mxu0 0.0
      %1493 = vmatprep.subr.mxu0 0.0
      %1494 = vmatpush1.msra.mxu0 0.0
      %1495 = vmatprep.subr.mxu0 0.0
      %1496 = vmatpush1.msra.mxu0 0.0
      %1497 = vmatprep.subr.mxu0 0.0
      %1498 = vmatpush1.msra.mxu0 0.0
      %1499 = vmatprep.subr.mxu0 0.0
      %1500 = vmatpush1.msra.mxu0 0.0
      %1501 = vmatprep.subr.mxu0 0.0
      %1502 = vmatpush1.msra.mxu0 0.0
      %1503 = vmatprep.subr.mxu0 0.0
      %1504 = vmatpush1.msra.mxu0 0.0
      %1505 = vmatprep.subr.mxu0 0.0
      %1506 = vmatpush1.msra.mxu0 0.0
      %1507 = vmatprep.subr.mxu0 0.0
      %1508 = vmatpush1.msra.mxu0 0.0
      %1509 = vmatprep.subr.mxu0 0.0
      %1510 = vmatpush1.msra.mxu0 0.0
      %1511 = vmatprep.subr.mxu0 0.0
      %1512 = vmatpush1.msra.mxu0 0.0
      %1513 = vmatprep.subr.mxu0 0.0
      %1514 = vmatpush1.msra.mxu0 0.0
      %1515 = vmatprep.subr.mxu0 0.0
      %1516 = vmatpush1.msra.mxu0 0.0
      %1517 = vmatprep.subr.mxu0 0.0
      %1518 = vmatpush1.msra.mxu0 0.0
      %1519 = vmatprep.mubr.f32.mxu0 0.0
      %1520 = vmatmul.mubr.f32.gmra.mrb[0].mxu0 %v1019
      %v1521 = vpop.f32.mrb[0].mxu0
      %v1522 = vadd.f32 %v1437, %v1521
      %v1523 = vpop.f32.mrb[0].mxu0
      %1524 = vmatprep.mubr.f32.mxu0 0.0
      %1525 = vmatmul.mubr.f32.gmra.mrb[0].mxu0 %v1024
      %v1526 = vpop.f32.mrb[0].mxu0
      %v1527 = vadd.f32 %v1442, %v1526
      %v1528 = vpop.f32.mrb[0].mxu0
      %1529 = vmatprep.mubr.f32.mxu0 0.0
      %1530 = vmatmul.mubr.f32.gmra.mrb[0].mxu0 %v1029
      %v1531 = vpop.f32.mrb[0].mxu0
      %v1532 = vadd.f32 %v1447, %v1531
      %v1533 = vpop.f32.mrb[0].mxu0
      %1534 = vmatprep.mubr.f32.mxu0 0.0
      %1535 = vmatmul.mubr.f32.gmra.mrb[0].mxu0 %v1034
      %v1536 = vpop.f32.mrb[0].mxu0
      %v1537 = vadd.f32 %v1452, %v1536
      %v1538 = vpop.f32.mrb[0].mxu0
      %1539 = vdwg.mxu0
      %s1540 = scalar_lea.vmem %s5, 256
      %v1541 = vld [vmem:[%s1540] sm:$0xff]
      %v1542 = vld [vmem:[%s1540 + $0x8] sm:$0xff]
      %v1543 = vld [vmem:[%s1540 + $0x10] sm:$0xff]
      %v1544 = vld [vmem:[%s1540 + $0x18] sm:$0xff]
      %v1545 = vld [vmem:[%s1540 + $0x20] sm:$0xff]
      %v1546 = vld [vmem:[%s1540 + $0x28] sm:$0xff]
      %v1547 = vld [vmem:[%s1540 + $0x30] sm:$0xff]
      %v1548 = vld [vmem:[%s1540 + $0x38] sm:$0xff]
      %v1549 = vld [vmem:[%s1540 + $0x40] sm:$0xff]
      %v1550 = vld [vmem:[%s1540 + $0x48] sm:$0xff]
      %v1551 = vld [vmem:[%s1540 + $0x50] sm:$0xff]
      %v1552 = vld [vmem:[%s1540 + $0x58] sm:$0xff]
      %v1553 = vld [vmem:[%s1540 + $0x60] sm:$0xff]
      %v1554 = vld [vmem:[%s1540 + $0x68] sm:$0xff]
      %v1555 = vld [vmem:[%s1540 + $0x70] sm:$0xff]
      %v1556 = vld [vmem:[%s1540 + $0x78] sm:$0xff]
      %1557 = vmatprep.subr.mxu0 0.0
      %1558 = vmatpush1.msra.mxu0 %v1541
      %1559 = vmatprep.subr.mxu0 0.0
      %1560 = vmatpush1.msra.mxu0 %v1542
      %1561 = vmatprep.subr.mxu0 0.0
      %1562 = vmatpush1.msra.mxu0 %v1543
      %1563 = vmatprep.subr.mxu0 0.0
      %1564 = vmatpush1.msra.mxu0 %v1544
      %1565 = vmatprep.subr.mxu0 0.0
      %1566 = vmatpush1.msra.mxu0 %v1545
      %1567 = vmatprep.subr.mxu0 0.0
      %1568 = vmatpush1.msra.mxu0 %v1546
      %1569 = vmatprep.subr.mxu0 0.0
      %1570 = vmatpush1.msra.mxu0 %v1547
      %1571 = vmatprep.subr.mxu0 0.0
      %1572 = vmatpush1.msra.mxu0 %v1548
      %1573 = vmatprep.subr.mxu0 0.0
      %1574 = vmatpush1.msra.mxu0 %v1549
      %1575 = vmatprep.subr.mxu0 0.0
      %1576 = vmatpush1.msra.mxu0 %v1550
      %1577 = vmatprep.subr.mxu0 0.0
      %1578 = vmatpush1.msra.mxu0 %v1551
      %1579 = vmatprep.subr.mxu0 0.0
      %1580 = vmatpush1.msra.mxu0 %v1552
      %1581 = vmatprep.subr.mxu0 0.0
      %1582 = vmatpush1.msra.mxu0 %v1553
      %1583 = vmatprep.subr.mxu0 0.0
      %1584 = vmatpush1.msra.mxu0 %v1554
      %1585 = vmatprep.subr.mxu0 0.0
      %1586 = vmatpush1.msra.mxu0 %v1555
      %1587 = vmatprep.subr.mxu0 0.0
      %1588 = vmatpush1.msra.mxu0 %v1556
      %1589 = vmatprep.subr.mxu0 0.0
      %1590 = vmatpush1.msra.mxu0 0.0
      %1591 = vmatprep.subr.mxu0 0.0
      %1592 = vmatpush1.msra.mxu0 0.0
      %1593 = vmatprep.subr.mxu0 0.0
      %1594 = vmatpush1.msra.mxu0 0.0
      %1595 = vmatprep.subr.mxu0 0.0
      %1596 = vmatpush1.msra.mxu0 0.0
      %1597 = vmatprep.subr.mxu0 0.0
      %1598 = vmatpush1.msra.mxu0 0.0
      %1599 = vmatprep.subr.mxu0 0.0
      %1600 = vmatpush1.msra.mxu0 0.0
      %1601 = vmatprep.subr.mxu0 0.0
      %1602 = vmatpush1.msra.mxu0 0.0
      %1603 = vmatprep.subr.mxu0 0.0
      %1604 = vmatpush1.msra.mxu0 0.0
      %1605 = vmatprep.subr.mxu0 0.0
      %1606 = vmatpush1.msra.mxu0 0.0
      %1607 = vmatprep.subr.mxu0 0.0
      %1608 = vmatpush1.msra.mxu0 0.0
      %1609 = vmatprep.subr.mxu0 0.0
      %1610 = vmatpush1.msra.mxu0 0.0
      %1611 = vmatprep.subr.mxu0 0.0
      %1612 = vmatpush1.msra.mxu0 0.0
      %1613 = vmatprep.subr.mxu0 0.0
      %1614 = vmatpush1.msra.mxu0 0.0
      %1615 = vmatprep.subr.mxu0 0.0
      %1616 = vmatpush1.msra.mxu0 0.0
      %1617 = vmatprep.subr.mxu0 0.0
      %1618 = vmatpush1.msra.mxu0 0.0
      %1619 = vmatprep.subr.mxu0 0.0
      %1620 = vmatpush1.msra.mxu0 0.0
      %1621 = vmatprep.mubr.f32.mxu0 0.0
      %1622 = vmatmul.mubr.f32.gmra.mrb[0].mxu0 %v1059
      %v1623 = vpop.f32.mrb[0].mxu0
      %v1624 = vadd.f32 0.0, %v1623
      %v1625 = vpop.f32.mrb[0].mxu0
      %1626 = vmatprep.mubr.f32.mxu0 0.0
      %1627 = vmatmul.mubr.f32.gmra.mrb[0].mxu0 %v1064
      %v1628 = vpop.f32.mrb[0].mxu0
      %v1629 = vadd.f32 0.0, %v1628
      %v1630 = vpop.f32.mrb[0].mxu0
      %1631 = vmatprep.mubr.f32.mxu0 0.0
      %1632 = vmatmul.mubr.f32.gmra.mrb[0].mxu0 %v1069
      %v1633 = vpop.f32.mrb[0].mxu0
      %v1634 = vadd.f32 0.0, %v1633
      %v1635 = vpop.f32.mrb[0].mxu0
      %1636 = vmatprep.mubr.f32.mxu0 0.0
      %1637 = vmatmul.mubr.f32.gmra.mrb[0].mxu0 %v1074
      %v1638 = vpop.f32.mrb[0].mxu0
      %v1639 = vadd.f32 0.0, %v1638
      %v1640 = vpop.f32.mrb[0].mxu0
      %1641 = vdwg.mxu0
      %v1642 = vadd.f32 %v1522, %v1624
      %v1643 = vadd.f32 %v1527, %v1629
      %v1644 = vadd.f32 %v1532, %v1634
      %v1645 = vadd.f32 %v1537, %v1639
      %s1646 = scalar_lea.vmem %s5, 384
      %v1647 = vld [vmem:[%s1646] sm:$0xff]
      %v1648 = vld [vmem:[%s1646 + $0x8] sm:$0xff]
      %v1649 = vld [vmem:[%s1646 + $0x10] sm:$0xff]
      %v1650 = vld [vmem:[%s1646 + $0x18] sm:$0xff]
      %v1651 = vld [vmem:[%s1646 + $0x20] sm:$0xff]
      %v1652 = vld [vmem:[%s1646 + $0x28] sm:$0xff]
      %v1653 = vld [vmem:[%s1646 + $0x30] sm:$0xff]
      %v1654 = vld [vmem:[%s1646 + $0x38] sm:$0xff]
      %v1655 = vld [vmem:[%s1646 + $0x40] sm:$0xff]
      %v1656 = vld [vmem:[%s1646 + $0x48] sm:$0xff]
      %v1657 = vld [vmem:[%s1646 + $0x50] sm:$0xff]
      %v1658 = vld [vmem:[%s1646 + $0x58] sm:$0xff]
      %v1659 = vld [vmem:[%s1646 + $0x60] sm:$0xff]
      %v1660 = vld [vmem:[%s1646 + $0x68] sm:$0xff]
      %v1661 = vld [vmem:[%s1646 + $0x70] sm:$0xff]
      %v1662 = vld [vmem:[%s1646 + $0x78] sm:$0xff]
      %1663 = vmatprep.subr.mxu0 0.0
      %1664 = vmatpush1.msra.mxu0 %v1647
      %1665 = vmatprep.subr.mxu0 0.0
      %1666 = vmatpush1.msra.mxu0 %v1648
      %1667 = vmatprep.subr.mxu0 0.0
      %1668 = vmatpush1.msra.mxu0 %v1649
      %1669 = vmatprep.subr.mxu0 0.0
      %1670 = vmatpush1.msra.mxu0 %v1650
      %1671 = vmatprep.subr.mxu0 0.0
      %1672 = vmatpush1.msra.mxu0 %v1651
      %1673 = vmatprep.subr.mxu0 0.0
      %1674 = vmatpush1.msra.mxu0 %v1652
      %1675 = vmatprep.subr.mxu0 0.0
      %1676 = vmatpush1.msra.mxu0 %v1653
      %1677 = vmatprep.subr.mxu0 0.0
      %1678 = vmatpush1.msra.mxu0 %v1654
      %1679 = vmatprep.subr.mxu0 0.0
      %1680 = vmatpush1.msra.mxu0 %v1655
      %1681 = vmatprep.subr.mxu0 0.0
      %1682 = vmatpush1.msra.mxu0 %v1656
      %1683 = vmatprep.subr.mxu0 0.0
      %1684 = vmatpush1.msra.mxu0 %v1657
      %1685 = vmatprep.subr.mxu0 0.0
      %1686 = vmatpush1.msra.mxu0 %v1658
      %1687 = vmatprep.subr.mxu0 0.0
      %1688 = vmatpush1.msra.mxu0 %v1659
      %1689 = vmatprep.subr.mxu0 0.0
      %1690 = vmatpush1.msra.mxu0 %v1660
      %1691 = vmatprep.subr.mxu0 0.0
      %1692 = vmatpush1.msra.mxu0 %v1661
      %1693 = vmatprep.subr.mxu0 0.0
      %1694 = vmatpush1.msra.mxu0 %v1662
      %1695 = vmatprep.subr.mxu0 0.0
      %1696 = vmatpush1.msra.mxu0 0.0
      %1697 = vmatprep.subr.mxu0 0.0
      %1698 = vmatpush1.msra.mxu0 0.0
      %1699 = vmatprep.subr.mxu0 0.0
      %1700 = vmatpush1.msra.mxu0 0.0
      %1701 = vmatprep.subr.mxu0 0.0
      %1702 = vmatpush1.msra.mxu0 0.0
      %1703 = vmatprep.subr.mxu0 0.0
      %1704 = vmatpush1.msra.mxu0 0.0
      %1705 = vmatprep.subr.mxu0 0.0
      %1706 = vmatpush1.msra.mxu0 0.0
      %1707 = vmatprep.subr.mxu0 0.0
      %1708 = vmatpush1.msra.mxu0 0.0
      %1709 = vmatprep.subr.mxu0 0.0
      %1710 = vmatpush1.msra.mxu0 0.0
      %1711 = vmatprep.subr.mxu0 0.0
      %1712 = vmatpush1.msra.mxu0 0.0
      %1713 = vmatprep.subr.mxu0 0.0
      %1714 = vmatpush1.msra.mxu0 0.0
      %1715 = vmatprep.subr.mxu0 0.0
      %1716 = vmatpush1.msra.mxu0 0.0
      %1717 = vmatprep.subr.mxu0 0.0
      %1718 = vmatpush1.msra.mxu0 0.0
      %1719 = vmatprep.subr.mxu0 0.0
      %1720 = vmatpush1.msra.mxu0 0.0
      %1721 = vmatprep.subr.mxu0 0.0
      %1722 = vmatpush1.msra.mxu0 0.0
      %1723 = vmatprep.subr.mxu0 0.0
      %1724 = vmatpush1.msra.mxu0 0.0
      %1725 = vmatprep.subr.mxu0 0.0
      %1726 = vmatpush1.msra.mxu0 0.0
      %1727 = vmatprep.mubr.f32.mxu0 0.0
      %1728 = vmatmul.mubr.f32.gmra.mrb[0].mxu0 %v1079
      %v1729 = vpop.f32.mrb[0].mxu0
      %v1730 = vadd.f32 0.0, %v1729
      %v1731 = vpop.f32.mrb[0].mxu0
      %1732 = vmatprep.mubr.f32.mxu0 0.0
      %1733 = vmatmul.mubr.f32.gmra.mrb[0].mxu0 %v1084
      %v1734 = vpop.f32.mrb[0].mxu0
      %v1735 = vadd.f32 0.0, %v1734
      %v1736 = vpop.f32.mrb[0].mxu0
      %1737 = vmatprep.mubr.f32.mxu0 0.0
      %1738 = vmatmul.mubr.f32.gmra.mrb[0].mxu0 %v1089
      %v1739 = vpop.f32.mrb[0].mxu0
      %v1740 = vadd.f32 0.0, %v1739
      %v1741 = vpop.f32.mrb[0].mxu0
      %1742 = vmatprep.mubr.f32.mxu0 0.0
      %1743 = vmatmul.mubr.f32.gmra.mrb[0].mxu0 %v1094
      %v1744 = vpop.f32.mrb[0].mxu0
      %v1745 = vadd.f32 0.0, %v1744
      %v1746 = vpop.f32.mrb[0].mxu0
      %1747 = vdwg.mxu0
      %v1748 = vadd.f32 %v1642, %v1730
      %v1749 = vadd.f32 %v1643, %v1735
      %v1750 = vadd.f32 %v1644, %v1740
      %v1751 = vadd.f32 %v1645, %v1745
      %s1752 = scalar_lea.vmem %s5, 512
      %v1753 = vld [vmem:[%s1752] sm:$0xff]
      %v1754 = vld [vmem:[%s1752 + $0x8] sm:$0xff]
      %v1755 = vld [vmem:[%s1752 + $0x10] sm:$0xff]
      %v1756 = vld [vmem:[%s1752 + $0x18] sm:$0xff]
      %v1757 = vld [vmem:[%s1752 + $0x20] sm:$0xff]
      %v1758 = vld [vmem:[%s1752 + $0x28] sm:$0xff]
      %v1759 = vld [vmem:[%s1752 + $0x30] sm:$0xff]
      %v1760 = vld [vmem:[%s1752 + $0x38] sm:$0xff]
      %v1761 = vld [vmem:[%s1752 + $0x40] sm:$0xff]
      %v1762 = vld [vmem:[%s1752 + $0x48] sm:$0xff]
      %v1763 = vld [vmem:[%s1752 + $0x50] sm:$0xff]
      %v1764 = vld [vmem:[%s1752 + $0x58] sm:$0xff]
      %v1765 = vld [vmem:[%s1752 + $0x60] sm:$0xff]
      %v1766 = vld [vmem:[%s1752 + $0x68] sm:$0xff]
      %v1767 = vld [vmem:[%s1752 + $0x70] sm:$0xff]
      %v1768 = vld [vmem:[%s1752 + $0x78] sm:$0xff]
      %1769 = vmatprep.subr.mxu0 0.0
      %1770 = vmatpush1.msra.mxu0 %v1753
      %1771 = vmatprep.subr.mxu0 0.0
      %1772 = vmatpush1.msra.mxu0 %v1754
      %1773 = vmatprep.subr.mxu0 0.0
      %1774 = vmatpush1.msra.mxu0 %v1755
      %1775 = vmatprep.subr.mxu0 0.0
      %1776 = vmatpush1.msra.mxu0 %v1756
      %1777 = vmatprep.subr.mxu0 0.0
      %1778 = vmatpush1.msra.mxu0 %v1757
      %1779 = vmatprep.subr.mxu0 0.0
      %1780 = vmatpush1.msra.mxu0 %v1758
      %1781 = vmatprep.subr.mxu0 0.0
      %1782 = vmatpush1.msra.mxu0 %v1759
      %1783 = vmatprep.subr.mxu0 0.0
      %1784 = vmatpush1.msra.mxu0 %v1760
      %1785 = vmatprep.subr.mxu0 0.0
      %1786 = vmatpush1.msra.mxu0 %v1761
      %1787 = vmatprep.subr.mxu0 0.0
      %1788 = vmatpush1.msra.mxu0 %v1762
      %1789 = vmatprep.subr.mxu0 0.0
      %1790 = vmatpush1.msra.mxu0 %v1763
      %1791 = vmatprep.subr.mxu0 0.0
      %1792 = vmatpush1.msra.mxu0 %v1764
      %1793 = vmatprep.subr.mxu0 0.0
      %1794 = vmatpush1.msra.mxu0 %v1765
      %1795 = vmatprep.subr.mxu0 0.0
      %1796 = vmatpush1.msra.mxu0 %v1766
      %1797 = vmatprep.subr.mxu0 0.0
      %1798 = vmatpush1.msra.mxu0 %v1767
      %1799 = vmatprep.subr.mxu0 0.0
      %1800 = vmatpush1.msra.mxu0 %v1768
      %1801 = vmatprep.subr.mxu0 0.0
      %1802 = vmatpush1.msra.mxu0 0.0
      %1803 = vmatprep.subr.mxu0 0.0
      %1804 = vmatpush1.msra.mxu0 0.0
      %1805 = vmatprep.subr.mxu0 0.0
      %1806 = vmatpush1.msra.mxu0 0.0
      %1807 = vmatprep.subr.mxu0 0.0
      %1808 = vmatpush1.msra.mxu0 0.0
      %1809 = vmatprep.subr.mxu0 0.0
      %1810 = vmatpush1.msra.mxu0 0.0
      %1811 = vmatprep.subr.mxu0 0.0
      %1812 = vmatpush1.msra.mxu0 0.0
      %1813 = vmatprep.subr.mxu0 0.0
      %1814 = vmatpush1.msra.mxu0 0.0
      %1815 = vmatprep.subr.mxu0 0.0
      %1816 = vmatpush1.msra.mxu0 0.0
      %1817 = vmatprep.subr.mxu0 0.0
      %1818 = vmatpush1.msra.mxu0 0.0
      %1819 = vmatprep.subr.mxu0 0.0
      %1820 = vmatpush1.msra.mxu0 0.0
      %1821 = vmatprep.subr.mxu0 0.0
      %1822 = vmatpush1.msra.mxu0 0.0
      %1823 = vmatprep.subr.mxu0 0.0
      %1824 = vmatpush1.msra.mxu0 0.0
      %1825 = vmatprep.subr.mxu0 0.0
      %1826 = vmatpush1.msra.mxu0 0.0
      %1827 = vmatprep.subr.mxu0 0.0
      %1828 = vmatpush1.msra.mxu0 0.0
      %1829 = vmatprep.subr.mxu0 0.0
      %1830 = vmatpush1.msra.mxu0 0.0
      %1831 = vmatprep.subr.mxu0 0.0
      %1832 = vmatpush1.msra.mxu0 0.0
      %1833 = vmatprep.mubr.f32.mxu0 0.0
      %1834 = vmatmul.mubr.f32.gmra.mrb[0].mxu0 %v1099
      %v1835 = vpop.f32.mrb[0].mxu0
      %v1836 = vadd.f32 0.0, %v1835
      %v1837 = vpop.f32.mrb[0].mxu0
      %1838 = vmatprep.mubr.f32.mxu0 0.0
      %1839 = vmatmul.mubr.f32.gmra.mrb[0].mxu0 %v1104
      %v1840 = vpop.f32.mrb[0].mxu0
      %v1841 = vadd.f32 0.0, %v1840
      %v1842 = vpop.f32.mrb[0].mxu0
      %1843 = vmatprep.mubr.f32.mxu0 0.0
      %1844 = vmatmul.mubr.f32.gmra.mrb[0].mxu0 %v1109
      %v1845 = vpop.f32.mrb[0].mxu0
      %v1846 = vadd.f32 0.0, %v1845
      %v1847 = vpop.f32.mrb[0].mxu0
      %1848 = vmatprep.mubr.f32.mxu0 0.0
      %1849 = vmatmul.mubr.f32.gmra.mrb[0].mxu0 %v1114
      %v1850 = vpop.f32.mrb[0].mxu0
      %v1851 = vadd.f32 0.0, %v1850
      %v1852 = vpop.f32.mrb[0].mxu0
      %1853 = vdwg.mxu0
      %v1854 = vadd.f32 %v1748, %v1836
      %v1855 = vadd.f32 %v1749, %v1841
      %v1856 = vadd.f32 %v1750, %v1846
      %v1857 = vadd.f32 %v1751, %v1851
      %s1858 = scalar_lea.vmem %s5, 640
      %v1859 = vld [vmem:[%s1858] sm:$0xff]
      %v1860 = vld [vmem:[%s1858 + $0x8] sm:$0xff]
      %v1861 = vld [vmem:[%s1858 + $0x10] sm:$0xff]
      %v1862 = vld [vmem:[%s1858 + $0x18] sm:$0xff]
      %v1863 = vld [vmem:[%s1858 + $0x20] sm:$0xff]
      %v1864 = vld [vmem:[%s1858 + $0x28] sm:$0xff]
      %v1865 = vld [vmem:[%s1858 + $0x30] sm:$0xff]
      %v1866 = vld [vmem:[%s1858 + $0x38] sm:$0xff]
      %v1867 = vld [vmem:[%s1858 + $0x40] sm:$0xff]
      %v1868 = vld [vmem:[%s1858 + $0x48] sm:$0xff]
      %v1869 = vld [vmem:[%s1858 + $0x50] sm:$0xff]
      %v1870 = vld [vmem:[%s1858 + $0x58] sm:$0xff]
      %v1871 = vld [vmem:[%s1858 + $0x60] sm:$0xff]
      %v1872 = vld [vmem:[%s1858 + $0x68] sm:$0xff]
      %v1873 = vld [vmem:[%s1858 + $0x70] sm:$0xff]
      %v1874 = vld [vmem:[%s1858 + $0x78] sm:$0xff]
      %1875 = vmatprep.subr.mxu0 0.0
      %1876 = vmatpush1.msra.mxu0 %v1859
      %1877 = vmatprep.subr.mxu0 0.0
      %1878 = vmatpush1.msra.mxu0 %v1860
      %1879 = vmatprep.subr.mxu0 0.0
      %1880 = vmatpush1.msra.mxu0 %v1861
      %1881 = vmatprep.subr.mxu0 0.0
      %1882 = vmatpush1.msra.mxu0 %v1862
      %1883 = vmatprep.subr.mxu0 0.0
      %1884 = vmatpush1.msra.mxu0 %v1863
      %1885 = vmatprep.subr.mxu0 0.0
      %1886 = vmatpush1.msra.mxu0 %v1864
      %1887 = vmatprep.subr.mxu0 0.0
      %1888 = vmatpush1.msra.mxu0 %v1865
      %1889 = vmatprep.subr.mxu0 0.0
      %1890 = vmatpush1.msra.mxu0 %v1866
      %1891 = vmatprep.subr.mxu0 0.0
      %1892 = vmatpush1.msra.mxu0 %v1867
      %1893 = vmatprep.subr.mxu0 0.0
      %1894 = vmatpush1.msra.mxu0 %v1868
      %1895 = vmatprep.subr.mxu0 0.0
      %1896 = vmatpush1.msra.mxu0 %v1869
      %1897 = vmatprep.subr.mxu0 0.0
      %1898 = vmatpush1.msra.mxu0 %v1870
      %1899 = vmatprep.subr.mxu0 0.0
      %1900 = vmatpush1.msra.mxu0 %v1871
      %1901 = vmatprep.subr.mxu0 0.0
      %1902 = vmatpush1.msra.mxu0 %v1872
      %1903 = vmatprep.subr.mxu0 0.0
      %1904 = vmatpush1.msra.mxu0 %v1873
      %1905 = vmatprep.subr.mxu0 0.0
      %1906 = vmatpush1.msra.mxu0 %v1874
      %1907 = vmatprep.subr.mxu0 0.0
      %1908 = vmatpush1.msra.mxu0 0.0
      %1909 = vmatprep.subr.mxu0 0.0
      %1910 = vmatpush1.msra.mxu0 0.0
      %1911 = vmatprep.subr.mxu0 0.0
      %1912 = vmatpush1.msra.mxu0 0.0
      %1913 = vmatprep.subr.mxu0 0.0
      %1914 = vmatpush1.msra.mxu0 0.0
      %1915 = vmatprep.subr.mxu0 0.0
      %1916 = vmatpush1.msra.mxu0 0.0
      %1917 = vmatprep.subr.mxu0 0.0
      %1918 = vmatpush1.msra.mxu0 0.0
      %1919 = vmatprep.subr.mxu0 0.0
      %1920 = vmatpush1.msra.mxu0 0.0
      %1921 = vmatprep.subr.mxu0 0.0
      %1922 = vmatpush1.msra.mxu0 0.0
      %1923 = vmatprep.subr.mxu0 0.0
      %1924 = vmatpush1.msra.mxu0 0.0
      %1925 = vmatprep.subr.mxu0 0.0
      %1926 = vmatpush1.msra.mxu0 0.0
      %1927 = vmatprep.subr.mxu0 0.0
      %1928 = vmatpush1.msra.mxu0 0.0
      %1929 = vmatprep.subr.mxu0 0.0
      %1930 = vmatpush1.msra.mxu0 0.0
      %1931 = vmatprep.subr.mxu0 0.0
      %1932 = vmatpush1.msra.mxu0 0.0
      %1933 = vmatprep.subr.mxu0 0.0
      %1934 = vmatpush1.msra.mxu0 0.0
      %1935 = vmatprep.subr.mxu0 0.0
      %1936 = vmatpush1.msra.mxu0 0.0
      %1937 = vmatprep.subr.mxu0 0.0
      %1938 = vmatpush1.msra.mxu0 0.0
      %1939 = vmatprep.mubr.f32.mxu0 0.0
      %1940 = vmatmul.mubr.f32.gmra.mrb[0].mxu0 %v1119
      %v1941 = vpop.f32.mrb[0].mxu0
      %v1942 = vadd.f32 0.0, %v1941
      %v1943 = vpop.f32.mrb[0].mxu0
      %1944 = vmatprep.mubr.f32.mxu0 0.0
      %1945 = vmatmul.mubr.f32.gmra.mrb[0].mxu0 %v1124
      %v1946 = vpop.f32.mrb[0].mxu0
      %v1947 = vadd.f32 0.0, %v1946
      %v1948 = vpop.f32.mrb[0].mxu0
      %1949 = vmatprep.mubr.f32.mxu0 0.0
      %1950 = vmatmul.mubr.f32.gmra.mrb[0].mxu0 %v1129
      %v1951 = vpop.f32.mrb[0].mxu0
      %v1952 = vadd.f32 0.0, %v1951
      %v1953 = vpop.f32.mrb[0].mxu0
      %1954 = vmatprep.mubr.f32.mxu0 0.0
      %1955 = vmatmul.mubr.f32.gmra.mrb[0].mxu0 %v1134
      %v1956 = vpop.f32.mrb[0].mxu0
      %v1957 = vadd.f32 0.0, %v1956
      %v1958 = vpop.f32.mrb[0].mxu0
      %1959 = vdwg.mxu0
      %v1960 = vadd.f32 %v1854, %v1942
      %v1961 = vadd.f32 %v1855, %v1947
      %v1962 = vadd.f32 %v1856, %v1952
      %v1963 = vadd.f32 %v1857, %v1957
      %s1964 = scalar_lea.vmem %s5, 768
      %v1965 = vld [vmem:[%s1964] sm:$0xff]
      %v1966 = vld [vmem:[%s1964 + $0x8] sm:$0xff]
      %v1967 = vld [vmem:[%s1964 + $0x10] sm:$0xff]
      %v1968 = vld [vmem:[%s1964 + $0x18] sm:$0xff]
      %v1969 = vld [vmem:[%s1964 + $0x20] sm:$0xff]
      %v1970 = vld [vmem:[%s1964 + $0x28] sm:$0xff]
      %v1971 = vld [vmem:[%s1964 + $0x30] sm:$0xff]
      %v1972 = vld [vmem:[%s1964 + $0x38] sm:$0xff]
      %v1973 = vld [vmem:[%s1964 + $0x40] sm:$0xff]
      %v1974 = vld [vmem:[%s1964 + $0x48] sm:$0xff]
      %v1975 = vld [vmem:[%s1964 + $0x50] sm:$0xff]
      %v1976 = vld [vmem:[%s1964 + $0x58] sm:$0xff]
      %v1977 = vld [vmem:[%s1964 + $0x60] sm:$0xff]
      %v1978 = vld [vmem:[%s1964 + $0x68] sm:$0xff]
      %v1979 = vld [vmem:[%s1964 + $0x70] sm:$0xff]
      %v1980 = vld [vmem:[%s1964 + $0x78] sm:$0xff]
      %1981 = vmatprep.subr.mxu0 0.0
      %1982 = vmatpush1.msra.mxu0 %v1965
      %1983 = vmatprep.subr.mxu0 0.0
      %1984 = vmatpush1.msra.mxu0 %v1966
      %1985 = vmatprep.subr.mxu0 0.0
      %1986 = vmatpush1.msra.mxu0 %v1967
      %1987 = vmatprep.subr.mxu0 0.0
      %1988 = vmatpush1.msra.mxu0 %v1968
      %1989 = vmatprep.subr.mxu0 0.0
      %1990 = vmatpush1.msra.mxu0 %v1969
      %1991 = vmatprep.subr.mxu0 0.0
      %1992 = vmatpush1.msra.mxu0 %v1970
      %1993 = vmatprep.subr.mxu0 0.0
      %1994 = vmatpush1.msra.mxu0 %v1971
      %1995 = vmatprep.subr.mxu0 0.0
      %1996 = vmatpush1.msra.mxu0 %v1972
      %1997 = vmatprep.subr.mxu0 0.0
      %1998 = vmatpush1.msra.mxu0 %v1973
      %1999 = vmatprep.subr.mxu0 0.0
      %2000 = vmatpush1.msra.mxu0 %v1974
      %2001 = vmatprep.subr.mxu0 0.0
      %2002 = vmatpush1.msra.mxu0 %v1975
      %2003 = vmatprep.subr.mxu0 0.0
      %2004 = vmatpush1.msra.mxu0 %v1976
      %2005 = vmatprep.subr.mxu0 0.0
      %2006 = vmatpush1.msra.mxu0 %v1977
      %2007 = vmatprep.subr.mxu0 0.0
      %2008 = vmatpush1.msra.mxu0 %v1978
      %2009 = vmatprep.subr.mxu0 0.0
      %2010 = vmatpush1.msra.mxu0 %v1979
      %2011 = vmatprep.subr.mxu0 0.0
      %2012 = vmatpush1.msra.mxu0 %v1980
      %2013 = vmatprep.subr.mxu0 0.0
      %2014 = vmatpush1.msra.mxu0 0.0
      %2015 = vmatprep.subr.mxu0 0.0
      %2016 = vmatpush1.msra.mxu0 0.0
      %2017 = vmatprep.subr.mxu0 0.0
      %2018 = vmatpush1.msra.mxu0 0.0
      %2019 = vmatprep.subr.mxu0 0.0
      %2020 = vmatpush1.msra.mxu0 0.0
      %2021 = vmatprep.subr.mxu0 0.0
      %2022 = vmatpush1.msra.mxu0 0.0
      %2023 = vmatprep.subr.mxu0 0.0
      %2024 = vmatpush1.msra.mxu0 0.0
      %2025 = vmatprep.subr.mxu0 0.0
      %2026 = vmatpush1.msra.mxu0 0.0
      %2027 = vmatprep.subr.mxu0 0.0
      %2028 = vmatpush1.msra.mxu0 0.0
      %2029 = vmatprep.subr.mxu0 0.0
      %2030 = vmatpush1.msra.mxu0 0.0
      %2031 = vmatprep.subr.mxu0 0.0
      %2032 = vmatpush1.msra.mxu0 0.0
      %2033 = vmatprep.subr.mxu0 0.0
      %2034 = vmatpush1.msra.mxu0 0.0
      %2035 = vmatprep.subr.mxu0 0.0
      %2036 = vmatpush1.msra.mxu0 0.0
      %2037 = vmatprep.subr.mxu0 0.0
      %2038 = vmatpush1.msra.mxu0 0.0
      %2039 = vmatprep.subr.mxu0 0.0
      %2040 = vmatpush1.msra.mxu0 0.0
      %2041 = vmatprep.subr.mxu0 0.0
      %2042 = vmatpush1.msra.mxu0 0.0
      %2043 = vmatprep.subr.mxu0 0.0
      %2044 = vmatpush1.msra.mxu0 0.0
      %2045 = vmatprep.mubr.f32.mxu0 0.0
      %2046 = vmatmul.mubr.f32.gmra.mrb[0].mxu0 %v1139
      %v2047 = vpop.f32.mrb[0].mxu0
      %v2048 = vadd.f32 0.0, %v2047
      %v2049 = vpop.f32.mrb[0].mxu0
      %2050 = vmatprep.mubr.f32.mxu0 0.0
      %2051 = vmatmul.mubr.f32.gmra.mrb[0].mxu0 %v1144
      %v2052 = vpop.f32.mrb[0].mxu0
      %v2053 = vadd.f32 0.0, %v2052
      %v2054 = vpop.f32.mrb[0].mxu0
      %2055 = vmatprep.mubr.f32.mxu0 0.0
      %2056 = vmatmul.mubr.f32.gmra.mrb[0].mxu0 %v1149
      %v2057 = vpop.f32.mrb[0].mxu0
      %v2058 = vadd.f32 0.0, %v2057
      %v2059 = vpop.f32.mrb[0].mxu0
      %2060 = vmatprep.mubr.f32.mxu0 0.0
      %2061 = vmatmul.mubr.f32.gmra.mrb[0].mxu0 %v1154
      %v2062 = vpop.f32.mrb[0].mxu0
      %v2063 = vadd.f32 0.0, %v2062
      %v2064 = vpop.f32.mrb[0].mxu0
      %2065 = vdwg.mxu0
      %v2066 = vadd.f32 %v1960, %v2048
      %v2067 = vadd.f32 %v1961, %v2053
      %v2068 = vadd.f32 %v1962, %v2058
      %v2069 = vadd.f32 %v1963, %v2063
      %s2070 = scalar_lea.vmem %s5, 896
      %v2071 = vld [vmem:[%s2070] sm:$0xff]
      %v2072 = vld [vmem:[%s2070 + $0x8] sm:$0xff]
      %v2073 = vld [vmem:[%s2070 + $0x10] sm:$0xff]
      %v2074 = vld [vmem:[%s2070 + $0x18] sm:$0xff]
      %v2075 = vld [vmem:[%s2070 + $0x20] sm:$0xff]
      %v2076 = vld [vmem:[%s2070 + $0x28] sm:$0xff]
      %v2077 = vld [vmem:[%s2070 + $0x30] sm:$0xff]
      %v2078 = vld [vmem:[%s2070 + $0x38] sm:$0xff]
      %v2079 = vld [vmem:[%s2070 + $0x40] sm:$0xff]
      %v2080 = vld [vmem:[%s2070 + $0x48] sm:$0xff]
      %v2081 = vld [vmem:[%s2070 + $0x50] sm:$0xff]
      %v2082 = vld [vmem:[%s2070 + $0x58] sm:$0xff]
      %v2083 = vld [vmem:[%s2070 + $0x60] sm:$0xff]
      %v2084 = vld [vmem:[%s2070 + $0x68] sm:$0xff]
      %v2085 = vld [vmem:[%s2070 + $0x70] sm:$0xff]
      %v2086 = vld [vmem:[%s2070 + $0x78] sm:$0xff]
      %2087 = vmatprep.subr.mxu0 0.0
      %2088 = vmatpush1.msra.mxu0 %v2071
      %2089 = vmatprep.subr.mxu0 0.0
      %2090 = vmatpush1.msra.mxu0 %v2072
      %2091 = vmatprep.subr.mxu0 0.0
      %2092 = vmatpush1.msra.mxu0 %v2073
      %2093 = vmatprep.subr.mxu0 0.0
      %2094 = vmatpush1.msra.mxu0 %v2074
      %2095 = vmatprep.subr.mxu0 0.0
      %2096 = vmatpush1.msra.mxu0 %v2075
      %2097 = vmatprep.subr.mxu0 0.0
      %2098 = vmatpush1.msra.mxu0 %v2076
      %2099 = vmatprep.subr.mxu0 0.0
      %2100 = vmatpush1.msra.mxu0 %v2077
      %2101 = vmatprep.subr.mxu0 0.0
      %2102 = vmatpush1.msra.mxu0 %v2078
      %2103 = vmatprep.subr.mxu0 0.0
      %2104 = vmatpush1.msra.mxu0 %v2079
      %2105 = vmatprep.subr.mxu0 0.0
      %2106 = vmatpush1.msra.mxu0 %v2080
      %2107 = vmatprep.subr.mxu0 0.0
      %2108 = vmatpush1.msra.mxu0 %v2081
      %2109 = vmatprep.subr.mxu0 0.0
      %2110 = vmatpush1.msra.mxu0 %v2082
      %2111 = vmatprep.subr.mxu0 0.0
      %2112 = vmatpush1.msra.mxu0 %v2083
      %2113 = vmatprep.subr.mxu0 0.0
      %2114 = vmatpush1.msra.mxu0 %v2084
      %2115 = vmatprep.subr.mxu0 0.0
      %2116 = vmatpush1.msra.mxu0 %v2085
      %2117 = vmatprep.subr.mxu0 0.0
      %2118 = vmatpush1.msra.mxu0 %v2086
      %2119 = vmatprep.subr.mxu0 0.0
      %2120 = vmatpush1.msra.mxu0 0.0
      %2121 = vmatprep.subr.mxu0 0.0
      %2122 = vmatpush1.msra.mxu0 0.0
      %2123 = vmatprep.subr.mxu0 0.0
      %2124 = vmatpush1.msra.mxu0 0.0
      %2125 = vmatprep.subr.mxu0 0.0
      %2126 = vmatpush1.msra.mxu0 0.0
      %2127 = vmatprep.subr.mxu0 0.0
      %2128 = vmatpush1.msra.mxu0 0.0
      %2129 = vmatprep.subr.mxu0 0.0
      %2130 = vmatpush1.msra.mxu0 0.0
      %2131 = vmatprep.subr.mxu0 0.0
      %2132 = vmatpush1.msra.mxu0 0.0
      %2133 = vmatprep.subr.mxu0 0.0
      %2134 = vmatpush1.msra.mxu0 0.0
      %2135 = vmatprep.subr.mxu0 0.0
      %2136 = vmatpush1.msra.mxu0 0.0
      %2137 = vmatprep.subr.mxu0 0.0
      %2138 = vmatpush1.msra.mxu0 0.0
      %2139 = vmatprep.subr.mxu0 0.0
      %2140 = vmatpush1.msra.mxu0 0.0
      %2141 = vmatprep.subr.mxu0 0.0
      %2142 = vmatpush1.msra.mxu0 0.0
      %2143 = vmatprep.subr.mxu0 0.0
      %2144 = vmatpush1.msra.mxu0 0.0
      %2145 = vmatprep.subr.mxu0 0.0
      %2146 = vmatpush1.msra.mxu0 0.0
      %2147 = vmatprep.subr.mxu0 0.0
      %2148 = vmatpush1.msra.mxu0 0.0
      %2149 = vmatprep.subr.mxu0 0.0
      %2150 = vmatpush1.msra.mxu0 0.0
      %2151 = vmatprep.mubr.f32.mxu0 0.0
      %2152 = vmatmul.mubr.f32.gmra.mrb[0].mxu0 %v1159
      %v2153 = vpop.f32.mrb[0].mxu0
      %v2154 = vadd.f32 0.0, %v2153
      %v2155 = vpop.f32.mrb[0].mxu0
      %2156 = vmatprep.mubr.f32.mxu0 0.0
      %2157 = vmatmul.mubr.f32.gmra.mrb[0].mxu0 %v1164
      %v2158 = vpop.f32.mrb[0].mxu0
      %v2159 = vadd.f32 0.0, %v2158
      %v2160 = vpop.f32.mrb[0].mxu0
      %2161 = vmatprep.mubr.f32.mxu0 0.0
      %2162 = vmatmul.mubr.f32.gmra.mrb[0].mxu0 %v1169
      %v2163 = vpop.f32.mrb[0].mxu0
      %v2164 = vadd.f32 0.0, %v2163
      %v2165 = vpop.f32.mrb[0].mxu0
      %2166 = vmatprep.mubr.f32.mxu0 0.0
      %2167 = vmatmul.mubr.f32.gmra.mrb[0].mxu0 %v1174
      %v2168 = vpop.f32.mrb[0].mxu0
      %v2169 = vadd.f32 0.0, %v2168
      %v2170 = vpop.f32.mrb[0].mxu0
      %2171 = vdwg.mxu0
      %v2172 = vadd.f32 %v2066, %v2154
      %v2173 = vadd.f32 %v2067, %v2159
      %v2174 = vadd.f32 %v2068, %v2164
      %v2175 = vadd.f32 %v2069, %v2169
      %s2176 = scalar_lea.vmem %s5, 1024
      %v2177 = vld [vmem:[%s2176] sm:$0xff]
      %v2178 = vld [vmem:[%s2176 + $0x8] sm:$0xff]
      %v2179 = vld [vmem:[%s2176 + $0x10] sm:$0xff]
      %v2180 = vld [vmem:[%s2176 + $0x18] sm:$0xff]
      %v2181 = vld [vmem:[%s2176 + $0x20] sm:$0xff]
      %v2182 = vld [vmem:[%s2176 + $0x28] sm:$0xff]
      %v2183 = vld [vmem:[%s2176 + $0x30] sm:$0xff]
      %v2184 = vld [vmem:[%s2176 + $0x38] sm:$0xff]
      %v2185 = vld [vmem:[%s2176 + $0x40] sm:$0xff]
      %v2186 = vld [vmem:[%s2176 + $0x48] sm:$0xff]
      %v2187 = vld [vmem:[%s2176 + $0x50] sm:$0xff]
      %v2188 = vld [vmem:[%s2176 + $0x58] sm:$0xff]
      %v2189 = vld [vmem:[%s2176 + $0x60] sm:$0xff]
      %v2190 = vld [vmem:[%s2176 + $0x68] sm:$0xff]
      %v2191 = vld [vmem:[%s2176 + $0x70] sm:$0xff]
      %v2192 = vld [vmem:[%s2176 + $0x78] sm:$0xff]
      %2193 = vmatprep.subr.mxu0 0.0
      %2194 = vmatpush1.msra.mxu0 %v2177
      %2195 = vmatprep.subr.mxu0 0.0
      %2196 = vmatpush1.msra.mxu0 %v2178
      %2197 = vmatprep.subr.mxu0 0.0
      %2198 = vmatpush1.msra.mxu0 %v2179
      %2199 = vmatprep.subr.mxu0 0.0
      %2200 = vmatpush1.msra.mxu0 %v2180
      %2201 = vmatprep.subr.mxu0 0.0
      %2202 = vmatpush1.msra.mxu0 %v2181
      %2203 = vmatprep.subr.mxu0 0.0
      %2204 = vmatpush1.msra.mxu0 %v2182
      %2205 = vmatprep.subr.mxu0 0.0
      %2206 = vmatpush1.msra.mxu0 %v2183
      %2207 = vmatprep.subr.mxu0 0.0
      %2208 = vmatpush1.msra.mxu0 %v2184
      %2209 = vmatprep.subr.mxu0 0.0
      %2210 = vmatpush1.msra.mxu0 %v2185
      %2211 = vmatprep.subr.mxu0 0.0
      %2212 = vmatpush1.msra.mxu0 %v2186
      %2213 = vmatprep.subr.mxu0 0.0
      %2214 = vmatpush1.msra.mxu0 %v2187
      %2215 = vmatprep.subr.mxu0 0.0
      %2216 = vmatpush1.msra.mxu0 %v2188
      %2217 = vmatprep.subr.mxu0 0.0
      %2218 = vmatpush1.msra.mxu0 %v2189
      %2219 = vmatprep.subr.mxu0 0.0
      %2220 = vmatpush1.msra.mxu0 %v2190
      %2221 = vmatprep.subr.mxu0 0.0
      %2222 = vmatpush1.msra.mxu0 %v2191
      %2223 = vmatprep.subr.mxu0 0.0
      %2224 = vmatpush1.msra.mxu0 %v2192
      %2225 = vmatprep.subr.mxu0 0.0
      %2226 = vmatpush1.msra.mxu0 0.0
      %2227 = vmatprep.subr.mxu0 0.0
      %2228 = vmatpush1.msra.mxu0 0.0
      %2229 = vmatprep.subr.mxu0 0.0
      %2230 = vmatpush1.msra.mxu0 0.0
      %2231 = vmatprep.subr.mxu0 0.0
      %2232 = vmatpush1.msra.mxu0 0.0
      %2233 = vmatprep.subr.mxu0 0.0
      %2234 = vmatpush1.msra.mxu0 0.0
      %2235 = vmatprep.subr.mxu0 0.0
      %2236 = vmatpush1.msra.mxu0 0.0
      %2237 = vmatprep.subr.mxu0 0.0
      %2238 = vmatpush1.msra.mxu0 0.0
      %2239 = vmatprep.subr.mxu0 0.0
      %2240 = vmatpush1.msra.mxu0 0.0
      %2241 = vmatprep.subr.mxu0 0.0
      %2242 = vmatpush1.msra.mxu0 0.0
      %2243 = vmatprep.subr.mxu0 0.0
      %2244 = vmatpush1.msra.mxu0 0.0
      %2245 = vmatprep.subr.mxu0 0.0
      %2246 = vmatpush1.msra.mxu0 0.0
      %2247 = vmatprep.subr.mxu0 0.0
      %2248 = vmatpush1.msra.mxu0 0.0
      %2249 = vmatprep.subr.mxu0 0.0
      %2250 = vmatpush1.msra.mxu0 0.0
      %2251 = vmatprep.subr.mxu0 0.0
      %2252 = vmatpush1.msra.mxu0 0.0
      %2253 = vmatprep.subr.mxu0 0.0
      %2254 = vmatpush1.msra.mxu0 0.0
      %2255 = vmatprep.subr.mxu0 0.0
      %2256 = vmatpush1.msra.mxu0 0.0
      %2257 = vmatprep.mubr.f32.mxu0 0.0
      %2258 = vmatmul.mubr.f32.gmra.mrb[0].mxu0 %v1179
      %v2259 = vpop.f32.mrb[0].mxu0
      %v2260 = vadd.f32 0.0, %v2259
      %v2261 = vpop.f32.mrb[0].mxu0
      %2262 = vmatprep.mubr.f32.mxu0 0.0
      %2263 = vmatmul.mubr.f32.gmra.mrb[0].mxu0 %v1184
      %v2264 = vpop.f32.mrb[0].mxu0
      %v2265 = vadd.f32 0.0, %v2264
      %v2266 = vpop.f32.mrb[0].mxu0
      %2267 = vmatprep.mubr.f32.mxu0 0.0
      %2268 = vmatmul.mubr.f32.gmra.mrb[0].mxu0 %v1189
      %v2269 = vpop.f32.mrb[0].mxu0
      %v2270 = vadd.f32 0.0, %v2269
      %v2271 = vpop.f32.mrb[0].mxu0
      %2272 = vmatprep.mubr.f32.mxu0 0.0
      %2273 = vmatmul.mubr.f32.gmra.mrb[0].mxu0 %v1194
      %v2274 = vpop.f32.mrb[0].mxu0
      %v2275 = vadd.f32 0.0, %v2274
      %v2276 = vpop.f32.mrb[0].mxu0
      %2277 = vdwg.mxu0
      %v2278 = vadd.f32 %v2172, %v2260
      %v2279 = vadd.f32 %v2173, %v2265
      %v2280 = vadd.f32 %v2174, %v2270
      %v2281 = vadd.f32 %v2175, %v2275
      %s2282 = scalar_lea.vmem %s5, 1152
      %v2283 = vld [vmem:[%s2282] sm:$0xff]
      %v2284 = vld [vmem:[%s2282 + $0x8] sm:$0xff]
      %v2285 = vld [vmem:[%s2282 + $0x10] sm:$0xff]
      %v2286 = vld [vmem:[%s2282 + $0x18] sm:$0xff]
      %v2287 = vld [vmem:[%s2282 + $0x20] sm:$0xff]
      %v2288 = vld [vmem:[%s2282 + $0x28] sm:$0xff]
      %v2289 = vld [vmem:[%s2282 + $0x30] sm:$0xff]
      %v2290 = vld [vmem:[%s2282 + $0x38] sm:$0xff]
      %v2291 = vld [vmem:[%s2282 + $0x40] sm:$0xff]
      %v2292 = vld [vmem:[%s2282 + $0x48] sm:$0xff]
      %v2293 = vld [vmem:[%s2282 + $0x50] sm:$0xff]
      %v2294 = vld [vmem:[%s2282 + $0x58] sm:$0xff]
      %v2295 = vld [vmem:[%s2282 + $0x60] sm:$0xff]
      %v2296 = vld [vmem:[%s2282 + $0x68] sm:$0xff]
      %v2297 = vld [vmem:[%s2282 + $0x70] sm:$0xff]
      %v2298 = vld [vmem:[%s2282 + $0x78] sm:$0xff]
      %2299 = vmatprep.subr.mxu0 0.0
      %2300 = vmatpush1.msra.mxu0 %v2283
      %2301 = vmatprep.subr.mxu0 0.0
      %2302 = vmatpush1.msra.mxu0 %v2284
      %2303 = vmatprep.subr.mxu0 0.0
      %2304 = vmatpush1.msra.mxu0 %v2285
      %2305 = vmatprep.subr.mxu0 0.0
      %2306 = vmatpush1.msra.mxu0 %v2286
      %2307 = vmatprep.subr.mxu0 0.0
      %2308 = vmatpush1.msra.mxu0 %v2287
      %2309 = vmatprep.subr.mxu0 0.0
      %2310 = vmatpush1.msra.mxu0 %v2288
      %2311 = vmatprep.subr.mxu0 0.0
      %2312 = vmatpush1.msra.mxu0 %v2289
      %2313 = vmatprep.subr.mxu0 0.0
      %2314 = vmatpush1.msra.mxu0 %v2290
      %2315 = vmatprep.subr.mxu0 0.0
      %2316 = vmatpush1.msra.mxu0 %v2291
      %2317 = vmatprep.subr.mxu0 0.0
      %2318 = vmatpush1.msra.mxu0 %v2292
      %2319 = vmatprep.subr.mxu0 0.0
      %2320 = vmatpush1.msra.mxu0 %v2293
      %2321 = vmatprep.subr.mxu0 0.0
      %2322 = vmatpush1.msra.mxu0 %v2294
      %2323 = vmatprep.subr.mxu0 0.0
      %2324 = vmatpush1.msra.mxu0 %v2295
      %2325 = vmatprep.subr.mxu0 0.0
      %2326 = vmatpush1.msra.mxu0 %v2296
      %2327 = vmatprep.subr.mxu0 0.0
      %2328 = vmatpush1.msra.mxu0 %v2297
      %2329 = vmatprep.subr.mxu0 0.0
      %2330 = vmatpush1.msra.mxu0 %v2298
      %2331 = vmatprep.subr.mxu0 0.0
      %2332 = vmatpush1.msra.mxu0 0.0
      %2333 = vmatprep.subr.mxu0 0.0
      %2334 = vmatpush1.msra.mxu0 0.0
      %2335 = vmatprep.subr.mxu0 0.0
      %2336 = vmatpush1.msra.mxu0 0.0
      %2337 = vmatprep.subr.mxu0 0.0
      %2338 = vmatpush1.msra.mxu0 0.0
      %2339 = vmatprep.subr.mxu0 0.0
      %2340 = vmatpush1.msra.mxu0 0.0
      %2341 = vmatprep.subr.mxu0 0.0
      %2342 = vmatpush1.msra.mxu0 0.0
      %2343 = vmatprep.subr.mxu0 0.0
      %2344 = vmatpush1.msra.mxu0 0.0
      %2345 = vmatprep.subr.mxu0 0.0
      %2346 = vmatpush1.msra.mxu0 0.0
      %2347 = vmatprep.subr.mxu0 0.0
      %2348 = vmatpush1.msra.mxu0 0.0
      %2349 = vmatprep.subr.mxu0 0.0
      %2350 = vmatpush1.msra.mxu0 0.0
      %2351 = vmatprep.subr.mxu0 0.0
      %2352 = vmatpush1.msra.mxu0 0.0
      %2353 = vmatprep.subr.mxu0 0.0
      %2354 = vmatpush1.msra.mxu0 0.0
      %2355 = vmatprep.subr.mxu0 0.0
      %2356 = vmatpush1.msra.mxu0 0.0
      %2357 = vmatprep.subr.mxu0 0.0
      %2358 = vmatpush1.msra.mxu0 0.0
      %2359 = vmatprep.subr.mxu0 0.0
      %2360 = vmatpush1.msra.mxu0 0.0
      %2361 = vmatprep.subr.mxu0 0.0
      %2362 = vmatpush1.msra.mxu0 0.0
      %2363 = vmatprep.mubr.f32.mxu0 0.0
      %2364 = vmatmul.mubr.f32.gmra.mrb[0].mxu0 %v1199
      %v2365 = vpop.f32.mrb[0].mxu0
      %v2366 = vadd.f32 0.0, %v2365
      %v2367 = vpop.f32.mrb[0].mxu0
      %2368 = vmatprep.mubr.f32.mxu0 0.0
      %2369 = vmatmul.mubr.f32.gmra.mrb[0].mxu0 %v1204
      %v2370 = vpop.f32.mrb[0].mxu0
      %v2371 = vadd.f32 0.0, %v2370
      %v2372 = vpop.f32.mrb[0].mxu0
      %2373 = vmatprep.mubr.f32.mxu0 0.0
      %2374 = vmatmul.mubr.f32.gmra.mrb[0].mxu0 %v1209
      %v2375 = vpop.f32.mrb[0].mxu0
      %v2376 = vadd.f32 0.0, %v2375
      %v2377 = vpop.f32.mrb[0].mxu0
      %2378 = vmatprep.mubr.f32.mxu0 0.0
      %2379 = vmatmul.mubr.f32.gmra.mrb[0].mxu0 %v1214
      %v2380 = vpop.f32.mrb[0].mxu0
      %v2381 = vadd.f32 0.0, %v2380
      %v2382 = vpop.f32.mrb[0].mxu0
      %2383 = vdwg.mxu0
      %v2384 = vadd.f32 %v2278, %v2366
      %v2385 = vadd.f32 %v2279, %v2371
      %v2386 = vadd.f32 %v2280, %v2376
      %v2387 = vadd.f32 %v2281, %v2381
      %s2388 = scalar_lea.vmem %s5, 1280
      %v2389 = vld [vmem:[%s2388] sm:$0xff]
      %v2390 = vld [vmem:[%s2388 + $0x8] sm:$0xff]
      %v2391 = vld [vmem:[%s2388 + $0x10] sm:$0xff]
      %v2392 = vld [vmem:[%s2388 + $0x18] sm:$0xff]
      %v2393 = vld [vmem:[%s2388 + $0x20] sm:$0xff]
      %v2394 = vld [vmem:[%s2388 + $0x28] sm:$0xff]
      %v2395 = vld [vmem:[%s2388 + $0x30] sm:$0xff]
      %v2396 = vld [vmem:[%s2388 + $0x38] sm:$0xff]
      %v2397 = vld [vmem:[%s2388 + $0x40] sm:$0xff]
      %v2398 = vld [vmem:[%s2388 + $0x48] sm:$0xff]
      %v2399 = vld [vmem:[%s2388 + $0x50] sm:$0xff]
      %v2400 = vld [vmem:[%s2388 + $0x58] sm:$0xff]
      %v2401 = vld [vmem:[%s2388 + $0x60] sm:$0xff]
      %v2402 = vld [vmem:[%s2388 + $0x68] sm:$0xff]
      %v2403 = vld [vmem:[%s2388 + $0x70] sm:$0xff]
      %v2404 = vld [vmem:[%s2388 + $0x78] sm:$0xff]
      %2405 = vmatprep.subr.mxu0 0.0
      %2406 = vmatpush1.msra.mxu0 %v2389
      %2407 = vmatprep.subr.mxu0 0.0
      %2408 = vmatpush1.msra.mxu0 %v2390
      %2409 = vmatprep.subr.mxu0 0.0
      %2410 = vmatpush1.msra.mxu0 %v2391
      %2411 = vmatprep.subr.mxu0 0.0
      %2412 = vmatpush1.msra.mxu0 %v2392
      %2413 = vmatprep.subr.mxu0 0.0
      %2414 = vmatpush1.msra.mxu0 %v2393
      %2415 = vmatprep.subr.mxu0 0.0
      %2416 = vmatpush1.msra.mxu0 %v2394
      %2417 = vmatprep.subr.mxu0 0.0
      %2418 = vmatpush1.msra.mxu0 %v2395
      %2419 = vmatprep.subr.mxu0 0.0
      %2420 = vmatpush1.msra.mxu0 %v2396
      %2421 = vmatprep.subr.mxu0 0.0
      %2422 = vmatpush1.msra.mxu0 %v2397
      %2423 = vmatprep.subr.mxu0 0.0
      %2424 = vmatpush1.msra.mxu0 %v2398
      %2425 = vmatprep.subr.mxu0 0.0
      %2426 = vmatpush1.msra.mxu0 %v2399
      %2427 = vmatprep.subr.mxu0 0.0
      %2428 = vmatpush1.msra.mxu0 %v2400
      %2429 = vmatprep.subr.mxu0 0.0
      %2430 = vmatpush1.msra.mxu0 %v2401
      %2431 = vmatprep.subr.mxu0 0.0
      %2432 = vmatpush1.msra.mxu0 %v2402
      %2433 = vmatprep.subr.mxu0 0.0
      %2434 = vmatpush1.msra.mxu0 %v2403
      %2435 = vmatprep.subr.mxu0 0.0
      %2436 = vmatpush1.msra.mxu0 %v2404
      %2437 = vmatprep.subr.mxu0 0.0
      %2438 = vmatpush1.msra.mxu0 0.0
      %2439 = vmatprep.subr.mxu0 0.0
      %2440 = vmatpush1.msra.mxu0 0.0
      %2441 = vmatprep.subr.mxu0 0.0
      %2442 = vmatpush1.msra.mxu0 0.0
      %2443 = vmatprep.subr.mxu0 0.0
      %2444 = vmatpush1.msra.mxu0 0.0
      %2445 = vmatprep.subr.mxu0 0.0
      %2446 = vmatpush1.msra.mxu0 0.0
      %2447 = vmatprep.subr.mxu0 0.0
      %2448 = vmatpush1.msra.mxu0 0.0
      %2449 = vmatprep.subr.mxu0 0.0
      %2450 = vmatpush1.msra.mxu0 0.0
      %2451 = vmatprep.subr.mxu0 0.0
      %2452 = vmatpush1.msra.mxu0 0.0
      %2453 = vmatprep.subr.mxu0 0.0
      %2454 = vmatpush1.msra.mxu0 0.0
      %2455 = vmatprep.subr.mxu0 0.0
      %2456 = vmatpush1.msra.mxu0 0.0
      %2457 = vmatprep.subr.mxu0 0.0
      %2458 = vmatpush1.msra.mxu0 0.0
      %2459 = vmatprep.subr.mxu0 0.0
      %2460 = vmatpush1.msra.mxu0 0.0
      %2461 = vmatprep.subr.mxu0 0.0
      %2462 = vmatpush1.msra.mxu0 0.0
      %2463 = vmatprep.subr.mxu0 0.0
      %2464 = vmatpush1.msra.mxu0 0.0
      %2465 = vmatprep.subr.mxu0 0.0
      %2466 = vmatpush1.msra.mxu0 0.0
      %2467 = vmatprep.subr.mxu0 0.0
      %2468 = vmatpush1.msra.mxu0 0.0
      %2469 = vmatprep.mubr.f32.mxu0 0.0
      %2470 = vmatmul.mubr.f32.gmra.mrb[0].mxu0 %v1219
      %v2471 = vpop.f32.mrb[0].mxu0
      %v2472 = vadd.f32 0.0, %v2471
      %v2473 = vpop.f32.mrb[0].mxu0
      %2474 = vmatprep.mubr.f32.mxu0 0.0
      %2475 = vmatmul.mubr.f32.gmra.mrb[0].mxu0 %v1224
      %v2476 = vpop.f32.mrb[0].mxu0
      %v2477 = vadd.f32 0.0, %v2476
      %v2478 = vpop.f32.mrb[0].mxu0
      %2479 = vmatprep.mubr.f32.mxu0 0.0
      %2480 = vmatmul.mubr.f32.gmra.mrb[0].mxu0 %v1229
      %v2481 = vpop.f32.mrb[0].mxu0
      %v2482 = vadd.f32 0.0, %v2481
      %v2483 = vpop.f32.mrb[0].mxu0
      %2484 = vmatprep.mubr.f32.mxu0 0.0
      %2485 = vmatmul.mubr.f32.gmra.mrb[0].mxu0 %v1234
      %v2486 = vpop.f32.mrb[0].mxu0
      %v2487 = vadd.f32 0.0, %v2486
      %v2488 = vpop.f32.mrb[0].mxu0
      %2489 = vdwg.mxu0
      %v2490 = vadd.f32 %v2384, %v2472
      %v2491 = vadd.f32 %v2385, %v2477
      %v2492 = vadd.f32 %v2386, %v2482
      %v2493 = vadd.f32 %v2387, %v2487
      %s2494 = scalar_lea.vmem %s5, 1408
      %v2495 = vld [vmem:[%s2494] sm:$0xff]
      %v2496 = vld [vmem:[%s2494 + $0x8] sm:$0xff]
      %v2497 = vld [vmem:[%s2494 + $0x10] sm:$0xff]
      %v2498 = vld [vmem:[%s2494 + $0x18] sm:$0xff]
      %v2499 = vld [vmem:[%s2494 + $0x20] sm:$0xff]
      %v2500 = vld [vmem:[%s2494 + $0x28] sm:$0xff]
      %v2501 = vld [vmem:[%s2494 + $0x30] sm:$0xff]
      %v2502 = vld [vmem:[%s2494 + $0x38] sm:$0xff]
      %v2503 = vld [vmem:[%s2494 + $0x40] sm:$0xff]
      %v2504 = vld [vmem:[%s2494 + $0x48] sm:$0xff]
      %v2505 = vld [vmem:[%s2494 + $0x50] sm:$0xff]
      %v2506 = vld [vmem:[%s2494 + $0x58] sm:$0xff]
      %v2507 = vld [vmem:[%s2494 + $0x60] sm:$0xff]
      %v2508 = vld [vmem:[%s2494 + $0x68] sm:$0xff]
      %v2509 = vld [vmem:[%s2494 + $0x70] sm:$0xff]
      %v2510 = vld [vmem:[%s2494 + $0x78] sm:$0xff]
      %2511 = vmatprep.subr.mxu0 0.0
      %2512 = vmatpush1.msra.mxu0 %v2495
      %2513 = vmatprep.subr.mxu0 0.0
      %2514 = vmatpush1.msra.mxu0 %v2496
      %2515 = vmatprep.subr.mxu0 0.0
      %2516 = vmatpush1.msra.mxu0 %v2497
      %2517 = vmatprep.subr.mxu0 0.0
      %2518 = vmatpush1.msra.mxu0 %v2498
      %2519 = vmatprep.subr.mxu0 0.0
      %2520 = vmatpush1.msra.mxu0 %v2499
      %2521 = vmatprep.subr.mxu0 0.0
      %2522 = vmatpush1.msra.mxu0 %v2500
      %2523 = vmatprep.subr.mxu0 0.0
      %2524 = vmatpush1.msra.mxu0 %v2501
      %2525 = vmatprep.subr.mxu0 0.0
      %2526 = vmatpush1.msra.mxu0 %v2502
      %2527 = vmatprep.subr.mxu0 0.0
      %2528 = vmatpush1.msra.mxu0 %v2503
      %2529 = vmatprep.subr.mxu0 0.0
      %2530 = vmatpush1.msra.mxu0 %v2504
      %2531 = vmatprep.subr.mxu0 0.0
      %2532 = vmatpush1.msra.mxu0 %v2505
      %2533 = vmatprep.subr.mxu0 0.0
      %2534 = vmatpush1.msra.mxu0 %v2506
      %2535 = vmatprep.subr.mxu0 0.0
      %2536 = vmatpush1.msra.mxu0 %v2507
      %2537 = vmatprep.subr.mxu0 0.0
      %2538 = vmatpush1.msra.mxu0 %v2508
      %2539 = vmatprep.subr.mxu0 0.0
      %2540 = vmatpush1.msra.mxu0 %v2509
      %2541 = vmatprep.subr.mxu0 0.0
      %2542 = vmatpush1.msra.mxu0 %v2510
      %2543 = vmatprep.subr.mxu0 0.0
      %2544 = vmatpush1.msra.mxu0 0.0
      %2545 = vmatprep.subr.mxu0 0.0
      %2546 = vmatpush1.msra.mxu0 0.0
      %2547 = vmatprep.subr.mxu0 0.0
      %2548 = vmatpush1.msra.mxu0 0.0
      %2549 = vmatprep.subr.mxu0 0.0
      %2550 = vmatpush1.msra.mxu0 0.0
      %2551 = vmatprep.subr.mxu0 0.0
      %2552 = vmatpush1.msra.mxu0 0.0
      %2553 = vmatprep.subr.mxu0 0.0
      %2554 = vmatpush1.msra.mxu0 0.0
      %2555 = vmatprep.subr.mxu0 0.0
      %2556 = vmatpush1.msra.mxu0 0.0
      %2557 = vmatprep.subr.mxu0 0.0
      %2558 = vmatpush1.msra.mxu0 0.0
      %2559 = vmatprep.subr.mxu0 0.0
      %2560 = vmatpush1.msra.mxu0 0.0
      %2561 = vmatprep.subr.mxu0 0.0
      %2562 = vmatpush1.msra.mxu0 0.0
      %2563 = vmatprep.subr.mxu0 0.0
      %2564 = vmatpush1.msra.mxu0 0.0
      %2565 = vmatprep.subr.mxu0 0.0
      %2566 = vmatpush1.msra.mxu0 0.0
      %2567 = vmatprep.subr.mxu0 0.0
      %2568 = vmatpush1.msra.mxu0 0.0
      %2569 = vmatprep.subr.mxu0 0.0
      %2570 = vmatpush1.msra.mxu0 0.0
      %2571 = vmatprep.subr.mxu0 0.0
      %2572 = vmatpush1.msra.mxu0 0.0
      %2573 = vmatprep.subr.mxu0 0.0
      %2574 = vmatpush1.msra.mxu0 0.0
      %2575 = vmatprep.mubr.f32.mxu0 0.0
      %2576 = vmatmul.mubr.f32.gmra.mrb[0].mxu0 %v1239
      %v2577 = vpop.f32.mrb[0].mxu0
      %v2578 = vadd.f32 0.0, %v2577
      %v2579 = vpop.f32.mrb[0].mxu0
      %2580 = vmatprep.mubr.f32.mxu0 0.0
      %2581 = vmatmul.mubr.f32.gmra.mrb[0].mxu0 %v1244
      %v2582 = vpop.f32.mrb[0].mxu0
      %v2583 = vadd.f32 0.0, %v2582
      %v2584 = vpop.f32.mrb[0].mxu0
      %2585 = vmatprep.mubr.f32.mxu0 0.0
      %2586 = vmatmul.mubr.f32.gmra.mrb[0].mxu0 %v1249
      %v2587 = vpop.f32.mrb[0].mxu0
      %v2588 = vadd.f32 0.0, %v2587
      %v2589 = vpop.f32.mrb[0].mxu0
      %2590 = vmatprep.mubr.f32.mxu0 0.0
      %2591 = vmatmul.mubr.f32.gmra.mrb[0].mxu0 %v1254
      %v2592 = vpop.f32.mrb[0].mxu0
      %v2593 = vadd.f32 0.0, %v2592
      %v2594 = vpop.f32.mrb[0].mxu0
      %2595 = vdwg.mxu0
      %v2596 = vadd.f32 %v2490, %v2578
      %v2597 = vadd.f32 %v2491, %v2583
      %v2598 = vadd.f32 %v2492, %v2588
      %v2599 = vadd.f32 %v2493, %v2593
      %s2600 = scalar_lea.vmem %s5, 1536
      %v2601 = vld [vmem:[%s2600] sm:$0xff]
      %v2602 = vld [vmem:[%s2600 + $0x8] sm:$0xff]
      %v2603 = vld [vmem:[%s2600 + $0x10] sm:$0xff]
      %v2604 = vld [vmem:[%s2600 + $0x18] sm:$0xff]
      %v2605 = vld [vmem:[%s2600 + $0x20] sm:$0xff]
      %v2606 = vld [vmem:[%s2600 + $0x28] sm:$0xff]
      %v2607 = vld [vmem:[%s2600 + $0x30] sm:$0xff]
      %v2608 = vld [vmem:[%s2600 + $0x38] sm:$0xff]
      %v2609 = vld [vmem:[%s2600 + $0x40] sm:$0xff]
      %v2610 = vld [vmem:[%s2600 + $0x48] sm:$0xff]
      %v2611 = vld [vmem:[%s2600 + $0x50] sm:$0xff]
      %v2612 = vld [vmem:[%s2600 + $0x58] sm:$0xff]
      %v2613 = vld [vmem:[%s2600 + $0x60] sm:$0xff]
      %v2614 = vld [vmem:[%s2600 + $0x68] sm:$0xff]
      %v2615 = vld [vmem:[%s2600 + $0x70] sm:$0xff]
      %v2616 = vld [vmem:[%s2600 + $0x78] sm:$0xff]
      %2617 = vmatprep.subr.mxu0 0.0
      %2618 = vmatpush1.msra.mxu0 %v2601
      %2619 = vmatprep.subr.mxu0 0.0
      %2620 = vmatpush1.msra.mxu0 %v2602
      %2621 = vmatprep.subr.mxu0 0.0
      %2622 = vmatpush1.msra.mxu0 %v2603
      %2623 = vmatprep.subr.mxu0 0.0
      %2624 = vmatpush1.msra.mxu0 %v2604
      %2625 = vmatprep.subr.mxu0 0.0
      %2626 = vmatpush1.msra.mxu0 %v2605
      %2627 = vmatprep.subr.mxu0 0.0
      %2628 = vmatpush1.msra.mxu0 %v2606
      %2629 = vmatprep.subr.mxu0 0.0
      %2630 = vmatpush1.msra.mxu0 %v2607
      %2631 = vmatprep.subr.mxu0 0.0
      %2632 = vmatpush1.msra.mxu0 %v2608
      %2633 = vmatprep.subr.mxu0 0.0
      %2634 = vmatpush1.msra.mxu0 %v2609
      %2635 = vmatprep.subr.mxu0 0.0
      %2636 = vmatpush1.msra.mxu0 %v2610
      %2637 = vmatprep.subr.mxu0 0.0
      %2638 = vmatpush1.msra.mxu0 %v2611
      %2639 = vmatprep.subr.mxu0 0.0
      %2640 = vmatpush1.msra.mxu0 %v2612
      %2641 = vmatprep.subr.mxu0 0.0
      %2642 = vmatpush1.msra.mxu0 %v2613
      %2643 = vmatprep.subr.mxu0 0.0
      %2644 = vmatpush1.msra.mxu0 %v2614
      %2645 = vmatprep.subr.mxu0 0.0
      %2646 = vmatpush1.msra.mxu0 %v2615
      %2647 = vmatprep.subr.mxu0 0.0
      %2648 = vmatpush1.msra.mxu0 %v2616
      %2649 = vmatprep.subr.mxu0 0.0
      %2650 = vmatpush1.msra.mxu0 0.0
      %2651 = vmatprep.subr.mxu0 0.0
      %2652 = vmatpush1.msra.mxu0 0.0
      %2653 = vmatprep.subr.mxu0 0.0
      %2654 = vmatpush1.msra.mxu0 0.0
      %2655 = vmatprep.subr.mxu0 0.0
      %2656 = vmatpush1.msra.mxu0 0.0
      %2657 = vmatprep.subr.mxu0 0.0
      %2658 = vmatpush1.msra.mxu0 0.0
      %2659 = vmatprep.subr.mxu0 0.0
      %2660 = vmatpush1.msra.mxu0 0.0
      %2661 = vmatprep.subr.mxu0 0.0
      %2662 = vmatpush1.msra.mxu0 0.0
      %2663 = vmatprep.subr.mxu0 0.0
      %2664 = vmatpush1.msra.mxu0 0.0
      %2665 = vmatprep.subr.mxu0 0.0
      %2666 = vmatpush1.msra.mxu0 0.0
      %2667 = vmatprep.subr.mxu0 0.0
      %2668 = vmatpush1.msra.mxu0 0.0
      %2669 = vmatprep.subr.mxu0 0.0
      %2670 = vmatpush1.msra.mxu0 0.0
      %2671 = vmatprep.subr.mxu0 0.0
      %2672 = vmatpush1.msra.mxu0 0.0
      %2673 = vmatprep.subr.mxu0 0.0
      %2674 = vmatpush1.msra.mxu0 0.0
      %2675 = vmatprep.subr.mxu0 0.0
      %2676 = vmatpush1.msra.mxu0 0.0
      %2677 = vmatprep.subr.mxu0 0.0
      %2678 = vmatpush1.msra.mxu0 0.0
      %2679 = vmatprep.subr.mxu0 0.0
      %2680 = vmatpush1.msra.mxu0 0.0
      %2681 = vmatprep.mubr.f32.mxu0 0.0
      %2682 = vmatmul.mubr.f32.gmra.mrb[0].mxu0 %v1259
      %v2683 = vpop.f32.mrb[0].mxu0
      %v2684 = vadd.f32 0.0, %v2683
      %v2685 = vpop.f32.mrb[0].mxu0
      %2686 = vmatprep.mubr.f32.mxu0 0.0
      %2687 = vmatmul.mubr.f32.gmra.mrb[0].mxu0 %v1264
      %v2688 = vpop.f32.mrb[0].mxu0
      %v2689 = vadd.f32 0.0, %v2688
      %v2690 = vpop.f32.mrb[0].mxu0
      %2691 = vmatprep.mubr.f32.mxu0 0.0
      %2692 = vmatmul.mubr.f32.gmra.mrb[0].mxu0 %v1269
      %v2693 = vpop.f32.mrb[0].mxu0
      %v2694 = vadd.f32 0.0, %v2693
      %v2695 = vpop.f32.mrb[0].mxu0
      %2696 = vmatprep.mubr.f32.mxu0 0.0
      %2697 = vmatmul.mubr.f32.gmra.mrb[0].mxu0 %v1274
      %v2698 = vpop.f32.mrb[0].mxu0
      %v2699 = vadd.f32 0.0, %v2698
      %v2700 = vpop.f32.mrb[0].mxu0
      %2701 = vdwg.mxu0
      %v2702 = vadd.f32 %v2596, %v2684
      %v2703 = vadd.f32 %v2597, %v2689
      %v2704 = vadd.f32 %v2598, %v2694
      %v2705 = vadd.f32 %v2599, %v2699
      %s2706 = scalar_lea.vmem %s5, 1664
      %v2707 = vld [vmem:[%s2706] sm:$0xff]
      %v2708 = vld [vmem:[%s2706 + $0x8] sm:$0xff]
      %v2709 = vld [vmem:[%s2706 + $0x10] sm:$0xff]
      %v2710 = vld [vmem:[%s2706 + $0x18] sm:$0xff]
      %v2711 = vld [vmem:[%s2706 + $0x20] sm:$0xff]
      %v2712 = vld [vmem:[%s2706 + $0x28] sm:$0xff]
      %v2713 = vld [vmem:[%s2706 + $0x30] sm:$0xff]
      %v2714 = vld [vmem:[%s2706 + $0x38] sm:$0xff]
      %v2715 = vld [vmem:[%s2706 + $0x40] sm:$0xff]
      %v2716 = vld [vmem:[%s2706 + $0x48] sm:$0xff]
      %v2717 = vld [vmem:[%s2706 + $0x50] sm:$0xff]
      %v2718 = vld [vmem:[%s2706 + $0x58] sm:$0xff]
      %v2719 = vld [vmem:[%s2706 + $0x60] sm:$0xff]
      %v2720 = vld [vmem:[%s2706 + $0x68] sm:$0xff]
      %v2721 = vld [vmem:[%s2706 + $0x70] sm:$0xff]
      %v2722 = vld [vmem:[%s2706 + $0x78] sm:$0xff]
      %2723 = vmatprep.subr.mxu0 0.0
      %2724 = vmatpush1.msra.mxu0 %v2707
      %2725 = vmatprep.subr.mxu0 0.0
      %2726 = vmatpush1.msra.mxu0 %v2708
      %2727 = vmatprep.subr.mxu0 0.0
      %2728 = vmatpush1.msra.mxu0 %v2709
      %2729 = vmatprep.subr.mxu0 0.0
      %2730 = vmatpush1.msra.mxu0 %v2710
      %2731 = vmatprep.subr.mxu0 0.0
      %2732 = vmatpush1.msra.mxu0 %v2711
      %2733 = vmatprep.subr.mxu0 0.0
      %2734 = vmatpush1.msra.mxu0 %v2712
      %2735 = vmatprep.subr.mxu0 0.0
      %2736 = vmatpush1.msra.mxu0 %v2713
      %2737 = vmatprep.subr.mxu0 0.0
      %2738 = vmatpush1.msra.mxu0 %v2714
      %2739 = vmatprep.subr.mxu0 0.0
      %2740 = vmatpush1.msra.mxu0 %v2715
      %2741 = vmatprep.subr.mxu0 0.0
      %2742 = vmatpush1.msra.mxu0 %v2716
      %2743 = vmatprep.subr.mxu0 0.0
      %2744 = vmatpush1.msra.mxu0 %v2717
      %2745 = vmatprep.subr.mxu0 0.0
      %2746 = vmatpush1.msra.mxu0 %v2718
      %2747 = vmatprep.subr.mxu0 0.0
      %2748 = vmatpush1.msra.mxu0 %v2719
      %2749 = vmatprep.subr.mxu0 0.0
      %2750 = vmatpush1.msra.mxu0 %v2720
      %2751 = vmatprep.subr.mxu0 0.0
      %2752 = vmatpush1.msra.mxu0 %v2721
      %2753 = vmatprep.subr.mxu0 0.0
      %2754 = vmatpush1.msra.mxu0 %v2722
      %2755 = vmatprep.subr.mxu0 0.0
      %2756 = vmatpush1.msra.mxu0 0.0
      %2757 = vmatprep.subr.mxu0 0.0
      %2758 = vmatpush1.msra.mxu0 0.0
      %2759 = vmatprep.subr.mxu0 0.0
      %2760 = vmatpush1.msra.mxu0 0.0
      %2761 = vmatprep.subr.mxu0 0.0
      %2762 = vmatpush1.msra.mxu0 0.0
      %2763 = vmatprep.subr.mxu0 0.0
      %2764 = vmatpush1.msra.mxu0 0.0
      %2765 = vmatprep.subr.mxu0 0.0
      %2766 = vmatpush1.msra.mxu0 0.0
      %2767 = vmatprep.subr.mxu0 0.0
      %2768 = vmatpush1.msra.mxu0 0.0
      %2769 = vmatprep.subr.mxu0 0.0
      %2770 = vmatpush1.msra.mxu0 0.0
      %2771 = vmatprep.subr.mxu0 0.0
      %2772 = vmatpush1.msra.mxu0 0.0
      %2773 = vmatprep.subr.mxu0 0.0
      %2774 = vmatpush1.msra.mxu0 0.0
      %2775 = vmatprep.subr.mxu0 0.0
      %2776 = vmatpush1.msra.mxu0 0.0
      %2777 = vmatprep.subr.mxu0 0.0
      %2778 = vmatpush1.msra.mxu0 0.0
      %2779 = vmatprep.subr.mxu0 0.0
      %2780 = vmatpush1.msra.mxu0 0.0
      %2781 = vmatprep.subr.mxu0 0.0
      %2782 = vmatpush1.msra.mxu0 0.0
      %2783 = vmatprep.subr.mxu0 0.0
      %2784 = vmatpush1.msra.mxu0 0.0
      %2785 = vmatprep.subr.mxu0 0.0
      %2786 = vmatpush1.msra.mxu0 0.0
      %2787 = vmatprep.mubr.f32.mxu0 0.0
      %2788 = vmatmul.mubr.f32.gmra.mrb[0].mxu0 %v1279
      %v2789 = vpop.f32.mrb[0].mxu0
      %v2790 = vadd.f32 0.0, %v2789
      %v2791 = vpop.f32.mrb[0].mxu0
      %2792 = vmatprep.mubr.f32.mxu0 0.0
      %2793 = vmatmul.mubr.f32.gmra.mrb[0].mxu0 %v1284
      %v2794 = vpop.f32.mrb[0].mxu0
      %v2795 = vadd.f32 0.0, %v2794
      %v2796 = vpop.f32.mrb[0].mxu0
      %2797 = vmatprep.mubr.f32.mxu0 0.0
      %2798 = vmatmul.mubr.f32.gmra.mrb[0].mxu0 %v1289
      %v2799 = vpop.f32.mrb[0].mxu0
      %v2800 = vadd.f32 0.0, %v2799
      %v2801 = vpop.f32.mrb[0].mxu0
      %2802 = vmatprep.mubr.f32.mxu0 0.0
      %2803 = vmatmul.mubr.f32.gmra.mrb[0].mxu0 %v1294
      %v2804 = vpop.f32.mrb[0].mxu0
      %v2805 = vadd.f32 0.0, %v2804
      %v2806 = vpop.f32.mrb[0].mxu0
      %2807 = vdwg.mxu0
      %v2808 = vadd.f32 %v2702, %v2790
      %v2809 = vadd.f32 %v2703, %v2795
      %v2810 = vadd.f32 %v2704, %v2800
      %v2811 = vadd.f32 %v2705, %v2805
      %s2812 = scalar_lea.vmem %s5, 1792
      %v2813 = vld [vmem:[%s2812] sm:$0xff]
      %v2814 = vld [vmem:[%s2812 + $0x8] sm:$0xff]
      %v2815 = vld [vmem:[%s2812 + $0x10] sm:$0xff]
      %v2816 = vld [vmem:[%s2812 + $0x18] sm:$0xff]
      %v2817 = vld [vmem:[%s2812 + $0x20] sm:$0xff]
      %v2818 = vld [vmem:[%s2812 + $0x28] sm:$0xff]
      %v2819 = vld [vmem:[%s2812 + $0x30] sm:$0xff]
      %v2820 = vld [vmem:[%s2812 + $0x38] sm:$0xff]
      %v2821 = vld [vmem:[%s2812 + $0x40] sm:$0xff]
      %v2822 = vld [vmem:[%s2812 + $0x48] sm:$0xff]
      %v2823 = vld [vmem:[%s2812 + $0x50] sm:$0xff]
      %v2824 = vld [vmem:[%s2812 + $0x58] sm:$0xff]
      %v2825 = vld [vmem:[%s2812 + $0x60] sm:$0xff]
      %v2826 = vld [vmem:[%s2812 + $0x68] sm:$0xff]
      %v2827 = vld [vmem:[%s2812 + $0x70] sm:$0xff]
      %v2828 = vld [vmem:[%s2812 + $0x78] sm:$0xff]
      %2829 = vmatprep.subr.mxu0 0.0
      %2830 = vmatpush1.msra.mxu0 %v2813
      %2831 = vmatprep.subr.mxu0 0.0
      %2832 = vmatpush1.msra.mxu0 %v2814
      %2833 = vmatprep.subr.mxu0 0.0
      %2834 = vmatpush1.msra.mxu0 %v2815
      %2835 = vmatprep.subr.mxu0 0.0
      %2836 = vmatpush1.msra.mxu0 %v2816
      %2837 = vmatprep.subr.mxu0 0.0
      %2838 = vmatpush1.msra.mxu0 %v2817
      %2839 = vmatprep.subr.mxu0 0.0
      %2840 = vmatpush1.msra.mxu0 %v2818
      %2841 = vmatprep.subr.mxu0 0.0
      %2842 = vmatpush1.msra.mxu0 %v2819
      %2843 = vmatprep.subr.mxu0 0.0
      %2844 = vmatpush1.msra.mxu0 %v2820
      %2845 = vmatprep.subr.mxu0 0.0
      %2846 = vmatpush1.msra.mxu0 %v2821
      %2847 = vmatprep.subr.mxu0 0.0
      %2848 = vmatpush1.msra.mxu0 %v2822
      %2849 = vmatprep.subr.mxu0 0.0
      %2850 = vmatpush1.msra.mxu0 %v2823
      %2851 = vmatprep.subr.mxu0 0.0
      %2852 = vmatpush1.msra.mxu0 %v2824
      %2853 = vmatprep.subr.mxu0 0.0
      %2854 = vmatpush1.msra.mxu0 %v2825
      %2855 = vmatprep.subr.mxu0 0.0
      %2856 = vmatpush1.msra.mxu0 %v2826
      %2857 = vmatprep.subr.mxu0 0.0
      %2858 = vmatpush1.msra.mxu0 %v2827
      %2859 = vmatprep.subr.mxu0 0.0
      %2860 = vmatpush1.msra.mxu0 %v2828
      %2861 = vmatprep.subr.mxu0 0.0
      %2862 = vmatpush1.msra.mxu0 0.0
      %2863 = vmatprep.subr.mxu0 0.0
      %2864 = vmatpush1.msra.mxu0 0.0
      %2865 = vmatprep.subr.mxu0 0.0
      %2866 = vmatpush1.msra.mxu0 0.0
      %2867 = vmatprep.subr.mxu0 0.0
      %2868 = vmatpush1.msra.mxu0 0.0
      %2869 = vmatprep.subr.mxu0 0.0
      %2870 = vmatpush1.msra.mxu0 0.0
      %2871 = vmatprep.subr.mxu0 0.0
      %2872 = vmatpush1.msra.mxu0 0.0
      %2873 = vmatprep.subr.mxu0 0.0
      %2874 = vmatpush1.msra.mxu0 0.0
      %2875 = vmatprep.subr.mxu0 0.0
      %2876 = vmatpush1.msra.mxu0 0.0
      %2877 = vmatprep.subr.mxu0 0.0
      %2878 = vmatpush1.msra.mxu0 0.0
      %2879 = vmatprep.subr.mxu0 0.0
      %2880 = vmatpush1.msra.mxu0 0.0
      %2881 = vmatprep.subr.mxu0 0.0
      %2882 = vmatpush1.msra.mxu0 0.0
      %2883 = vmatprep.subr.mxu0 0.0
      %2884 = vmatpush1.msra.mxu0 0.0
      %2885 = vmatprep.subr.mxu0 0.0
      %2886 = vmatpush1.msra.mxu0 0.0
      %2887 = vmatprep.subr.mxu0 0.0
      %2888 = vmatpush1.msra.mxu0 0.0
      %2889 = vmatprep.subr.mxu0 0.0
      %2890 = vmatpush1.msra.mxu0 0.0
      %2891 = vmatprep.subr.mxu0 0.0
      %2892 = vmatpush1.msra.mxu0 0.0
      %2893 = vmatprep.mubr.f32.mxu0 0.0
      %2894 = vmatmul.mubr.f32.gmra.mrb[0].mxu0 %v1299
      %v2895 = vpop.f32.mrb[0].mxu0
      %v2896 = vadd.f32 0.0, %v2895
      %v2897 = vpop.f32.mrb[0].mxu0
      %2898 = vmatprep.mubr.f32.mxu0 0.0
      %2899 = vmatmul.mubr.f32.gmra.mrb[0].mxu0 %v1304
      %v2900 = vpop.f32.mrb[0].mxu0
      %v2901 = vadd.f32 0.0, %v2900
      %v2902 = vpop.f32.mrb[0].mxu0
      %2903 = vmatprep.mubr.f32.mxu0 0.0
      %2904 = vmatmul.mubr.f32.gmra.mrb[0].mxu0 %v1309
      %v2905 = vpop.f32.mrb[0].mxu0
      %v2906 = vadd.f32 0.0, %v2905
      %v2907 = vpop.f32.mrb[0].mxu0
      %2908 = vmatprep.mubr.f32.mxu0 0.0
      %2909 = vmatmul.mubr.f32.gmra.mrb[0].mxu0 %v1314
      %v2910 = vpop.f32.mrb[0].mxu0
      %v2911 = vadd.f32 0.0, %v2910
      %v2912 = vpop.f32.mrb[0].mxu0
      %2913 = vdwg.mxu0
      %v2914 = vadd.f32 %v2808, %v2896
      %v2915 = vadd.f32 %v2809, %v2901
      %v2916 = vadd.f32 %v2810, %v2906
      %v2917 = vadd.f32 %v2811, %v2911
      %s2918 = scalar_lea.vmem %s5, 1920
      %v2919 = vld [vmem:[%s2918] sm:$0xff]
      %v2920 = vld [vmem:[%s2918 + $0x8] sm:$0xff]
      %v2921 = vld [vmem:[%s2918 + $0x10] sm:$0xff]
      %v2922 = vld [vmem:[%s2918 + $0x18] sm:$0xff]
      %v2923 = vld [vmem:[%s2918 + $0x20] sm:$0xff]
      %v2924 = vld [vmem:[%s2918 + $0x28] sm:$0xff]
      %v2925 = vld [vmem:[%s2918 + $0x30] sm:$0xff]
      %v2926 = vld [vmem:[%s2918 + $0x38] sm:$0xff]
      %v2927 = vld [vmem:[%s2918 + $0x40] sm:$0xff]
      %v2928 = vld [vmem:[%s2918 + $0x48] sm:$0xff]
      %v2929 = vld [vmem:[%s2918 + $0x50] sm:$0xff]
      %v2930 = vld [vmem:[%s2918 + $0x58] sm:$0xff]
      %v2931 = vld [vmem:[%s2918 + $0x60] sm:$0xff]
      %v2932 = vld [vmem:[%s2918 + $0x68] sm:$0xff]
      %v2933 = vld [vmem:[%s2918 + $0x70] sm:$0xff]
      %v2934 = vld [vmem:[%s2918 + $0x78] sm:$0xff]
      %2935 = vmatprep.subr.mxu0 0.0
      %2936 = vmatpush1.msra.mxu0 %v2919
      %2937 = vmatprep.subr.mxu0 0.0
      %2938 = vmatpush1.msra.mxu0 %v2920
      %2939 = vmatprep.subr.mxu0 0.0
      %2940 = vmatpush1.msra.mxu0 %v2921
      %2941 = vmatprep.subr.mxu0 0.0
      %2942 = vmatpush1.msra.mxu0 %v2922
      %2943 = vmatprep.subr.mxu0 0.0
      %2944 = vmatpush1.msra.mxu0 %v2923
      %2945 = vmatprep.subr.mxu0 0.0
      %2946 = vmatpush1.msra.mxu0 %v2924
      %2947 = vmatprep.subr.mxu0 0.0
      %2948 = vmatpush1.msra.mxu0 %v2925
      %2949 = vmatprep.subr.mxu0 0.0
      %2950 = vmatpush1.msra.mxu0 %v2926
      %2951 = vmatprep.subr.mxu0 0.0
      %2952 = vmatpush1.msra.mxu0 %v2927
      %2953 = vmatprep.subr.mxu0 0.0
      %2954 = vmatpush1.msra.mxu0 %v2928
      %2955 = vmatprep.subr.mxu0 0.0
      %2956 = vmatpush1.msra.mxu0 %v2929
      %2957 = vmatprep.subr.mxu0 0.0
      %2958 = vmatpush1.msra.mxu0 %v2930
      %2959 = vmatprep.subr.mxu0 0.0
      %2960 = vmatpush1.msra.mxu0 %v2931
      %2961 = vmatprep.subr.mxu0 0.0
      %2962 = vmatpush1.msra.mxu0 %v2932
      %2963 = vmatprep.subr.mxu0 0.0
      %2964 = vmatpush1.msra.mxu0 %v2933
      %2965 = vmatprep.subr.mxu0 0.0
      %2966 = vmatpush1.msra.mxu0 %v2934
      %2967 = vmatprep.subr.mxu0 0.0
      %2968 = vmatpush1.msra.mxu0 0.0
      %2969 = vmatprep.subr.mxu0 0.0
      %2970 = vmatpush1.msra.mxu0 0.0
      %2971 = vmatprep.subr.mxu0 0.0
      %2972 = vmatpush1.msra.mxu0 0.0
      %2973 = vmatprep.subr.mxu0 0.0
      %2974 = vmatpush1.msra.mxu0 0.0
      %2975 = vmatprep.subr.mxu0 0.0
      %2976 = vmatpush1.msra.mxu0 0.0
      %2977 = vmatprep.subr.mxu0 0.0
      %2978 = vmatpush1.msra.mxu0 0.0
      %2979 = vmatprep.subr.mxu0 0.0
      %2980 = vmatpush1.msra.mxu0 0.0
      %2981 = vmatprep.subr.mxu0 0.0
      %2982 = vmatpush1.msra.mxu0 0.0
      %2983 = vmatprep.subr.mxu0 0.0
      %2984 = vmatpush1.msra.mxu0 0.0
      %2985 = vmatprep.subr.mxu0 0.0
      %2986 = vmatpush1.msra.mxu0 0.0
      %2987 = vmatprep.subr.mxu0 0.0
      %2988 = vmatpush1.msra.mxu0 0.0
      %2989 = vmatprep.subr.mxu0 0.0
      %2990 = vmatpush1.msra.mxu0 0.0
      %2991 = vmatprep.subr.mxu0 0.0
      %2992 = vmatpush1.msra.mxu0 0.0
      %2993 = vmatprep.subr.mxu0 0.0
      %2994 = vmatpush1.msra.mxu0 0.0
      %2995 = vmatprep.subr.mxu0 0.0
      %2996 = vmatpush1.msra.mxu0 0.0
      %2997 = vmatprep.subr.mxu0 0.0
      %2998 = vmatpush1.msra.mxu0 0.0
      %2999 = vmatprep.mubr.f32.mxu0 0.0
      %3000 = vmatmul.mubr.f32.gmra.mrb[0].mxu0 %v1319
      %v3001 = vpop.f32.mrb[0].mxu0
      %v3002 = vadd.f32 0.0, %v3001
      %v3003 = vpop.f32.mrb[0].mxu0
      %3004 = vmatprep.mubr.f32.mxu0 0.0
      %3005 = vmatmul.mubr.f32.gmra.mrb[0].mxu0 %v1324
      %v3006 = vpop.f32.mrb[0].mxu0
      %v3007 = vadd.f32 0.0, %v3006
      %v3008 = vpop.f32.mrb[0].mxu0
      %3009 = vmatprep.mubr.f32.mxu0 0.0
      %3010 = vmatmul.mubr.f32.gmra.mrb[0].mxu0 %v1329
      %v3011 = vpop.f32.mrb[0].mxu0
      %v3012 = vadd.f32 0.0, %v3011
      %v3013 = vpop.f32.mrb[0].mxu0
      %3014 = vmatprep.mubr.f32.mxu0 0.0
      %3015 = vmatmul.mubr.f32.gmra.mrb[0].mxu0 %v1334
      %v3016 = vpop.f32.mrb[0].mxu0
      %v3017 = vadd.f32 0.0, %v3016
      %v3018 = vpop.f32.mrb[0].mxu0
      %3019 = vdwg.mxu0
      %v3020 = vadd.f32 %v2914, %v3002
      %v3021 = vadd.f32 %v2915, %v3007
      %v3022 = vadd.f32 %v2916, %v3012
      %v3023 = vadd.f32 %v2917, %v3017
      %v3024 = vld [vmem:[%s6] sm:$0x1]
      %v3026 = vlaneseq
      %v3027 = vshrl.u32 %v3026, 7
      %v3028 = vsub.s32 0, %v3027
      %v3029 = vrot.slane %v3024, %v3028
      %v3031 = vadd.f32 %v3020, %v3029
      %v3032 = vadd.f32 %v3021, %v3029
      %v3033 = vadd.f32 %v3022, %v3029
      %v3034 = vadd.f32 %v3023, %v3029
      %v3035 = vmax.f32 %v3031, 0.0
      %v3036 = vmax.f32 %v3032, 0.0
      %v3037 = vmax.f32 %v3033, 0.0
      %v3038 = vmax.f32 %v3034, 0.0
      %v3039 = vld [vmem:[%s2] sm:$0xff]
      %v3040 = vld [vmem:[%s2 + $0x8] sm:$0xff]
      %v3041 = vld [vmem:[%s2 + $0x10] sm:$0xff]
      %v3042 = vld [vmem:[%s2 + $0x18] sm:$0xff]
      %v3043 = vld [vmem:[%s2 + $0x20] sm:$0xff]
      %v3044 = vld [vmem:[%s2 + $0x28] sm:$0xff]
      %v3045 = vld [vmem:[%s2 + $0x30] sm:$0xff]
      %v3046 = vld [vmem:[%s2 + $0x38] sm:$0xff]
      %v3047 = vld [vmem:[%s2 + $0x40] sm:$0xff]
      %v3048 = vld [vmem:[%s2 + $0x48] sm:$0xff]
      %v3049 = vld [vmem:[%s2 + $0x50] sm:$0xff]
      %v3050 = vld [vmem:[%s2 + $0x58] sm:$0xff]
      %v3051 = vld [vmem:[%s2 + $0x60] sm:$0xff]
      %v3052 = vld [vmem:[%s2 + $0x68] sm:$0xff]
      %v3053 = vld [vmem:[%s2 + $0x70] sm:$0xff]
      %v3054 = vld [vmem:[%s2 + $0x78] sm:$0xff]
      %v3055 = vld [vmem:[%s2 + $0x80] sm:$0xff]
      %v3056 = vld [vmem:[%s2 + $0x88] sm:$0xff]
      %vm3057 = vcmask 261120
      %v3059 = vsel %vm3057, %v3039, 0
      %v3062 = vsel %vm3057, %v3040, 0
      %v3065 = vsel %vm3057, %v3041, 0
      %v3068 = vsel %vm3057, %v3042, 0
      %v3071 = vsel %vm3057, %v3043, 0
      %v3074 = vsel %vm3057, %v3044, 0
      %v3077 = vsel %vm3057, %v3045, 0
      %v3080 = vsel %vm3057, %v3046, 0
      %v3083 = vsel %vm3057, %v3047, 0
      %v3086 = vsel %vm3057, %v3048, 0
      %v3089 = vsel %vm3057, %v3049, 0
      %v3092 = vsel %vm3057, %v3050, 0
      %v3095 = vsel %vm3057, %v3051, 0
      %v3098 = vsel %vm3057, %v3052, 0
      %v3101 = vsel %vm3057, %v3053, 0
      %v3104 = vsel %vm3057, %v3054, 0
      %v3107 = vsel %vm3057, %v3055, 0
      %v3110 = vsel %vm3057, %v3056, 0
      %3112 = vmatprep.subr.mxu0 0.0
      %3113 = vmatpush1.msra.mxu0 %v3035
      %3114 = vmatprep.subr.mxu0 0.0
      %3115 = vmatpush1.msra.mxu0 %v3036
      %3116 = vmatprep.subr.mxu0 0.0
      %3117 = vmatpush1.msra.mxu0 %v3037
      %3118 = vmatprep.subr.mxu0 0.0
      %3119 = vmatpush1.msra.mxu0 %v3038
      %3120 = vmatprep.subr.mxu0 0.0
      %3121 = vmatpush1.msra.mxu0 0.0
      %3122 = vmatprep.subr.mxu0 0.0
      %3123 = vmatpush1.msra.mxu0 0.0
      %3124 = vmatprep.subr.mxu0 0.0
      %3125 = vmatpush1.msra.mxu0 0.0
      %3126 = vmatprep.subr.mxu0 0.0
      %3127 = vmatpush1.msra.mxu0 0.0
      %3128 = vmatprep.subr.mxu0 0.0
      %3129 = vmatpush1.msra.mxu0 0.0
      %3130 = vmatprep.subr.mxu0 0.0
      %3131 = vmatpush1.msra.mxu0 0.0
      %3132 = vmatprep.subr.mxu0 0.0
      %3133 = vmatpush1.msra.mxu0 0.0
      %3134 = vmatprep.subr.mxu0 0.0
      %3135 = vmatpush1.msra.mxu0 0.0
      %3136 = vmatprep.subr.mxu0 0.0
      %3137 = vmatpush1.msra.mxu0 0.0
      %3138 = vmatprep.subr.mxu0 0.0
      %3139 = vmatpush1.msra.mxu0 0.0
      %3140 = vmatprep.subr.mxu0 0.0
      %3141 = vmatpush1.msra.mxu0 0.0
      %3142 = vmatprep.subr.mxu0 0.0
      %3143 = vmatpush1.msra.mxu0 0.0
      %3144 = vmatprep.subr.mxu0 0.0
      %3145 = vmatpush1.msra.mxu0 0.0
      %3146 = vmatprep.subr.mxu0 0.0
      %3147 = vmatpush1.msra.mxu0 0.0
      %3148 = vmatprep.subr.mxu0 0.0
      %3149 = vmatpush1.msra.mxu0 0.0
      %3150 = vmatprep.subr.mxu0 0.0
      %3151 = vmatpush1.msra.mxu0 0.0
      %3152 = vmatprep.subr.mxu0 0.0
      %3153 = vmatpush1.msra.mxu0 0.0
      %3154 = vmatprep.subr.mxu0 0.0
      %3155 = vmatpush1.msra.mxu0 0.0
      %3156 = vmatprep.subr.mxu0 0.0
      %3157 = vmatpush1.msra.mxu0 0.0
      %3158 = vmatprep.subr.mxu0 0.0
      %3159 = vmatpush1.msra.mxu0 0.0
      %3160 = vmatprep.subr.mxu0 0.0
      %3161 = vmatpush1.msra.mxu0 0.0
      %3162 = vmatprep.subr.mxu0 0.0
      %3163 = vmatpush1.msra.mxu0 0.0
      %3164 = vmatprep.subr.mxu0 0.0
      %3165 = vmatpush1.msra.mxu0 0.0
      %3166 = vmatprep.subr.mxu0 0.0
      %3167 = vmatpush1.msra.mxu0 0.0
      %3168 = vmatprep.subr.mxu0 0.0
      %3169 = vmatpush1.msra.mxu0 0.0
      %3170 = vmatprep.subr.mxu0 0.0
      %3171 = vmatpush1.msra.mxu0 0.0
      %3172 = vmatprep.subr.mxu0 0.0
      %3173 = vmatpush1.msra.mxu0 0.0
      %3174 = vmatprep.subr.mxu0 0.0
      %3175 = vmatpush1.msra.mxu0 0.0
      %3176 = vmatprep.mubr.f32.mxu0 0.0
      %3177 = vmatmul.mubr.f32.gmra.mrb[0].mxu0 %v3059
      %v3178 = vpop.f32.mrb[0].mxu0
      %v3179 = vadd.f32 0.0, %v3178
      %v3180 = vpop.f32.mrb[0].mxu0
      %3181 = vmatprep.mubr.f32.mxu0 0.0
      %3182 = vmatmul.mubr.f32.gmra.mrb[0].mxu0 %v3062
      %v3183 = vpop.f32.mrb[0].mxu0
      %v3184 = vadd.f32 0.0, %v3183
      %v3185 = vpop.f32.mrb[0].mxu0
      %3186 = vmatprep.mubr.f32.mxu0 0.0
      %3187 = vmatmul.mubr.f32.gmra.mrb[0].mxu0 %v3065
      %v3188 = vpop.f32.mrb[0].mxu0
      %v3189 = vadd.f32 0.0, %v3188
      %v3190 = vpop.f32.mrb[0].mxu0
      %3191 = vmatprep.mubr.f32.mxu0 0.0
      %3192 = vmatmul.mubr.f32.gmra.mrb[0].mxu0 %v3068
      %v3193 = vpop.f32.mrb[0].mxu0
      %v3194 = vadd.f32 0.0, %v3193
      %v3195 = vpop.f32.mrb[0].mxu0
      %3196 = vmatprep.mubr.f32.mxu0 0.0
      %3197 = vmatmul.mubr.f32.gmra.mrb[0].mxu0 %v3071
      %v3198 = vpop.f32.mrb[0].mxu0
      %v3199 = vadd.f32 0.0, %v3198
      %v3200 = vpop.f32.mrb[0].mxu0
      %3201 = vmatprep.mubr.f32.mxu0 0.0
      %3202 = vmatmul.mubr.f32.gmra.mrb[0].mxu0 %v3074
      %v3203 = vpop.f32.mrb[0].mxu0
      %v3204 = vadd.f32 0.0, %v3203
      %v3205 = vpop.f32.mrb[0].mxu0
      %3206 = vmatprep.mubr.f32.mxu0 0.0
      %3207 = vmatmul.mubr.f32.gmra.mrb[0].mxu0 %v3077
      %v3208 = vpop.f32.mrb[0].mxu0
      %v3209 = vadd.f32 0.0, %v3208
      %v3210 = vpop.f32.mrb[0].mxu0
      %3211 = vmatprep.mubr.f32.mxu0 0.0
      %3212 = vmatmul.mubr.f32.gmra.mrb[0].mxu0 %v3080
      %v3213 = vpop.f32.mrb[0].mxu0
      %v3214 = vadd.f32 0.0, %v3213
      %v3215 = vpop.f32.mrb[0].mxu0
      %3216 = vmatprep.mubr.f32.mxu0 0.0
      %3217 = vmatmul.mubr.f32.gmra.mrb[0].mxu0 %v3083
      %v3218 = vpop.f32.mrb[0].mxu0
      %v3219 = vadd.f32 0.0, %v3218
      %v3220 = vpop.f32.mrb[0].mxu0
      %3221 = vmatprep.mubr.f32.mxu0 0.0
      %3222 = vmatmul.mubr.f32.gmra.mrb[0].mxu0 %v3086
      %v3223 = vpop.f32.mrb[0].mxu0
      %v3224 = vadd.f32 0.0, %v3223
      %v3225 = vpop.f32.mrb[0].mxu0
      %3226 = vmatprep.mubr.f32.mxu0 0.0
      %3227 = vmatmul.mubr.f32.gmra.mrb[0].mxu0 %v3089
      %v3228 = vpop.f32.mrb[0].mxu0
      %v3229 = vadd.f32 0.0, %v3228
      %v3230 = vpop.f32.mrb[0].mxu0
      %3231 = vmatprep.mubr.f32.mxu0 0.0
      %3232 = vmatmul.mubr.f32.gmra.mrb[0].mxu0 %v3092
      %v3233 = vpop.f32.mrb[0].mxu0
      %v3234 = vadd.f32 0.0, %v3233
      %v3235 = vpop.f32.mrb[0].mxu0
      %3236 = vmatprep.mubr.f32.mxu0 0.0
      %3237 = vmatmul.mubr.f32.gmra.mrb[0].mxu0 %v3095
      %v3238 = vpop.f32.mrb[0].mxu0
      %v3239 = vadd.f32 0.0, %v3238
      %v3240 = vpop.f32.mrb[0].mxu0
      %3241 = vmatprep.mubr.f32.mxu0 0.0
      %3242 = vmatmul.mubr.f32.gmra.mrb[0].mxu0 %v3098
      %v3243 = vpop.f32.mrb[0].mxu0
      %v3244 = vadd.f32 0.0, %v3243
      %v3245 = vpop.f32.mrb[0].mxu0
      %3246 = vmatprep.mubr.f32.mxu0 0.0
      %3247 = vmatmul.mubr.f32.gmra.mrb[0].mxu0 %v3101
      %v3248 = vpop.f32.mrb[0].mxu0
      %v3249 = vadd.f32 0.0, %v3248
      %v3250 = vpop.f32.mrb[0].mxu0
      %3251 = vmatprep.mubr.f32.mxu0 0.0
      %3252 = vmatmul.mubr.f32.gmra.mrb[0].mxu0 %v3104
      %v3253 = vpop.f32.mrb[0].mxu0
      %v3254 = vadd.f32 0.0, %v3253
      %v3255 = vpop.f32.mrb[0].mxu0
      %3256 = vmatprep.mubr.f32.mxu0 0.0
      %3257 = vmatmul.mubr.f32.gmra.mrb[0].mxu0 %v3107
      %v3258 = vpop.f32.mrb[0].mxu0
      %v3259 = vadd.f32 0.0, %v3258
      %v3260 = vpop.f32.mrb[0].mxu0
      %3261 = vmatprep.mubr.f32.mxu0 0.0
      %3262 = vmatmul.mubr.f32.gmra.mrb[0].mxu0 %v3110
      %v3263 = vpop.f32.mrb[0].mxu0
      %v3264 = vadd.f32 0.0, %v3263
      %v3265 = vpop.f32.mrb[0].mxu0
      %3266 = vdwg.mxu0
      %v3267 = vld [vmem:[%s7] sm:$0xff]
      %v3268 = vld [vmem:[%s7 + $0x8] sm:$0xff]
      %v3269 = vld [vmem:[%s7 + $0x10] sm:$0xff]
      %v3270 = vld [vmem:[%s7 + $0x18] sm:$0xff]
      %v3271 = vld [vmem:[%s7 + $0x20] sm:$0xff]
      %v3272 = vld [vmem:[%s7 + $0x28] sm:$0xff]
      %v3273 = vld [vmem:[%s7 + $0x30] sm:$0xff]
      %v3274 = vld [vmem:[%s7 + $0x38] sm:$0xff]
      %v3275 = vld [vmem:[%s7 + $0x40] sm:$0xff]
      %v3276 = vld [vmem:[%s7 + $0x48] sm:$0xff]
      %v3277 = vld [vmem:[%s7 + $0x50] sm:$0xff]
      %v3278 = vld [vmem:[%s7 + $0x58] sm:$0xff]
      %v3279 = vld [vmem:[%s7 + $0x60] sm:$0xff]
      %v3280 = vld [vmem:[%s7 + $0x68] sm:$0xff]
      %v3281 = vld [vmem:[%s7 + $0x70] sm:$0xff]
      %v3282 = vld [vmem:[%s7 + $0x78] sm:$0xff]
      %s3283 = scalar_lea.vmem %s7, 128
      %v3284 = vld [vmem:[%s3283] sm:$0xff]
      %v3285 = vld [vmem:[%s3283 + $0x8] sm:$0xff]
      %v3286 = vld [vmem:[%s3283 + $0x10] sm:$0xff]
      %v3287 = vld [vmem:[%s3283 + $0x18] sm:$0xff]
      %v3288 = vld [vmem:[%s3283 + $0x20] sm:$0xff]
      %v3289 = vld [vmem:[%s3283 + $0x28] sm:$0xff]
      %v3290 = vld [vmem:[%s3283 + $0x30] sm:$0xff]
      %v3291 = vld [vmem:[%s3283 + $0x38] sm:$0xff]
      %v3292 = vld [vmem:[%s3283 + $0x40] sm:$0xff]
      %v3293 = vld [vmem:[%s3283 + $0x48] sm:$0xff]
      %v3294 = vld [vmem:[%s3283 + $0x50] sm:$0xff]
      %v3295 = vld [vmem:[%s3283 + $0x58] sm:$0xff]
      %v3296 = vld [vmem:[%s3283 + $0x60] sm:$0xff]
      %v3297 = vld [vmem:[%s3283 + $0x68] sm:$0xff]
      %v3298 = vld [vmem:[%s3283 + $0x70] sm:$0xff]
      %v3299 = vld [vmem:[%s3283 + $0x78] sm:$0xff]
      %3300 = vmatprep.subr.mxu0 0.0
      %3301 = vmatpush1.msra.mxu0 %v3284
      %3302 = vmatprep.subr.mxu0 0.0
      %3303 = vmatpush1.msra.mxu0 %v3285
      %3304 = vmatprep.subr.mxu0 0.0
      %3305 = vmatpush1.msra.mxu0 %v3286
      %3306 = vmatprep.subr.mxu0 0.0
      %3307 = vmatpush1.msra.mxu0 %v3287
      %3308 = vmatprep.subr.mxu0 0.0
      %3309 = vmatpush1.msra.mxu0 %v3288
      %3310 = vmatprep.subr.mxu0 0.0
      %3311 = vmatpush1.msra.mxu0 %v3289
      %3312 = vmatprep.subr.mxu0 0.0
      %3313 = vmatpush1.msra.mxu0 %v3290
      %3314 = vmatprep.subr.mxu0 0.0
      %3315 = vmatpush1.msra.mxu0 %v3291
      %3316 = vmatprep.subr.mxu0 0.0
      %3317 = vmatpush1.msra.mxu0 %v3292
      %3318 = vmatprep.subr.mxu0 0.0
      %3319 = vmatpush1.msra.mxu0 %v3293
      %3320 = vmatprep.subr.mxu0 0.0
      %3321 = vmatpush1.msra.mxu0 %v3294
      %3322 = vmatprep.subr.mxu0 0.0
      %3323 = vmatpush1.msra.mxu0 %v3295
      %3324 = vmatprep.subr.mxu0 0.0
      %3325 = vmatpush1.msra.mxu0 %v3296
      %3326 = vmatprep.subr.mxu0 0.0
      %3327 = vmatpush1.msra.mxu0 %v3297
      %3328 = vmatprep.subr.mxu0 0.0
      %3329 = vmatpush1.msra.mxu0 %v3298
      %3330 = vmatprep.subr.mxu0 0.0
      %3331 = vmatpush1.msra.mxu0 %v3299
      %3332 = vmatprep.subr.mxu0 0.0
      %3333 = vmatpush1.msra.mxu0 0.0
      %3334 = vmatprep.subr.mxu0 0.0
      %3335 = vmatpush1.msra.mxu0 0.0
      %3336 = vmatprep.subr.mxu0 0.0
      %3337 = vmatpush1.msra.mxu0 0.0
      %3338 = vmatprep.subr.mxu0 0.0
      %3339 = vmatpush1.msra.mxu0 0.0
      %3340 = vmatprep.subr.mxu0 0.0
      %3341 = vmatpush1.msra.mxu0 0.0
      %3342 = vmatprep.subr.mxu0 0.0
      %3343 = vmatpush1.msra.mxu0 0.0
      %3344 = vmatprep.subr.mxu0 0.0
      %3345 = vmatpush1.msra.mxu0 0.0
      %3346 = vmatprep.subr.mxu0 0.0
      %3347 = vmatpush1.msra.mxu0 0.0
      %3348 = vmatprep.subr.mxu0 0.0
      %3349 = vmatpush1.msra.mxu0 0.0
      %3350 = vmatprep.subr.mxu0 0.0
      %3351 = vmatpush1.msra.mxu0 0.0
      %3352 = vmatprep.subr.mxu0 0.0
      %3353 = vmatpush1.msra.mxu0 0.0
      %3354 = vmatprep.subr.mxu0 0.0
      %3355 = vmatpush1.msra.mxu0 0.0
      %3356 = vmatprep.subr.mxu0 0.0
      %3357 = vmatpush1.msra.mxu0 0.0
      %3358 = vmatprep.subr.mxu0 0.0
      %3359 = vmatpush1.msra.mxu0 0.0
      %3360 = vmatprep.subr.mxu0 0.0
      %3361 = vmatpush1.msra.mxu0 0.0
      %3362 = vmatprep.subr.mxu0 0.0
      %3363 = vmatpush1.msra.mxu0 0.0
      %3364 = vmatprep.mubr.f32.mxu0 0.0
      %3365 = vmatmul.mubr.f32.gmra.mrb[0].mxu0 %v3189
      %v3366 = vpop.f32.mrb[0].mxu0
      %v3367 = vadd.f32 0.0, %v3366
      %v3368 = vpop.f32.mrb[0].mxu0
      %3369 = vmatprep.mubr.f32.mxu0 0.0
      %3370 = vmatmul.mubr.f32.gmra.mrb[0].mxu0 %v3194
      %v3371 = vpop.f32.mrb[0].mxu0
      %v3372 = vadd.f32 0.0, %v3371
      %v3373 = vpop.f32.mrb[0].mxu0
      %3374 = vdwg.mxu0
      %3375 = vmatprep.subr.mxu0 0.0
      %3376 = vmatpush1.msra.mxu0 %v3267
      %3377 = vmatprep.subr.mxu0 0.0
      %3378 = vmatpush1.msra.mxu0 %v3268
      %3379 = vmatprep.subr.mxu0 0.0
      %3380 = vmatpush1.msra.mxu0 %v3269
      %3381 = vmatprep.subr.mxu0 0.0
      %3382 = vmatpush1.msra.mxu0 %v3270
      %3383 = vmatprep.subr.mxu0 0.0
      %3384 = vmatpush1.msra.mxu0 %v3271
      %3385 = vmatprep.subr.mxu0 0.0
      %3386 = vmatpush1.msra.mxu0 %v3272
      %3387 = vmatprep.subr.mxu0 0.0
      %3388 = vmatpush1.msra.mxu0 %v3273
      %3389 = vmatprep.subr.mxu0 0.0
      %3390 = vmatpush1.msra.mxu0 %v3274
      %3391 = vmatprep.subr.mxu0 0.0
      %3392 = vmatpush1.msra.mxu0 %v3275
      %3393 = vmatprep.subr.mxu0 0.0
      %3394 = vmatpush1.msra.mxu0 %v3276
      %3395 = vmatprep.subr.mxu0 0.0
      %3396 = vmatpush1.msra.mxu0 %v3277
      %3397 = vmatprep.subr.mxu0 0.0
      %3398 = vmatpush1.msra.mxu0 %v3278
      %3399 = vmatprep.subr.mxu0 0.0
      %3400 = vmatpush1.msra.mxu0 %v3279
      %3401 = vmatprep.subr.mxu0 0.0
      %3402 = vmatpush1.msra.mxu0 %v3280
      %3403 = vmatprep.subr.mxu0 0.0
      %3404 = vmatpush1.msra.mxu0 %v3281
      %3405 = vmatprep.subr.mxu0 0.0
      %3406 = vmatpush1.msra.mxu0 %v3282
      %3407 = vmatprep.subr.mxu0 0.0
      %3408 = vmatpush1.msra.mxu0 0.0
      %3409 = vmatprep.subr.mxu0 0.0
      %3410 = vmatpush1.msra.mxu0 0.0
      %3411 = vmatprep.subr.mxu0 0.0
      %3412 = vmatpush1.msra.mxu0 0.0
      %3413 = vmatprep.subr.mxu0 0.0
      %3414 = vmatpush1.msra.mxu0 0.0
      %3415 = vmatprep.subr.mxu0 0.0
      %3416 = vmatpush1.msra.mxu0 0.0
      %3417 = vmatprep.subr.mxu0 0.0
      %3418 = vmatpush1.msra.mxu0 0.0
      %3419 = vmatprep.subr.mxu0 0.0
      %3420 = vmatpush1.msra.mxu0 0.0
      %3421 = vmatprep.subr.mxu0 0.0
      %3422 = vmatpush1.msra.mxu0 0.0
      %3423 = vmatprep.subr.mxu0 0.0
      %3424 = vmatpush1.msra.mxu0 0.0
      %3425 = vmatprep.subr.mxu0 0.0
      %3426 = vmatpush1.msra.mxu0 0.0
      %3427 = vmatprep.subr.mxu0 0.0
      %3428 = vmatpush1.msra.mxu0 0.0
      %3429 = vmatprep.subr.mxu0 0.0
      %3430 = vmatpush1.msra.mxu0 0.0
      %3431 = vmatprep.subr.mxu0 0.0
      %3432 = vmatpush1.msra.mxu0 0.0
      %3433 = vmatprep.subr.mxu0 0.0
      %3434 = vmatpush1.msra.mxu0 0.0
      %3435 = vmatprep.subr.mxu0 0.0
      %3436 = vmatpush1.msra.mxu0 0.0
      %3437 = vmatprep.subr.mxu0 0.0
      %3438 = vmatpush1.msra.mxu0 0.0
      %3439 = vmatprep.mubr.f32.mxu0 0.0
      %3440 = vmatmul.mubr.f32.gmra.mrb[0].mxu0 %v3179
      %v3441 = vpop.f32.mrb[0].mxu0
      %v3442 = vadd.f32 %v3367, %v3441
      %v3443 = vpop.f32.mrb[0].mxu0
      %3444 = vmatprep.mubr.f32.mxu0 0.0
      %3445 = vmatmul.mubr.f32.gmra.mrb[0].mxu0 %v3184
      %v3446 = vpop.f32.mrb[0].mxu0
      %v3447 = vadd.f32 %v3372, %v3446
      %v3448 = vpop.f32.mrb[0].mxu0
      %3449 = vdwg.mxu0
      %s3450 = scalar_lea.vmem %s7, 256
      %v3451 = vld [vmem:[%s3450] sm:$0xff]
      %v3452 = vld [vmem:[%s3450 + $0x8] sm:$0xff]
      %v3453 = vld [vmem:[%s3450 + $0x10] sm:$0xff]
      %v3454 = vld [vmem:[%s3450 + $0x18] sm:$0xff]
      %v3455 = vld [vmem:[%s3450 + $0x20] sm:$0xff]
      %v3456 = vld [vmem:[%s3450 + $0x28] sm:$0xff]
      %v3457 = vld [vmem:[%s3450 + $0x30] sm:$0xff]
      %v3458 = vld [vmem:[%s3450 + $0x38] sm:$0xff]
      %v3459 = vld [vmem:[%s3450 + $0x40] sm:$0xff]
      %v3460 = vld [vmem:[%s3450 + $0x48] sm:$0xff]
      %v3461 = vld [vmem:[%s3450 + $0x50] sm:$0xff]
      %v3462 = vld [vmem:[%s3450 + $0x58] sm:$0xff]
      %v3463 = vld [vmem:[%s3450 + $0x60] sm:$0xff]
      %v3464 = vld [vmem:[%s3450 + $0x68] sm:$0xff]
      %v3465 = vld [vmem:[%s3450 + $0x70] sm:$0xff]
      %v3466 = vld [vmem:[%s3450 + $0x78] sm:$0xff]
      %3467 = vmatprep.subr.mxu0 0.0
      %3468 = vmatpush1.msra.mxu0 %v3451
      %3469 = vmatprep.subr.mxu0 0.0
      %3470 = vmatpush1.msra.mxu0 %v3452
      %3471 = vmatprep.subr.mxu0 0.0
      %3472 = vmatpush1.msra.mxu0 %v3453
      %3473 = vmatprep.subr.mxu0 0.0
      %3474 = vmatpush1.msra.mxu0 %v3454
      %3475 = vmatprep.subr.mxu0 0.0
      %3476 = vmatpush1.msra.mxu0 %v3455
      %3477 = vmatprep.subr.mxu0 0.0
      %3478 = vmatpush1.msra.mxu0 %v3456
      %3479 = vmatprep.subr.mxu0 0.0
      %3480 = vmatpush1.msra.mxu0 %v3457
      %3481 = vmatprep.subr.mxu0 0.0
      %3482 = vmatpush1.msra.mxu0 %v3458
      %3483 = vmatprep.subr.mxu0 0.0
      %3484 = vmatpush1.msra.mxu0 %v3459
      %3485 = vmatprep.subr.mxu0 0.0
      %3486 = vmatpush1.msra.mxu0 %v3460
      %3487 = vmatprep.subr.mxu0 0.0
      %3488 = vmatpush1.msra.mxu0 %v3461
      %3489 = vmatprep.subr.mxu0 0.0
      %3490 = vmatpush1.msra.mxu0 %v3462
      %3491 = vmatprep.subr.mxu0 0.0
      %3492 = vmatpush1.msra.mxu0 %v3463
      %3493 = vmatprep.subr.mxu0 0.0
      %3494 = vmatpush1.msra.mxu0 %v3464
      %3495 = vmatprep.subr.mxu0 0.0
      %3496 = vmatpush1.msra.mxu0 %v3465
      %3497 = vmatprep.subr.mxu0 0.0
      %3498 = vmatpush1.msra.mxu0 %v3466
      %3499 = vmatprep.subr.mxu0 0.0
      %3500 = vmatpush1.msra.mxu0 0.0
      %3501 = vmatprep.subr.mxu0 0.0
      %3502 = vmatpush1.msra.mxu0 0.0
      %3503 = vmatprep.subr.mxu0 0.0
      %3504 = vmatpush1.msra.mxu0 0.0
      %3505 = vmatprep.subr.mxu0 0.0
      %3506 = vmatpush1.msra.mxu0 0.0
      %3507 = vmatprep.subr.mxu0 0.0
      %3508 = vmatpush1.msra.mxu0 0.0
      %3509 = vmatprep.subr.mxu0 0.0
      %3510 = vmatpush1.msra.mxu0 0.0
      %3511 = vmatprep.subr.mxu0 0.0
      %3512 = vmatpush1.msra.mxu0 0.0
      %3513 = vmatprep.subr.mxu0 0.0
      %3514 = vmatpush1.msra.mxu0 0.0
      %3515 = vmatprep.subr.mxu0 0.0
      %3516 = vmatpush1.msra.mxu0 0.0
      %3517 = vmatprep.subr.mxu0 0.0
      %3518 = vmatpush1.msra.mxu0 0.0
      %3519 = vmatprep.subr.mxu0 0.0
      %3520 = vmatpush1.msra.mxu0 0.0
      %3521 = vmatprep.subr.mxu0 0.0
      %3522 = vmatpush1.msra.mxu0 0.0
      %3523 = vmatprep.subr.mxu0 0.0
      %3524 = vmatpush1.msra.mxu0 0.0
      %3525 = vmatprep.subr.mxu0 0.0
      %3526 = vmatpush1.msra.mxu0 0.0
      %3527 = vmatprep.subr.mxu0 0.0
      %3528 = vmatpush1.msra.mxu0 0.0
      %3529 = vmatprep.subr.mxu0 0.0
      %3530 = vmatpush1.msra.mxu0 0.0
      %3531 = vmatprep.mubr.f32.mxu0 0.0
      %3532 = vmatmul.mubr.f32.gmra.mrb[0].mxu0 %v3199
      %v3533 = vpop.f32.mrb[0].mxu0
      %v3534 = vadd.f32 0.0, %v3533
      %v3535 = vpop.f32.mrb[0].mxu0
      %3536 = vmatprep.mubr.f32.mxu0 0.0
      %3537 = vmatmul.mubr.f32.gmra.mrb[0].mxu0 %v3204
      %v3538 = vpop.f32.mrb[0].mxu0
      %v3539 = vadd.f32 0.0, %v3538
      %v3540 = vpop.f32.mrb[0].mxu0
      %3541 = vdwg.mxu0
      %v3542 = vadd.f32 %v3442, %v3534
      %v3543 = vadd.f32 %v3447, %v3539
      %s3544 = scalar_lea.vmem %s7, 384
      %v3545 = vld [vmem:[%s3544] sm:$0xff]
      %v3546 = vld [vmem:[%s3544 + $0x8] sm:$0xff]
      %v3547 = vld [vmem:[%s3544 + $0x10] sm:$0xff]
      %v3548 = vld [vmem:[%s3544 + $0x18] sm:$0xff]
      %v3549 = vld [vmem:[%s3544 + $0x20] sm:$0xff]
      %v3550 = vld [vmem:[%s3544 + $0x28] sm:$0xff]
      %v3551 = vld [vmem:[%s3544 + $0x30] sm:$0xff]
      %v3552 = vld [vmem:[%s3544 + $0x38] sm:$0xff]
      %v3553 = vld [vmem:[%s3544 + $0x40] sm:$0xff]
      %v3554 = vld [vmem:[%s3544 + $0x48] sm:$0xff]
      %v3555 = vld [vmem:[%s3544 + $0x50] sm:$0xff]
      %v3556 = vld [vmem:[%s3544 + $0x58] sm:$0xff]
      %v3557 = vld [vmem:[%s3544 + $0x60] sm:$0xff]
      %v3558 = vld [vmem:[%s3544 + $0x68] sm:$0xff]
      %v3559 = vld [vmem:[%s3544 + $0x70] sm:$0xff]
      %v3560 = vld [vmem:[%s3544 + $0x78] sm:$0xff]
      %3561 = vmatprep.subr.mxu0 0.0
      %3562 = vmatpush1.msra.mxu0 %v3545
      %3563 = vmatprep.subr.mxu0 0.0
      %3564 = vmatpush1.msra.mxu0 %v3546
      %3565 = vmatprep.subr.mxu0 0.0
      %3566 = vmatpush1.msra.mxu0 %v3547
      %3567 = vmatprep.subr.mxu0 0.0
      %3568 = vmatpush1.msra.mxu0 %v3548
      %3569 = vmatprep.subr.mxu0 0.0
      %3570 = vmatpush1.msra.mxu0 %v3549
      %3571 = vmatprep.subr.mxu0 0.0
      %3572 = vmatpush1.msra.mxu0 %v3550
      %3573 = vmatprep.subr.mxu0 0.0
      %3574 = vmatpush1.msra.mxu0 %v3551
      %3575 = vmatprep.subr.mxu0 0.0
      %3576 = vmatpush1.msra.mxu0 %v3552
      %3577 = vmatprep.subr.mxu0 0.0
      %3578 = vmatpush1.msra.mxu0 %v3553
      %3579 = vmatprep.subr.mxu0 0.0
      %3580 = vmatpush1.msra.mxu0 %v3554
      %3581 = vmatprep.subr.mxu0 0.0
      %3582 = vmatpush1.msra.mxu0 %v3555
      %3583 = vmatprep.subr.mxu0 0.0
      %3584 = vmatpush1.msra.mxu0 %v3556
      %3585 = vmatprep.subr.mxu0 0.0
      %3586 = vmatpush1.msra.mxu0 %v3557
      %3587 = vmatprep.subr.mxu0 0.0
      %3588 = vmatpush1.msra.mxu0 %v3558
      %3589 = vmatprep.subr.mxu0 0.0
      %3590 = vmatpush1.msra.mxu0 %v3559
      %3591 = vmatprep.subr.mxu0 0.0
      %3592 = vmatpush1.msra.mxu0 %v3560
      %3593 = vmatprep.subr.mxu0 0.0
      %3594 = vmatpush1.msra.mxu0 0.0
      %3595 = vmatprep.subr.mxu0 0.0
      %3596 = vmatpush1.msra.mxu0 0.0
      %3597 = vmatprep.subr.mxu0 0.0
      %3598 = vmatpush1.msra.mxu0 0.0
      %3599 = vmatprep.subr.mxu0 0.0
      %3600 = vmatpush1.msra.mxu0 0.0
      %3601 = vmatprep.subr.mxu0 0.0
      %3602 = vmatpush1.msra.mxu0 0.0
      %3603 = vmatprep.subr.mxu0 0.0
      %3604 = vmatpush1.msra.mxu0 0.0
      %3605 = vmatprep.subr.mxu0 0.0
      %3606 = vmatpush1.msra.mxu0 0.0
      %3607 = vmatprep.subr.mxu0 0.0
      %3608 = vmatpush1.msra.mxu0 0.0
      %3609 = vmatprep.subr.mxu0 0.0
      %3610 = vmatpush1.msra.mxu0 0.0
      %3611 = vmatprep.subr.mxu0 0.0
      %3612 = vmatpush1.msra.mxu0 0.0
      %3613 = vmatprep.subr.mxu0 0.0
      %3614 = vmatpush1.msra.mxu0 0.0
      %3615 = vmatprep.subr.mxu0 0.0
      %3616 = vmatpush1.msra.mxu0 0.0
      %3617 = vmatprep.subr.mxu0 0.0
      %3618 = vmatpush1.msra.mxu0 0.0
      %3619 = vmatprep.subr.mxu0 0.0
      %3620 = vmatpush1.msra.mxu0 0.0
      %3621 = vmatprep.subr.mxu0 0.0
      %3622 = vmatpush1.msra.mxu0 0.0
      %3623 = vmatprep.subr.mxu0 0.0
      %3624 = vmatpush1.msra.mxu0 0.0
      %3625 = vmatprep.mubr.f32.mxu0 0.0
      %3626 = vmatmul.mubr.f32.gmra.mrb[0].mxu0 %v3209
      %v3627 = vpop.f32.mrb[0].mxu0
      %v3628 = vadd.f32 0.0, %v3627
      %v3629 = vpop.f32.mrb[0].mxu0
      %3630 = vmatprep.mubr.f32.mxu0 0.0
      %3631 = vmatmul.mubr.f32.gmra.mrb[0].mxu0 %v3214
      %v3632 = vpop.f32.mrb[0].mxu0
      %v3633 = vadd.f32 0.0, %v3632
      %v3634 = vpop.f32.mrb[0].mxu0
      %3635 = vdwg.mxu0
      %v3636 = vadd.f32 %v3542, %v3628
      %v3637 = vadd.f32 %v3543, %v3633
      %s3638 = scalar_lea.vmem %s7, 512
      %v3639 = vld [vmem:[%s3638] sm:$0xff]
      %v3640 = vld [vmem:[%s3638 + $0x8] sm:$0xff]
      %v3641 = vld [vmem:[%s3638 + $0x10] sm:$0xff]
      %v3642 = vld [vmem:[%s3638 + $0x18] sm:$0xff]
      %v3643 = vld [vmem:[%s3638 + $0x20] sm:$0xff]
      %v3644 = vld [vmem:[%s3638 + $0x28] sm:$0xff]
      %v3645 = vld [vmem:[%s3638 + $0x30] sm:$0xff]
      %v3646 = vld [vmem:[%s3638 + $0x38] sm:$0xff]
      %v3647 = vld [vmem:[%s3638 + $0x40] sm:$0xff]
      %v3648 = vld [vmem:[%s3638 + $0x48] sm:$0xff]
      %v3649 = vld [vmem:[%s3638 + $0x50] sm:$0xff]
      %v3650 = vld [vmem:[%s3638 + $0x58] sm:$0xff]
      %v3651 = vld [vmem:[%s3638 + $0x60] sm:$0xff]
      %v3652 = vld [vmem:[%s3638 + $0x68] sm:$0xff]
      %v3653 = vld [vmem:[%s3638 + $0x70] sm:$0xff]
      %v3654 = vld [vmem:[%s3638 + $0x78] sm:$0xff]
      %3655 = vmatprep.subr.mxu0 0.0
      %3656 = vmatpush1.msra.mxu0 %v3639
      %3657 = vmatprep.subr.mxu0 0.0
      %3658 = vmatpush1.msra.mxu0 %v3640
      %3659 = vmatprep.subr.mxu0 0.0
      %3660 = vmatpush1.msra.mxu0 %v3641
      %3661 = vmatprep.subr.mxu0 0.0
      %3662 = vmatpush1.msra.mxu0 %v3642
      %3663 = vmatprep.subr.mxu0 0.0
      %3664 = vmatpush1.msra.mxu0 %v3643
      %3665 = vmatprep.subr.mxu0 0.0
      %3666 = vmatpush1.msra.mxu0 %v3644
      %3667 = vmatprep.subr.mxu0 0.0
      %3668 = vmatpush1.msra.mxu0 %v3645
      %3669 = vmatprep.subr.mxu0 0.0
      %3670 = vmatpush1.msra.mxu0 %v3646
      %3671 = vmatprep.subr.mxu0 0.0
      %3672 = vmatpush1.msra.mxu0 %v3647
      %3673 = vmatprep.subr.mxu0 0.0
      %3674 = vmatpush1.msra.mxu0 %v3648
      %3675 = vmatprep.subr.mxu0 0.0
      %3676 = vmatpush1.msra.mxu0 %v3649
      %3677 = vmatprep.subr.mxu0 0.0
      %3678 = vmatpush1.msra.mxu0 %v3650
      %3679 = vmatprep.subr.mxu0 0.0
      %3680 = vmatpush1.msra.mxu0 %v3651
      %3681 = vmatprep.subr.mxu0 0.0
      %3682 = vmatpush1.msra.mxu0 %v3652
      %3683 = vmatprep.subr.mxu0 0.0
      %3684 = vmatpush1.msra.mxu0 %v3653
      %3685 = vmatprep.subr.mxu0 0.0
      %3686 = vmatpush1.msra.mxu0 %v3654
      %3687 = vmatprep.subr.mxu0 0.0
      %3688 = vmatpush1.msra.mxu0 0.0
      %3689 = vmatprep.subr.mxu0 0.0
      %3690 = vmatpush1.msra.mxu0 0.0
      %3691 = vmatprep.subr.mxu0 0.0
      %3692 = vmatpush1.msra.mxu0 0.0
      %3693 = vmatprep.subr.mxu0 0.0
      %3694 = vmatpush1.msra.mxu0 0.0
      %3695 = vmatprep.subr.mxu0 0.0
      %3696 = vmatpush1.msra.mxu0 0.0
      %3697 = vmatprep.subr.mxu0 0.0
      %3698 = vmatpush1.msra.mxu0 0.0
      %3699 = vmatprep.subr.mxu0 0.0
      %3700 = vmatpush1.msra.mxu0 0.0
      %3701 = vmatprep.subr.mxu0 0.0
      %3702 = vmatpush1.msra.mxu0 0.0
      %3703 = vmatprep.subr.mxu0 0.0
      %3704 = vmatpush1.msra.mxu0 0.0
      %3705 = vmatprep.subr.mxu0 0.0
      %3706 = vmatpush1.msra.mxu0 0.0
      %3707 = vmatprep.subr.mxu0 0.0
      %3708 = vmatpush1.msra.mxu0 0.0
      %3709 = vmatprep.subr.mxu0 0.0
      %3710 = vmatpush1.msra.mxu0 0.0
      %3711 = vmatprep.subr.mxu0 0.0
      %3712 = vmatpush1.msra.mxu0 0.0
      %3713 = vmatprep.subr.mxu0 0.0
      %3714 = vmatpush1.msra.mxu0 0.0
      %3715 = vmatprep.subr.mxu0 0.0
      %3716 = vmatpush1.msra.mxu0 0.0
      %3717 = vmatprep.subr.mxu0 0.0
      %3718 = vmatpush1.msra.mxu0 0.0
      %3719 = vmatprep.mubr.f32.mxu0 0.0
      %3720 = vmatmul.mubr.f32.gmra.mrb[0].mxu0 %v3219
      %v3721 = vpop.f32.mrb[0].mxu0
      %v3722 = vadd.f32 0.0, %v3721
      %v3723 = vpop.f32.mrb[0].mxu0
      %3724 = vmatprep.mubr.f32.mxu0 0.0
      %3725 = vmatmul.mubr.f32.gmra.mrb[0].mxu0 %v3224
      %v3726 = vpop.f32.mrb[0].mxu0
      %v3727 = vadd.f32 0.0, %v3726
      %v3728 = vpop.f32.mrb[0].mxu0
      %3729 = vdwg.mxu0
      %v3730 = vadd.f32 %v3636, %v3722
      %v3731 = vadd.f32 %v3637, %v3727
      %s3732 = scalar_lea.vmem %s7, 640
      %v3733 = vld [vmem:[%s3732] sm:$0xff]
      %v3734 = vld [vmem:[%s3732 + $0x8] sm:$0xff]
      %v3735 = vld [vmem:[%s3732 + $0x10] sm:$0xff]
      %v3736 = vld [vmem:[%s3732 + $0x18] sm:$0xff]
      %v3737 = vld [vmem:[%s3732 + $0x20] sm:$0xff]
      %v3738 = vld [vmem:[%s3732 + $0x28] sm:$0xff]
      %v3739 = vld [vmem:[%s3732 + $0x30] sm:$0xff]
      %v3740 = vld [vmem:[%s3732 + $0x38] sm:$0xff]
      %v3741 = vld [vmem:[%s3732 + $0x40] sm:$0xff]
      %v3742 = vld [vmem:[%s3732 + $0x48] sm:$0xff]
      %v3743 = vld [vmem:[%s3732 + $0x50] sm:$0xff]
      %v3744 = vld [vmem:[%s3732 + $0x58] sm:$0xff]
      %v3745 = vld [vmem:[%s3732 + $0x60] sm:$0xff]
      %v3746 = vld [vmem:[%s3732 + $0x68] sm:$0xff]
      %v3747 = vld [vmem:[%s3732 + $0x70] sm:$0xff]
      %v3748 = vld [vmem:[%s3732 + $0x78] sm:$0xff]
      %3749 = vmatprep.subr.mxu0 0.0
      %3750 = vmatpush1.msra.mxu0 %v3733
      %3751 = vmatprep.subr.mxu0 0.0
      %3752 = vmatpush1.msra.mxu0 %v3734
      %3753 = vmatprep.subr.mxu0 0.0
      %3754 = vmatpush1.msra.mxu0 %v3735
      %3755 = vmatprep.subr.mxu0 0.0
      %3756 = vmatpush1.msra.mxu0 %v3736
      %3757 = vmatprep.subr.mxu0 0.0
      %3758 = vmatpush1.msra.mxu0 %v3737
      %3759 = vmatprep.subr.mxu0 0.0
      %3760 = vmatpush1.msra.mxu0 %v3738
      %3761 = vmatprep.subr.mxu0 0.0
      %3762 = vmatpush1.msra.mxu0 %v3739
      %3763 = vmatprep.subr.mxu0 0.0
      %3764 = vmatpush1.msra.mxu0 %v3740
      %3765 = vmatprep.subr.mxu0 0.0
      %3766 = vmatpush1.msra.mxu0 %v3741
      %3767 = vmatprep.subr.mxu0 0.0
      %3768 = vmatpush1.msra.mxu0 %v3742
      %3769 = vmatprep.subr.mxu0 0.0
      %3770 = vmatpush1.msra.mxu0 %v3743
      %3771 = vmatprep.subr.mxu0 0.0
      %3772 = vmatpush1.msra.mxu0 %v3744
      %3773 = vmatprep.subr.mxu0 0.0
      %3774 = vmatpush1.msra.mxu0 %v3745
      %3775 = vmatprep.subr.mxu0 0.0
      %3776 = vmatpush1.msra.mxu0 %v3746
      %3777 = vmatprep.subr.mxu0 0.0
      %3778 = vmatpush1.msra.mxu0 %v3747
      %3779 = vmatprep.subr.mxu0 0.0
      %3780 = vmatpush1.msra.mxu0 %v3748
      %3781 = vmatprep.subr.mxu0 0.0
      %3782 = vmatpush1.msra.mxu0 0.0
      %3783 = vmatprep.subr.mxu0 0.0
      %3784 = vmatpush1.msra.mxu0 0.0
      %3785 = vmatprep.subr.mxu0 0.0
      %3786 = vmatpush1.msra.mxu0 0.0
      %3787 = vmatprep.subr.mxu0 0.0
      %3788 = vmatpush1.msra.mxu0 0.0
      %3789 = vmatprep.subr.mxu0 0.0
      %3790 = vmatpush1.msra.mxu0 0.0
      %3791 = vmatprep.subr.mxu0 0.0
      %3792 = vmatpush1.msra.mxu0 0.0
      %3793 = vmatprep.subr.mxu0 0.0
      %3794 = vmatpush1.msra.mxu0 0.0
      %3795 = vmatprep.subr.mxu0 0.0
      %3796 = vmatpush1.msra.mxu0 0.0
      %3797 = vmatprep.subr.mxu0 0.0
      %3798 = vmatpush1.msra.mxu0 0.0
      %3799 = vmatprep.subr.mxu0 0.0
      %3800 = vmatpush1.msra.mxu0 0.0
      %3801 = vmatprep.subr.mxu0 0.0
      %3802 = vmatpush1.msra.mxu0 0.0
      %3803 = vmatprep.subr.mxu0 0.0
      %3804 = vmatpush1.msra.mxu0 0.0
      %3805 = vmatprep.subr.mxu0 0.0
      %3806 = vmatpush1.msra.mxu0 0.0
      %3807 = vmatprep.subr.mxu0 0.0
      %3808 = vmatpush1.msra.mxu0 0.0
      %3809 = vmatprep.subr.mxu0 0.0
      %3810 = vmatpush1.msra.mxu0 0.0
      %3811 = vmatprep.subr.mxu0 0.0
      %3812 = vmatpush1.msra.mxu0 0.0
      %3813 = vmatprep.mubr.f32.mxu0 0.0
      %3814 = vmatmul.mubr.f32.gmra.mrb[0].mxu0 %v3229
      %v3815 = vpop.f32.mrb[0].mxu0
      %v3816 = vadd.f32 0.0, %v3815
      %v3817 = vpop.f32.mrb[0].mxu0
      %3818 = vmatprep.mubr.f32.mxu0 0.0
      %3819 = vmatmul.mubr.f32.gmra.mrb[0].mxu0 %v3234
      %v3820 = vpop.f32.mrb[0].mxu0
      %v3821 = vadd.f32 0.0, %v3820
      %v3822 = vpop.f32.mrb[0].mxu0
      %3823 = vdwg.mxu0
      %v3824 = vadd.f32 %v3730, %v3816
      %v3825 = vadd.f32 %v3731, %v3821
      %s3826 = scalar_lea.vmem %s7, 768
      %v3827 = vld [vmem:[%s3826] sm:$0xff]
      %v3828 = vld [vmem:[%s3826 + $0x8] sm:$0xff]
      %v3829 = vld [vmem:[%s3826 + $0x10] sm:$0xff]
      %v3830 = vld [vmem:[%s3826 + $0x18] sm:$0xff]
      %v3831 = vld [vmem:[%s3826 + $0x20] sm:$0xff]
      %v3832 = vld [vmem:[%s3826 + $0x28] sm:$0xff]
      %v3833 = vld [vmem:[%s3826 + $0x30] sm:$0xff]
      %v3834 = vld [vmem:[%s3826 + $0x38] sm:$0xff]
      %v3835 = vld [vmem:[%s3826 + $0x40] sm:$0xff]
      %v3836 = vld [vmem:[%s3826 + $0x48] sm:$0xff]
      %v3837 = vld [vmem:[%s3826 + $0x50] sm:$0xff]
      %v3838 = vld [vmem:[%s3826 + $0x58] sm:$0xff]
      %v3839 = vld [vmem:[%s3826 + $0x60] sm:$0xff]
      %v3840 = vld [vmem:[%s3826 + $0x68] sm:$0xff]
      %v3841 = vld [vmem:[%s3826 + $0x70] sm:$0xff]
      %v3842 = vld [vmem:[%s3826 + $0x78] sm:$0xff]
      %3843 = vmatprep.subr.mxu0 0.0
      %3844 = vmatpush1.msra.mxu0 %v3827
      %3845 = vmatprep.subr.mxu0 0.0
      %3846 = vmatpush1.msra.mxu0 %v3828
      %3847 = vmatprep.subr.mxu0 0.0
      %3848 = vmatpush1.msra.mxu0 %v3829
      %3849 = vmatprep.subr.mxu0 0.0
      %3850 = vmatpush1.msra.mxu0 %v3830
      %3851 = vmatprep.subr.mxu0 0.0
      %3852 = vmatpush1.msra.mxu0 %v3831
      %3853 = vmatprep.subr.mxu0 0.0
      %3854 = vmatpush1.msra.mxu0 %v3832
      %3855 = vmatprep.subr.mxu0 0.0
      %3856 = vmatpush1.msra.mxu0 %v3833
      %3857 = vmatprep.subr.mxu0 0.0
      %3858 = vmatpush1.msra.mxu0 %v3834
      %3859 = vmatprep.subr.mxu0 0.0
      %3860 = vmatpush1.msra.mxu0 %v3835
      %3861 = vmatprep.subr.mxu0 0.0
      %3862 = vmatpush1.msra.mxu0 %v3836
      %3863 = vmatprep.subr.mxu0 0.0
      %3864 = vmatpush1.msra.mxu0 %v3837
      %3865 = vmatprep.subr.mxu0 0.0
      %3866 = vmatpush1.msra.mxu0 %v3838
      %3867 = vmatprep.subr.mxu0 0.0
      %3868 = vmatpush1.msra.mxu0 %v3839
      %3869 = vmatprep.subr.mxu0 0.0
      %3870 = vmatpush1.msra.mxu0 %v3840
      %3871 = vmatprep.subr.mxu0 0.0
      %3872 = vmatpush1.msra.mxu0 %v3841
      %3873 = vmatprep.subr.mxu0 0.0
      %3874 = vmatpush1.msra.mxu0 %v3842
      %3875 = vmatprep.subr.mxu0 0.0
      %3876 = vmatpush1.msra.mxu0 0.0
      %3877 = vmatprep.subr.mxu0 0.0
      %3878 = vmatpush1.msra.mxu0 0.0
      %3879 = vmatprep.subr.mxu0 0.0
      %3880 = vmatpush1.msra.mxu0 0.0
      %3881 = vmatprep.subr.mxu0 0.0
      %3882 = vmatpush1.msra.mxu0 0.0
      %3883 = vmatprep.subr.mxu0 0.0
      %3884 = vmatpush1.msra.mxu0 0.0
      %3885 = vmatprep.subr.mxu0 0.0
      %3886 = vmatpush1.msra.mxu0 0.0
      %3887 = vmatprep.subr.mxu0 0.0
      %3888 = vmatpush1.msra.mxu0 0.0
      %3889 = vmatprep.subr.mxu0 0.0
      %3890 = vmatpush1.msra.mxu0 0.0
      %3891 = vmatprep.subr.mxu0 0.0
      %3892 = vmatpush1.msra.mxu0 0.0
      %3893 = vmatprep.subr.mxu0 0.0
      %3894 = vmatpush1.msra.mxu0 0.0
      %3895 = vmatprep.subr.mxu0 0.0
      %3896 = vmatpush1.msra.mxu0 0.0
      %3897 = vmatprep.subr.mxu0 0.0
      %3898 = vmatpush1.msra.mxu0 0.0
      %3899 = vmatprep.subr.mxu0 0.0
      %3900 = vmatpush1.msra.mxu0 0.0
      %3901 = vmatprep.subr.mxu0 0.0
      %3902 = vmatpush1.msra.mxu0 0.0
      %3903 = vmatprep.subr.mxu0 0.0
      %3904 = vmatpush1.msra.mxu0 0.0
      %3905 = vmatprep.subr.mxu0 0.0
      %3906 = vmatpush1.msra.mxu0 0.0
      %3907 = vmatprep.mubr.f32.mxu0 0.0
      %3908 = vmatmul.mubr.f32.gmra.mrb[0].mxu0 %v3239
      %v3909 = vpop.f32.mrb[0].mxu0
      %v3910 = vadd.f32 0.0, %v3909
      %v3911 = vpop.f32.mrb[0].mxu0
      %3912 = vmatprep.mubr.f32.mxu0 0.0
      %3913 = vmatmul.mubr.f32.gmra.mrb[0].mxu0 %v3244
      %v3914 = vpop.f32.mrb[0].mxu0
      %v3915 = vadd.f32 0.0, %v3914
      %v3916 = vpop.f32.mrb[0].mxu0
      %3917 = vdwg.mxu0
      %v3918 = vadd.f32 %v3824, %v3910
      %v3919 = vadd.f32 %v3825, %v3915
      %s3920 = scalar_lea.vmem %s7, 896
      %v3921 = vld [vmem:[%s3920] sm:$0xff]
      %v3922 = vld [vmem:[%s3920 + $0x8] sm:$0xff]
      %v3923 = vld [vmem:[%s3920 + $0x10] sm:$0xff]
      %v3924 = vld [vmem:[%s3920 + $0x18] sm:$0xff]
      %v3925 = vld [vmem:[%s3920 + $0x20] sm:$0xff]
      %v3926 = vld [vmem:[%s3920 + $0x28] sm:$0xff]
      %v3927 = vld [vmem:[%s3920 + $0x30] sm:$0xff]
      %v3928 = vld [vmem:[%s3920 + $0x38] sm:$0xff]
      %v3929 = vld [vmem:[%s3920 + $0x40] sm:$0xff]
      %v3930 = vld [vmem:[%s3920 + $0x48] sm:$0xff]
      %v3931 = vld [vmem:[%s3920 + $0x50] sm:$0xff]
      %v3932 = vld [vmem:[%s3920 + $0x58] sm:$0xff]
      %v3933 = vld [vmem:[%s3920 + $0x60] sm:$0xff]
      %v3934 = vld [vmem:[%s3920 + $0x68] sm:$0xff]
      %v3935 = vld [vmem:[%s3920 + $0x70] sm:$0xff]
      %v3936 = vld [vmem:[%s3920 + $0x78] sm:$0xff]
      %3937 = vmatprep.subr.mxu0 0.0
      %3938 = vmatpush1.msra.mxu0 %v3921
      %3939 = vmatprep.subr.mxu0 0.0
      %3940 = vmatpush1.msra.mxu0 %v3922
      %3941 = vmatprep.subr.mxu0 0.0
      %3942 = vmatpush1.msra.mxu0 %v3923
      %3943 = vmatprep.subr.mxu0 0.0
      %3944 = vmatpush1.msra.mxu0 %v3924
      %3945 = vmatprep.subr.mxu0 0.0
      %3946 = vmatpush1.msra.mxu0 %v3925
      %3947 = vmatprep.subr.mxu0 0.0
      %3948 = vmatpush1.msra.mxu0 %v3926
      %3949 = vmatprep.subr.mxu0 0.0
      %3950 = vmatpush1.msra.mxu0 %v3927
      %3951 = vmatprep.subr.mxu0 0.0
      %3952 = vmatpush1.msra.mxu0 %v3928
      %3953 = vmatprep.subr.mxu0 0.0
      %3954 = vmatpush1.msra.mxu0 %v3929
      %3955 = vmatprep.subr.mxu0 0.0
      %3956 = vmatpush1.msra.mxu0 %v3930
      %3957 = vmatprep.subr.mxu0 0.0
      %3958 = vmatpush1.msra.mxu0 %v3931
      %3959 = vmatprep.subr.mxu0 0.0
      %3960 = vmatpush1.msra.mxu0 %v3932
      %3961 = vmatprep.subr.mxu0 0.0
      %3962 = vmatpush1.msra.mxu0 %v3933
      %3963 = vmatprep.subr.mxu0 0.0
      %3964 = vmatpush1.msra.mxu0 %v3934
      %3965 = vmatprep.subr.mxu0 0.0
      %3966 = vmatpush1.msra.mxu0 %v3935
      %3967 = vmatprep.subr.mxu0 0.0
      %3968 = vmatpush1.msra.mxu0 %v3936
      %3969 = vmatprep.subr.mxu0 0.0
      %3970 = vmatpush1.msra.mxu0 0.0
      %3971 = vmatprep.subr.mxu0 0.0
      %3972 = vmatpush1.msra.mxu0 0.0
      %3973 = vmatprep.subr.mxu0 0.0
      %3974 = vmatpush1.msra.mxu0 0.0
      %3975 = vmatprep.subr.mxu0 0.0
      %3976 = vmatpush1.msra.mxu0 0.0
      %3977 = vmatprep.subr.mxu0 0.0
      %3978 = vmatpush1.msra.mxu0 0.0
      %3979 = vmatprep.subr.mxu0 0.0
      %3980 = vmatpush1.msra.mxu0 0.0
      %3981 = vmatprep.subr.mxu0 0.0
      %3982 = vmatpush1.msra.mxu0 0.0
      %3983 = vmatprep.subr.mxu0 0.0
      %3984 = vmatpush1.msra.mxu0 0.0
      %3985 = vmatprep.subr.mxu0 0.0
      %3986 = vmatpush1.msra.mxu0 0.0
      %3987 = vmatprep.subr.mxu0 0.0
      %3988 = vmatpush1.msra.mxu0 0.0
      %3989 = vmatprep.subr.mxu0 0.0
      %3990 = vmatpush1.msra.mxu0 0.0
      %3991 = vmatprep.subr.mxu0 0.0
      %3992 = vmatpush1.msra.mxu0 0.0
      %3993 = vmatprep.subr.mxu0 0.0
      %3994 = vmatpush1.msra.mxu0 0.0
      %3995 = vmatprep.subr.mxu0 0.0
      %3996 = vmatpush1.msra.mxu0 0.0
      %3997 = vmatprep.subr.mxu0 0.0
      %3998 = vmatpush1.msra.mxu0 0.0
      %3999 = vmatprep.subr.mxu0 0.0
      %4000 = vmatpush1.msra.mxu0 0.0
      %4001 = vmatprep.mubr.f32.mxu0 0.0
      %4002 = vmatmul.mubr.f32.gmra.mrb[0].mxu0 %v3249
      %v4003 = vpop.f32.mrb[0].mxu0
      %v4004 = vadd.f32 0.0, %v4003
      %v4005 = vpop.f32.mrb[0].mxu0
      %4006 = vmatprep.mubr.f32.mxu0 0.0
      %4007 = vmatmul.mubr.f32.gmra.mrb[0].mxu0 %v3254
      %v4008 = vpop.f32.mrb[0].mxu0
      %v4009 = vadd.f32 0.0, %v4008
      %v4010 = vpop.f32.mrb[0].mxu0
      %4011 = vdwg.mxu0
      %v4012 = vadd.f32 %v3918, %v4004
      %v4013 = vadd.f32 %v3919, %v4009
      %s4014 = scalar_lea.vmem %s7, 1024
      %v4015 = vld [vmem:[%s4014] sm:$0xff]
      %v4016 = vld [vmem:[%s4014 + $0x8] sm:$0xff]
      %v4017 = vld [vmem:[%s4014 + $0x10] sm:$0xff]
      %v4018 = vld [vmem:[%s4014 + $0x18] sm:$0xff]
      %v4019 = vld [vmem:[%s4014 + $0x20] sm:$0xff]
      %v4020 = vld [vmem:[%s4014 + $0x28] sm:$0xff]
      %v4021 = vld [vmem:[%s4014 + $0x30] sm:$0xff]
      %v4022 = vld [vmem:[%s4014 + $0x38] sm:$0xff]
      %v4023 = vld [vmem:[%s4014 + $0x40] sm:$0xff]
      %v4024 = vld [vmem:[%s4014 + $0x48] sm:$0xff]
      %v4025 = vld [vmem:[%s4014 + $0x50] sm:$0xff]
      %v4026 = vld [vmem:[%s4014 + $0x58] sm:$0xff]
      %v4027 = vld [vmem:[%s4014 + $0x60] sm:$0xff]
      %v4028 = vld [vmem:[%s4014 + $0x68] sm:$0xff]
      %v4029 = vld [vmem:[%s4014 + $0x70] sm:$0xff]
      %v4030 = vld [vmem:[%s4014 + $0x78] sm:$0xff]
      %4031 = vmatprep.subr.mxu0 0.0
      %4032 = vmatpush1.msra.mxu0 %v4015
      %4033 = vmatprep.subr.mxu0 0.0
      %4034 = vmatpush1.msra.mxu0 %v4016
      %4035 = vmatprep.subr.mxu0 0.0
      %4036 = vmatpush1.msra.mxu0 %v4017
      %4037 = vmatprep.subr.mxu0 0.0
      %4038 = vmatpush1.msra.mxu0 %v4018
      %4039 = vmatprep.subr.mxu0 0.0
      %4040 = vmatpush1.msra.mxu0 %v4019
      %4041 = vmatprep.subr.mxu0 0.0
      %4042 = vmatpush1.msra.mxu0 %v4020
      %4043 = vmatprep.subr.mxu0 0.0
      %4044 = vmatpush1.msra.mxu0 %v4021
      %4045 = vmatprep.subr.mxu0 0.0
      %4046 = vmatpush1.msra.mxu0 %v4022
      %4047 = vmatprep.subr.mxu0 0.0
      %4048 = vmatpush1.msra.mxu0 %v4023
      %4049 = vmatprep.subr.mxu0 0.0
      %4050 = vmatpush1.msra.mxu0 %v4024
      %4051 = vmatprep.subr.mxu0 0.0
      %4052 = vmatpush1.msra.mxu0 %v4025
      %4053 = vmatprep.subr.mxu0 0.0
      %4054 = vmatpush1.msra.mxu0 %v4026
      %4055 = vmatprep.subr.mxu0 0.0
      %4056 = vmatpush1.msra.mxu0 %v4027
      %4057 = vmatprep.subr.mxu0 0.0
      %4058 = vmatpush1.msra.mxu0 %v4028
      %4059 = vmatprep.subr.mxu0 0.0
      %4060 = vmatpush1.msra.mxu0 %v4029
      %4061 = vmatprep.subr.mxu0 0.0
      %4062 = vmatpush1.msra.mxu0 %v4030
      %4063 = vmatprep.subr.mxu0 0.0
      %4064 = vmatpush1.msra.mxu0 0.0
      %4065 = vmatprep.subr.mxu0 0.0
      %4066 = vmatpush1.msra.mxu0 0.0
      %4067 = vmatprep.subr.mxu0 0.0
      %4068 = vmatpush1.msra.mxu0 0.0
      %4069 = vmatprep.subr.mxu0 0.0
      %4070 = vmatpush1.msra.mxu0 0.0
      %4071 = vmatprep.subr.mxu0 0.0
      %4072 = vmatpush1.msra.mxu0 0.0
      %4073 = vmatprep.subr.mxu0 0.0
      %4074 = vmatpush1.msra.mxu0 0.0
      %4075 = vmatprep.subr.mxu0 0.0
      %4076 = vmatpush1.msra.mxu0 0.0
      %4077 = vmatprep.subr.mxu0 0.0
      %4078 = vmatpush1.msra.mxu0 0.0
      %4079 = vmatprep.subr.mxu0 0.0
      %4080 = vmatpush1.msra.mxu0 0.0
      %4081 = vmatprep.subr.mxu0 0.0
      %4082 = vmatpush1.msra.mxu0 0.0
      %4083 = vmatprep.subr.mxu0 0.0
      %4084 = vmatpush1.msra.mxu0 0.0
      %4085 = vmatprep.subr.mxu0 0.0
      %4086 = vmatpush1.msra.mxu0 0.0
      %4087 = vmatprep.subr.mxu0 0.0
      %4088 = vmatpush1.msra.mxu0 0.0
      %4089 = vmatprep.subr.mxu0 0.0
      %4090 = vmatpush1.msra.mxu0 0.0
      %4091 = vmatprep.subr.mxu0 0.0
      %4092 = vmatpush1.msra.mxu0 0.0
      %4093 = vmatprep.subr.mxu0 0.0
      %4094 = vmatpush1.msra.mxu0 0.0
      %4095 = vmatprep.mubr.f32.mxu0 0.0
      %4096 = vmatmul.mubr.f32.gmra.mrb[0].mxu0 %v3259
      %v4097 = vpop.f32.mrb[0].mxu0
      %v4098 = vadd.f32 0.0, %v4097
      %v4099 = vpop.f32.mrb[0].mxu0
      %4100 = vmatprep.mubr.f32.mxu0 0.0
      %4101 = vmatmul.mubr.f32.gmra.mrb[0].mxu0 %v3264
      %v4102 = vpop.f32.mrb[0].mxu0
      %v4103 = vadd.f32 0.0, %v4102
      %v4104 = vpop.f32.mrb[0].mxu0
      %4105 = vdwg.mxu0
      %v4106 = vadd.f32 %v4012, %v4098
      %v4107 = vadd.f32 %v4013, %v4103
      %v4108 = vld [vmem:[%s8] sm:$0x1]
      %v4110 = vlaneseq
      %v4111 = vshrl.u32 %v4110, 7
      %v4112 = vsub.s32 0, %v4111
      %v4113 = vrot.slane %v4108, %v4112
      %v4115 = vadd.f32 %v4106, %v4113
      %v4116 = vadd.f32 %v4107, %v4113
      %v4117 = vmax.f32 %v4115, 0.0
      %v4118 = vmax.f32 %v4116, 0.0
      %v4119 = vld [vmem:[%s10] sm:$0x1]
      %v4120 = vld [vmem:[%s9] sm:$0xff]
      %v4121 = vld [vmem:[%s9 + $0x8] sm:$0xff]
      %v4122 = vld [vmem:[%s9 + $0x10] sm:$0xff]
      %v4123 = vld [vmem:[%s9 + $0x18] sm:$0xff]
      %v4124 = vld [vmem:[%s9 + $0x20] sm:$0xff]
      %v4125 = vld [vmem:[%s9 + $0x28] sm:$0xff]
      %v4126 = vld [vmem:[%s9 + $0x30] sm:$0xff]
      %v4127 = vld [vmem:[%s9 + $0x38] sm:$0xff]
      %v4128 = vld [vmem:[%s9 + $0x40] sm:$0xff]
      %v4129 = vld [vmem:[%s9 + $0x48] sm:$0xff]
      %v4130 = vld [vmem:[%s9 + $0x50] sm:$0xff]
      %v4131 = vld [vmem:[%s9 + $0x58] sm:$0xff]
      %v4132 = vld [vmem:[%s9 + $0x60] sm:$0xff]
      %v4133 = vld [vmem:[%s9 + $0x68] sm:$0xff]
      %v4134 = vld [vmem:[%s9 + $0x70] sm:$0xff]
      %v4135 = vld [vmem:[%s9 + $0x78] sm:$0xff]
      %4136 = vmatprep.subr.mxu0 0.0
      %4137 = vmatpush1.msra.mxu0 %v4120
      %4138 = vmatprep.subr.mxu0 0.0
      %4139 = vmatpush1.msra.mxu0 %v4121
      %4140 = vmatprep.subr.mxu0 0.0
      %4141 = vmatpush1.msra.mxu0 %v4122
      %4142 = vmatprep.subr.mxu0 0.0
      %4143 = vmatpush1.msra.mxu0 %v4123
      %4144 = vmatprep.subr.mxu0 0.0
      %4145 = vmatpush1.msra.mxu0 %v4124
      %4146 = vmatprep.subr.mxu0 0.0
      %4147 = vmatpush1.msra.mxu0 %v4125
      %4148 = vmatprep.subr.mxu0 0.0
      %4149 = vmatpush1.msra.mxu0 %v4126
      %4150 = vmatprep.subr.mxu0 0.0
      %4151 = vmatpush1.msra.mxu0 %v4127
      %4152 = vmatprep.subr.mxu0 0.0
      %4153 = vmatpush1.msra.mxu0 %v4128
      %4154 = vmatprep.subr.mxu0 0.0
      %4155 = vmatpush1.msra.mxu0 %v4129
      %4156 = vmatprep.subr.mxu0 0.0
      %4157 = vmatpush1.msra.mxu0 %v4130
      %4158 = vmatprep.subr.mxu0 0.0
      %4159 = vmatpush1.msra.mxu0 %v4131
      %4160 = vmatprep.subr.mxu0 0.0
      %4161 = vmatpush1.msra.mxu0 %v4132
      %4162 = vmatprep.subr.mxu0 0.0
      %4163 = vmatpush1.msra.mxu0 %v4133
      %4164 = vmatprep.subr.mxu0 0.0
      %4165 = vmatpush1.msra.mxu0 %v4134
      %4166 = vmatprep.subr.mxu0 0.0
      %4167 = vmatpush1.msra.mxu0 %v4135
      %4168 = vmatprep.subr.mxu0 0.0
      %4169 = vmatpush1.msra.mxu0 0.0
      %4170 = vmatprep.subr.mxu0 0.0
      %4171 = vmatpush1.msra.mxu0 0.0
      %4172 = vmatprep.subr.mxu0 0.0
      %4173 = vmatpush1.msra.mxu0 0.0
      %4174 = vmatprep.subr.mxu0 0.0
      %4175 = vmatpush1.msra.mxu0 0.0
      %4176 = vmatprep.subr.mxu0 0.0
      %4177 = vmatpush1.msra.mxu0 0.0
      %4178 = vmatprep.subr.mxu0 0.0
      %4179 = vmatpush1.msra.mxu0 0.0
      %4180 = vmatprep.subr.mxu0 0.0
      %4181 = vmatpush1.msra.mxu0 0.0
      %4182 = vmatprep.subr.mxu0 0.0
      %4183 = vmatpush1.msra.mxu0 0.0
      %4184 = vmatprep.subr.mxu0 0.0
      %4185 = vmatpush1.msra.mxu0 0.0
      %4186 = vmatprep.subr.mxu0 0.0
      %4187 = vmatpush1.msra.mxu0 0.0
      %4188 = vmatprep.subr.mxu0 0.0
      %4189 = vmatpush1.msra.mxu0 0.0
      %4190 = vmatprep.subr.mxu0 0.0
      %4191 = vmatpush1.msra.mxu0 0.0
      %4192 = vmatprep.subr.mxu0 0.0
      %4193 = vmatpush1.msra.mxu0 0.0
      %4194 = vmatprep.subr.mxu0 0.0
      %4195 = vmatpush1.msra.mxu0 0.0
      %4196 = vmatprep.subr.mxu0 0.0
      %4197 = vmatpush1.msra.mxu0 0.0
      %4198 = vmatprep.subr.mxu0 0.0
      %4199 = vmatpush1.msra.mxu0 0.0
      %4200 = vmatprep.mubr.f32.mxu0 0.0
      %4201 = vmatmul.mubr.f32.gmra.mrb[0].mxu0 %v4117
      %v4202 = vpop.f32.mrb[0].mxu0
      %v4203 = vadd.f32 0.0, %v4202
      %v4204 = vpop.f32.mrb[0].mxu0
      %4205 = vdwg.mxu0
      %v4206 = vadd.f32 %v4119, %v4203
      %s4207 = scalar_lea.vmem %s9, 128
      %v4208 = vld [vmem:[%s4207] sm:$0xff]
      %v4209 = vld [vmem:[%s4207 + $0x8] sm:$0xff]
      %v4210 = vld [vmem:[%s4207 + $0x10] sm:$0xff]
      %v4211 = vld [vmem:[%s4207 + $0x18] sm:$0xff]
      %v4212 = vld [vmem:[%s4207 + $0x20] sm:$0xff]
      %v4213 = vld [vmem:[%s4207 + $0x28] sm:$0xff]
      %v4214 = vld [vmem:[%s4207 + $0x30] sm:$0xff]
      %v4215 = vld [vmem:[%s4207 + $0x38] sm:$0xff]
      %v4216 = vld [vmem:[%s4207 + $0x40] sm:$0xff]
      %v4217 = vld [vmem:[%s4207 + $0x48] sm:$0xff]
      %v4218 = vld [vmem:[%s4207 + $0x50] sm:$0xff]
      %v4219 = vld [vmem:[%s4207 + $0x58] sm:$0xff]
      %v4220 = vld [vmem:[%s4207 + $0x60] sm:$0xff]
      %v4221 = vld [vmem:[%s4207 + $0x68] sm:$0xff]
      %v4222 = vld [vmem:[%s4207 + $0x70] sm:$0xff]
      %v4223 = vld [vmem:[%s4207 + $0x78] sm:$0xff]
      %v4225 = vrot.slane %v4117, 1
      %4227 = vmatprep.subr.mxu0 0.0
      %4228 = vmatpush1.msra.mxu0 %v4208
      %4229 = vmatprep.subr.mxu0 0.0
      %4230 = vmatpush1.msra.mxu0 %v4209
      %4231 = vmatprep.subr.mxu0 0.0
      %4232 = vmatpush1.msra.mxu0 %v4210
      %4233 = vmatprep.subr.mxu0 0.0
      %4234 = vmatpush1.msra.mxu0 %v4211
      %4235 = vmatprep.subr.mxu0 0.0
      %4236 = vmatpush1.msra.mxu0 %v4212
      %4237 = vmatprep.subr.mxu0 0.0
      %4238 = vmatpush1.msra.mxu0 %v4213
      %4239 = vmatprep.subr.mxu0 0.0
      %4240 = vmatpush1.msra.mxu0 %v4214
      %4241 = vmatprep.subr.mxu0 0.0
      %4242 = vmatpush1.msra.mxu0 %v4215
      %4243 = vmatprep.subr.mxu0 0.0
      %4244 = vmatpush1.msra.mxu0 %v4216
      %4245 = vmatprep.subr.mxu0 0.0
      %4246 = vmatpush1.msra.mxu0 %v4217
      %4247 = vmatprep.subr.mxu0 0.0
      %4248 = vmatpush1.msra.mxu0 %v4218
      %4249 = vmatprep.subr.mxu0 0.0
      %4250 = vmatpush1.msra.mxu0 %v4219
      %4251 = vmatprep.subr.mxu0 0.0
      %4252 = vmatpush1.msra.mxu0 %v4220
      %4253 = vmatprep.subr.mxu0 0.0
      %4254 = vmatpush1.msra.mxu0 %v4221
      %4255 = vmatprep.subr.mxu0 0.0
      %4256 = vmatpush1.msra.mxu0 %v4222
      %4257 = vmatprep.subr.mxu0 0.0
      %4258 = vmatpush1.msra.mxu0 %v4223
      %4259 = vmatprep.subr.mxu0 0.0
      %4260 = vmatpush1.msra.mxu0 0.0
      %4261 = vmatprep.subr.mxu0 0.0
      %4262 = vmatpush1.msra.mxu0 0.0
      %4263 = vmatprep.subr.mxu0 0.0
      %4264 = vmatpush1.msra.mxu0 0.0
      %4265 = vmatprep.subr.mxu0 0.0
      %4266 = vmatpush1.msra.mxu0 0.0
      %4267 = vmatprep.subr.mxu0 0.0
      %4268 = vmatpush1.msra.mxu0 0.0
      %4269 = vmatprep.subr.mxu0 0.0
      %4270 = vmatpush1.msra.mxu0 0.0
      %4271 = vmatprep.subr.mxu0 0.0
      %4272 = vmatpush1.msra.mxu0 0.0
      %4273 = vmatprep.subr.mxu0 0.0
      %4274 = vmatpush1.msra.mxu0 0.0
      %4275 = vmatprep.subr.mxu0 0.0
      %4276 = vmatpush1.msra.mxu0 0.0
      %4277 = vmatprep.subr.mxu0 0.0
      %4278 = vmatpush1.msra.mxu0 0.0
      %4279 = vmatprep.subr.mxu0 0.0
      %4280 = vmatpush1.msra.mxu0 0.0
      %4281 = vmatprep.subr.mxu0 0.0
      %4282 = vmatpush1.msra.mxu0 0.0
      %4283 = vmatprep.subr.mxu0 0.0
      %4284 = vmatpush1.msra.mxu0 0.0
      %4285 = vmatprep.subr.mxu0 0.0
      %4286 = vmatpush1.msra.mxu0 0.0
      %4287 = vmatprep.subr.mxu0 0.0
      %4288 = vmatpush1.msra.mxu0 0.0
      %4289 = vmatprep.subr.mxu0 0.0
      %4290 = vmatpush1.msra.mxu0 0.0
      %4291 = vmatprep.mubr.f32.mxu0 0.0
      %4292 = vmatmul.mubr.f32.gmra.mrb[0].mxu0 %v4225
      %v4293 = vpop.f32.mrb[0].mxu0
      %v4294 = vadd.f32 0.0, %v4293
      %v4295 = vpop.f32.mrb[0].mxu0
      %4296 = vdwg.mxu0
      %v4297 = vadd.f32 %v4206, %v4294
      %s4298 = scalar_lea.vmem %s9, 256
      %v4299 = vld [vmem:[%s4298] sm:$0xff]
      %v4300 = vld [vmem:[%s4298 + $0x8] sm:$0xff]
      %v4301 = vld [vmem:[%s4298 + $0x10] sm:$0xff]
      %v4302 = vld [vmem:[%s4298 + $0x18] sm:$0xff]
      %v4303 = vld [vmem:[%s4298 + $0x20] sm:$0xff]
      %v4304 = vld [vmem:[%s4298 + $0x28] sm:$0xff]
      %v4305 = vld [vmem:[%s4298 + $0x30] sm:$0xff]
      %v4306 = vld [vmem:[%s4298 + $0x38] sm:$0xff]
      %v4307 = vld [vmem:[%s4298 + $0x40] sm:$0xff]
      %v4308 = vld [vmem:[%s4298 + $0x48] sm:$0xff]
      %v4309 = vld [vmem:[%s4298 + $0x50] sm:$0xff]
      %v4310 = vld [vmem:[%s4298 + $0x58] sm:$0xff]
      %v4311 = vld [vmem:[%s4298 + $0x60] sm:$0xff]
      %v4312 = vld [vmem:[%s4298 + $0x68] sm:$0xff]
      %v4313 = vld [vmem:[%s4298 + $0x70] sm:$0xff]
      %v4314 = vld [vmem:[%s4298 + $0x78] sm:$0xff]
      %v4315 = vrot.slane %v4117, 2
      %4317 = vmatprep.subr.mxu0 0.0
      %4318 = vmatpush1.msra.mxu0 %v4299
      %4319 = vmatprep.subr.mxu0 0.0
      %4320 = vmatpush1.msra.mxu0 %v4300
      %4321 = vmatprep.subr.mxu0 0.0
      %4322 = vmatpush1.msra.mxu0 %v4301
      %4323 = vmatprep.subr.mxu0 0.0
      %4324 = vmatpush1.msra.mxu0 %v4302
      %4325 = vmatprep.subr.mxu0 0.0
      %4326 = vmatpush1.msra.mxu0 %v4303
      %4327 = vmatprep.subr.mxu0 0.0
      %4328 = vmatpush1.msra.mxu0 %v4304
      %4329 = vmatprep.subr.mxu0 0.0
      %4330 = vmatpush1.msra.mxu0 %v4305
      %4331 = vmatprep.subr.mxu0 0.0
      %4332 = vmatpush1.msra.mxu0 %v4306
      %4333 = vmatprep.subr.mxu0 0.0
      %4334 = vmatpush1.msra.mxu0 %v4307
      %4335 = vmatprep.subr.mxu0 0.0
      %4336 = vmatpush1.msra.mxu0 %v4308
      %4337 = vmatprep.subr.mxu0 0.0
      %4338 = vmatpush1.msra.mxu0 %v4309
      %4339 = vmatprep.subr.mxu0 0.0
      %4340 = vmatpush1.msra.mxu0 %v4310
      %4341 = vmatprep.subr.mxu0 0.0
      %4342 = vmatpush1.msra.mxu0 %v4311
      %4343 = vmatprep.subr.mxu0 0.0
      %4344 = vmatpush1.msra.mxu0 %v4312
      %4345 = vmatprep.subr.mxu0 0.0
      %4346 = vmatpush1.msra.mxu0 %v4313
      %4347 = vmatprep.subr.mxu0 0.0
      %4348 = vmatpush1.msra.mxu0 %v4314
      %4349 = vmatprep.subr.mxu0 0.0
      %4350 = vmatpush1.msra.mxu0 0.0
      %4351 = vmatprep.subr.mxu0 0.0
      %4352 = vmatpush1.msra.mxu0 0.0
      %4353 = vmatprep.subr.mxu0 0.0
      %4354 = vmatpush1.msra.mxu0 0.0
      %4355 = vmatprep.subr.mxu0 0.0
      %4356 = vmatpush1.msra.mxu0 0.0
      %4357 = vmatprep.subr.mxu0 0.0
      %4358 = vmatpush1.msra.mxu0 0.0
      %4359 = vmatprep.subr.mxu0 0.0
      %4360 = vmatpush1.msra.mxu0 0.0
      %4361 = vmatprep.subr.mxu0 0.0
      %4362 = vmatpush1.msra.mxu0 0.0
      %4363 = vmatprep.subr.mxu0 0.0
      %4364 = vmatpush1.msra.mxu0 0.0
      %4365 = vmatprep.subr.mxu0 0.0
      %4366 = vmatpush1.msra.mxu0 0.0
      %4367 = vmatprep.subr.mxu0 0.0
      %4368 = vmatpush1.msra.mxu0 0.0
      %4369 = vmatprep.subr.mxu0 0.0
      %4370 = vmatpush1.msra.mxu0 0.0
      %4371 = vmatprep.subr.mxu0 0.0
      %4372 = vmatpush1.msra.mxu0 0.0
      %4373 = vmatprep.subr.mxu0 0.0
      %4374 = vmatpush1.msra.mxu0 0.0
      %4375 = vmatprep.subr.mxu0 0.0
      %4376 = vmatpush1.msra.mxu0 0.0
      %4377 = vmatprep.subr.mxu0 0.0
      %4378 = vmatpush1.msra.mxu0 0.0
      %4379 = vmatprep.subr.mxu0 0.0
      %4380 = vmatpush1.msra.mxu0 0.0
      %4381 = vmatprep.mubr.f32.mxu0 0.0
      %4382 = vmatmul.mubr.f32.gmra.mrb[0].mxu0 %v4315
      %v4383 = vpop.f32.mrb[0].mxu0
      %v4384 = vadd.f32 0.0, %v4383
      %v4385 = vpop.f32.mrb[0].mxu0
      %4386 = vdwg.mxu0
      %v4387 = vadd.f32 %v4297, %v4384
      %s4388 = scalar_lea.vmem %s9, 384
      %v4389 = vld [vmem:[%s4388] sm:$0xff]
      %v4390 = vld [vmem:[%s4388 + $0x8] sm:$0xff]
      %v4391 = vld [vmem:[%s4388 + $0x10] sm:$0xff]
      %v4392 = vld [vmem:[%s4388 + $0x18] sm:$0xff]
      %v4393 = vld [vmem:[%s4388 + $0x20] sm:$0xff]
      %v4394 = vld [vmem:[%s4388 + $0x28] sm:$0xff]
      %v4395 = vld [vmem:[%s4388 + $0x30] sm:$0xff]
      %v4396 = vld [vmem:[%s4388 + $0x38] sm:$0xff]
      %v4397 = vld [vmem:[%s4388 + $0x40] sm:$0xff]
      %v4398 = vld [vmem:[%s4388 + $0x48] sm:$0xff]
      %v4399 = vld [vmem:[%s4388 + $0x50] sm:$0xff]
      %v4400 = vld [vmem:[%s4388 + $0x58] sm:$0xff]
      %v4401 = vld [vmem:[%s4388 + $0x60] sm:$0xff]
      %v4402 = vld [vmem:[%s4388 + $0x68] sm:$0xff]
      %v4403 = vld [vmem:[%s4388 + $0x70] sm:$0xff]
      %v4404 = vld [vmem:[%s4388 + $0x78] sm:$0xff]
      %v4405 = vrot.slane %v4117, 3
      %4407 = vmatprep.subr.mxu0 0.0
      %4408 = vmatpush1.msra.mxu0 %v4389
      %4409 = vmatprep.subr.mxu0 0.0
      %4410 = vmatpush1.msra.mxu0 %v4390
      %4411 = vmatprep.subr.mxu0 0.0
      %4412 = vmatpush1.msra.mxu0 %v4391
      %4413 = vmatprep.subr.mxu0 0.0
      %4414 = vmatpush1.msra.mxu0 %v4392
      %4415 = vmatprep.subr.mxu0 0.0
      %4416 = vmatpush1.msra.mxu0 %v4393
      %4417 = vmatprep.subr.mxu0 0.0
      %4418 = vmatpush1.msra.mxu0 %v4394
      %4419 = vmatprep.subr.mxu0 0.0
      %4420 = vmatpush1.msra.mxu0 %v4395
      %4421 = vmatprep.subr.mxu0 0.0
      %4422 = vmatpush1.msra.mxu0 %v4396
      %4423 = vmatprep.subr.mxu0 0.0
      %4424 = vmatpush1.msra.mxu0 %v4397
      %4425 = vmatprep.subr.mxu0 0.0
      %4426 = vmatpush1.msra.mxu0 %v4398
      %4427 = vmatprep.subr.mxu0 0.0
      %4428 = vmatpush1.msra.mxu0 %v4399
      %4429 = vmatprep.subr.mxu0 0.0
      %4430 = vmatpush1.msra.mxu0 %v4400
      %4431 = vmatprep.subr.mxu0 0.0
      %4432 = vmatpush1.msra.mxu0 %v4401
      %4433 = vmatprep.subr.mxu0 0.0
      %4434 = vmatpush1.msra.mxu0 %v4402
      %4435 = vmatprep.subr.mxu0 0.0
      %4436 = vmatpush1.msra.mxu0 %v4403
      %4437 = vmatprep.subr.mxu0 0.0
      %4438 = vmatpush1.msra.mxu0 %v4404
      %4439 = vmatprep.subr.mxu0 0.0
      %4440 = vmatpush1.msra.mxu0 0.0
      %4441 = vmatprep.subr.mxu0 0.0
      %4442 = vmatpush1.msra.mxu0 0.0
      %4443 = vmatprep.subr.mxu0 0.0
      %4444 = vmatpush1.msra.mxu0 0.0
      %4445 = vmatprep.subr.mxu0 0.0
      %4446 = vmatpush1.msra.mxu0 0.0
      %4447 = vmatprep.subr.mxu0 0.0
      %4448 = vmatpush1.msra.mxu0 0.0
      %4449 = vmatprep.subr.mxu0 0.0
      %4450 = vmatpush1.msra.mxu0 0.0
      %4451 = vmatprep.subr.mxu0 0.0
      %4452 = vmatpush1.msra.mxu0 0.0
      %4453 = vmatprep.subr.mxu0 0.0
      %4454 = vmatpush1.msra.mxu0 0.0
      %4455 = vmatprep.subr.mxu0 0.0
      %4456 = vmatpush1.msra.mxu0 0.0
      %4457 = vmatprep.subr.mxu0 0.0
      %4458 = vmatpush1.msra.mxu0 0.0
      %4459 = vmatprep.subr.mxu0 0.0
      %4460 = vmatpush1.msra.mxu0 0.0
      %4461 = vmatprep.subr.mxu0 0.0
      %4462 = vmatpush1.msra.mxu0 0.0
      %4463 = vmatprep.subr.mxu0 0.0
      %4464 = vmatpush1.msra.mxu0 0.0
      %4465 = vmatprep.subr.mxu0 0.0
      %4466 = vmatpush1.msra.mxu0 0.0
      %4467 = vmatprep.subr.mxu0 0.0
      %4468 = vmatpush1.msra.mxu0 0.0
      %4469 = vmatprep.subr.mxu0 0.0
      %4470 = vmatpush1.msra.mxu0 0.0
      %4471 = vmatprep.mubr.f32.mxu0 0.0
      %4472 = vmatmul.mubr.f32.gmra.mrb[0].mxu0 %v4405
      %v4473 = vpop.f32.mrb[0].mxu0
      %v4474 = vadd.f32 0.0, %v4473
      %v4475 = vpop.f32.mrb[0].mxu0
      %4476 = vdwg.mxu0
      %v4477 = vadd.f32 %v4387, %v4474
      %s4478 = scalar_lea.vmem %s9, 512
      %v4479 = vld [vmem:[%s4478] sm:$0xff]
      %v4480 = vld [vmem:[%s4478 + $0x8] sm:$0xff]
      %v4481 = vld [vmem:[%s4478 + $0x10] sm:$0xff]
      %v4482 = vld [vmem:[%s4478 + $0x18] sm:$0xff]
      %v4483 = vld [vmem:[%s4478 + $0x20] sm:$0xff]
      %v4484 = vld [vmem:[%s4478 + $0x28] sm:$0xff]
      %v4485 = vld [vmem:[%s4478 + $0x30] sm:$0xff]
      %v4486 = vld [vmem:[%s4478 + $0x38] sm:$0xff]
      %v4487 = vld [vmem:[%s4478 + $0x40] sm:$0xff]
      %v4488 = vld [vmem:[%s4478 + $0x48] sm:$0xff]
      %v4489 = vld [vmem:[%s4478 + $0x50] sm:$0xff]
      %v4490 = vld [vmem:[%s4478 + $0x58] sm:$0xff]
      %v4491 = vld [vmem:[%s4478 + $0x60] sm:$0xff]
      %v4492 = vld [vmem:[%s4478 + $0x68] sm:$0xff]
      %v4493 = vld [vmem:[%s4478 + $0x70] sm:$0xff]
      %v4494 = vld [vmem:[%s4478 + $0x78] sm:$0xff]
      %v4495 = vrot.slane %v4117, 4
      %4497 = vmatprep.subr.mxu0 0.0
      %4498 = vmatpush1.msra.mxu0 %v4479
      %4499 = vmatprep.subr.mxu0 0.0
      %4500 = vmatpush1.msra.mxu0 %v4480
      %4501 = vmatprep.subr.mxu0 0.0
      %4502 = vmatpush1.msra.mxu0 %v4481
      %4503 = vmatprep.subr.mxu0 0.0
      %4504 = vmatpush1.msra.mxu0 %v4482
      %4505 = vmatprep.subr.mxu0 0.0
      %4506 = vmatpush1.msra.mxu0 %v4483
      %4507 = vmatprep.subr.mxu0 0.0
      %4508 = vmatpush1.msra.mxu0 %v4484
      %4509 = vmatprep.subr.mxu0 0.0
      %4510 = vmatpush1.msra.mxu0 %v4485
      %4511 = vmatprep.subr.mxu0 0.0
      %4512 = vmatpush1.msra.mxu0 %v4486
      %4513 = vmatprep.subr.mxu0 0.0
      %4514 = vmatpush1.msra.mxu0 %v4487
      %4515 = vmatprep.subr.mxu0 0.0
      %4516 = vmatpush1.msra.mxu0 %v4488
      %4517 = vmatprep.subr.mxu0 0.0
      %4518 = vmatpush1.msra.mxu0 %v4489
      %4519 = vmatprep.subr.mxu0 0.0
      %4520 = vmatpush1.msra.mxu0 %v4490
      %4521 = vmatprep.subr.mxu0 0.0
      %4522 = vmatpush1.msra.mxu0 %v4491
      %4523 = vmatprep.subr.mxu0 0.0
      %4524 = vmatpush1.msra.mxu0 %v4492
      %4525 = vmatprep.subr.mxu0 0.0
      %4526 = vmatpush1.msra.mxu0 %v4493
      %4527 = vmatprep.subr.mxu0 0.0
      %4528 = vmatpush1.msra.mxu0 %v4494
      %4529 = vmatprep.subr.mxu0 0.0
      %4530 = vmatpush1.msra.mxu0 0.0
      %4531 = vmatprep.subr.mxu0 0.0
      %4532 = vmatpush1.msra.mxu0 0.0
      %4533 = vmatprep.subr.mxu0 0.0
      %4534 = vmatpush1.msra.mxu0 0.0
      %4535 = vmatprep.subr.mxu0 0.0
      %4536 = vmatpush1.msra.mxu0 0.0
      %4537 = vmatprep.subr.mxu0 0.0
      %4538 = vmatpush1.msra.mxu0 0.0
      %4539 = vmatprep.subr.mxu0 0.0
      %4540 = vmatpush1.msra.mxu0 0.0
      %4541 = vmatprep.subr.mxu0 0.0
      %4542 = vmatpush1.msra.mxu0 0.0
      %4543 = vmatprep.subr.mxu0 0.0
      %4544 = vmatpush1.msra.mxu0 0.0
      %4545 = vmatprep.subr.mxu0 0.0
      %4546 = vmatpush1.msra.mxu0 0.0
      %4547 = vmatprep.subr.mxu0 0.0
      %4548 = vmatpush1.msra.mxu0 0.0
      %4549 = vmatprep.subr.mxu0 0.0
      %4550 = vmatpush1.msra.mxu0 0.0
      %4551 = vmatprep.subr.mxu0 0.0
      %4552 = vmatpush1.msra.mxu0 0.0
      %4553 = vmatprep.subr.mxu0 0.0
      %4554 = vmatpush1.msra.mxu0 0.0
      %4555 = vmatprep.subr.mxu0 0.0
      %4556 = vmatpush1.msra.mxu0 0.0
      %4557 = vmatprep.subr.mxu0 0.0
      %4558 = vmatpush1.msra.mxu0 0.0
      %4559 = vmatprep.subr.mxu0 0.0
      %4560 = vmatpush1.msra.mxu0 0.0
      %4561 = vmatprep.mubr.f32.mxu0 0.0
      %4562 = vmatmul.mubr.f32.gmra.mrb[0].mxu0 %v4495
      %v4563 = vpop.f32.mrb[0].mxu0
      %v4564 = vadd.f32 0.0, %v4563
      %v4565 = vpop.f32.mrb[0].mxu0
      %4566 = vdwg.mxu0
      %v4567 = vadd.f32 %v4477, %v4564
      %s4568 = scalar_lea.vmem %s9, 640
      %v4569 = vld [vmem:[%s4568] sm:$0xff]
      %v4570 = vld [vmem:[%s4568 + $0x8] sm:$0xff]
      %v4571 = vld [vmem:[%s4568 + $0x10] sm:$0xff]
      %v4572 = vld [vmem:[%s4568 + $0x18] sm:$0xff]
      %v4573 = vld [vmem:[%s4568 + $0x20] sm:$0xff]
      %v4574 = vld [vmem:[%s4568 + $0x28] sm:$0xff]
      %v4575 = vld [vmem:[%s4568 + $0x30] sm:$0xff]
      %v4576 = vld [vmem:[%s4568 + $0x38] sm:$0xff]
      %v4577 = vld [vmem:[%s4568 + $0x40] sm:$0xff]
      %v4578 = vld [vmem:[%s4568 + $0x48] sm:$0xff]
      %v4579 = vld [vmem:[%s4568 + $0x50] sm:$0xff]
      %v4580 = vld [vmem:[%s4568 + $0x58] sm:$0xff]
      %v4581 = vld [vmem:[%s4568 + $0x60] sm:$0xff]
      %v4582 = vld [vmem:[%s4568 + $0x68] sm:$0xff]
      %v4583 = vld [vmem:[%s4568 + $0x70] sm:$0xff]
      %v4584 = vld [vmem:[%s4568 + $0x78] sm:$0xff]
      %v4585 = vrot.slane %v4117, 5
      %4587 = vmatprep.subr.mxu0 0.0
      %4588 = vmatpush1.msra.mxu0 %v4569
      %4589 = vmatprep.subr.mxu0 0.0
      %4590 = vmatpush1.msra.mxu0 %v4570
      %4591 = vmatprep.subr.mxu0 0.0
      %4592 = vmatpush1.msra.mxu0 %v4571
      %4593 = vmatprep.subr.mxu0 0.0
      %4594 = vmatpush1.msra.mxu0 %v4572
      %4595 = vmatprep.subr.mxu0 0.0
      %4596 = vmatpush1.msra.mxu0 %v4573
      %4597 = vmatprep.subr.mxu0 0.0
      %4598 = vmatpush1.msra.mxu0 %v4574
      %4599 = vmatprep.subr.mxu0 0.0
      %4600 = vmatpush1.msra.mxu0 %v4575
      %4601 = vmatprep.subr.mxu0 0.0
      %4602 = vmatpush1.msra.mxu0 %v4576
      %4603 = vmatprep.subr.mxu0 0.0
      %4604 = vmatpush1.msra.mxu0 %v4577
      %4605 = vmatprep.subr.mxu0 0.0
      %4606 = vmatpush1.msra.mxu0 %v4578
      %4607 = vmatprep.subr.mxu0 0.0
      %4608 = vmatpush1.msra.mxu0 %v4579
      %4609 = vmatprep.subr.mxu0 0.0
      %4610 = vmatpush1.msra.mxu0 %v4580
      %4611 = vmatprep.subr.mxu0 0.0
      %4612 = vmatpush1.msra.mxu0 %v4581
      %4613 = vmatprep.subr.mxu0 0.0
      %4614 = vmatpush1.msra.mxu0 %v4582
      %4615 = vmatprep.subr.mxu0 0.0
      %4616 = vmatpush1.msra.mxu0 %v4583
      %4617 = vmatprep.subr.mxu0 0.0
      %4618 = vmatpush1.msra.mxu0 %v4584
      %4619 = vmatprep.subr.mxu0 0.0
      %4620 = vmatpush1.msra.mxu0 0.0
      %4621 = vmatprep.subr.mxu0 0.0
      %4622 = vmatpush1.msra.mxu0 0.0
      %4623 = vmatprep.subr.mxu0 0.0
      %4624 = vmatpush1.msra.mxu0 0.0
      %4625 = vmatprep.subr.mxu0 0.0
      %4626 = vmatpush1.msra.mxu0 0.0
      %4627 = vmatprep.subr.mxu0 0.0
      %4628 = vmatpush1.msra.mxu0 0.0
      %4629 = vmatprep.subr.mxu0 0.0
      %4630 = vmatpush1.msra.mxu0 0.0
      %4631 = vmatprep.subr.mxu0 0.0
      %4632 = vmatpush1.msra.mxu0 0.0
      %4633 = vmatprep.subr.mxu0 0.0
      %4634 = vmatpush1.msra.mxu0 0.0
      %4635 = vmatprep.subr.mxu0 0.0
      %4636 = vmatpush1.msra.mxu0 0.0
      %4637 = vmatprep.subr.mxu0 0.0
      %4638 = vmatpush1.msra.mxu0 0.0
      %4639 = vmatprep.subr.mxu0 0.0
      %4640 = vmatpush1.msra.mxu0 0.0
      %4641 = vmatprep.subr.mxu0 0.0
      %4642 = vmatpush1.msra.mxu0 0.0
      %4643 = vmatprep.subr.mxu0 0.0
      %4644 = vmatpush1.msra.mxu0 0.0
      %4645 = vmatprep.subr.mxu0 0.0
      %4646 = vmatpush1.msra.mxu0 0.0
      %4647 = vmatprep.subr.mxu0 0.0
      %4648 = vmatpush1.msra.mxu0 0.0
      %4649 = vmatprep.subr.mxu0 0.0
      %4650 = vmatpush1.msra.mxu0 0.0
      %4651 = vmatprep.mubr.f32.mxu0 0.0
      %4652 = vmatmul.mubr.f32.gmra.mrb[0].mxu0 %v4585
      %v4653 = vpop.f32.mrb[0].mxu0
      %v4654 = vadd.f32 0.0, %v4653
      %v4655 = vpop.f32.mrb[0].mxu0
      %4656 = vdwg.mxu0
      %v4657 = vadd.f32 %v4567, %v4654
      %s4658 = scalar_lea.vmem %s9, 768
      %v4659 = vld [vmem:[%s4658] sm:$0xff]
      %v4660 = vld [vmem:[%s4658 + $0x8] sm:$0xff]
      %v4661 = vld [vmem:[%s4658 + $0x10] sm:$0xff]
      %v4662 = vld [vmem:[%s4658 + $0x18] sm:$0xff]
      %v4663 = vld [vmem:[%s4658 + $0x20] sm:$0xff]
      %v4664 = vld [vmem:[%s4658 + $0x28] sm:$0xff]
      %v4665 = vld [vmem:[%s4658 + $0x30] sm:$0xff]
      %v4666 = vld [vmem:[%s4658 + $0x38] sm:$0xff]
      %v4667 = vld [vmem:[%s4658 + $0x40] sm:$0xff]
      %v4668 = vld [vmem:[%s4658 + $0x48] sm:$0xff]
      %v4669 = vld [vmem:[%s4658 + $0x50] sm:$0xff]
      %v4670 = vld [vmem:[%s4658 + $0x58] sm:$0xff]
      %v4671 = vld [vmem:[%s4658 + $0x60] sm:$0xff]
      %v4672 = vld [vmem:[%s4658 + $0x68] sm:$0xff]
      %v4673 = vld [vmem:[%s4658 + $0x70] sm:$0xff]
      %v4674 = vld [vmem:[%s4658 + $0x78] sm:$0xff]
      %v4675 = vrot.slane %v4117, 6
      %4677 = vmatprep.subr.mxu0 0.0
      %4678 = vmatpush1.msra.mxu0 %v4659
      %4679 = vmatprep.subr.mxu0 0.0
      %4680 = vmatpush1.msra.mxu0 %v4660
      %4681 = vmatprep.subr.mxu0 0.0
      %4682 = vmatpush1.msra.mxu0 %v4661
      %4683 = vmatprep.subr.mxu0 0.0
      %4684 = vmatpush1.msra.mxu0 %v4662
      %4685 = vmatprep.subr.mxu0 0.0
      %4686 = vmatpush1.msra.mxu0 %v4663
      %4687 = vmatprep.subr.mxu0 0.0
      %4688 = vmatpush1.msra.mxu0 %v4664
      %4689 = vmatprep.subr.mxu0 0.0
      %4690 = vmatpush1.msra.mxu0 %v4665
      %4691 = vmatprep.subr.mxu0 0.0
      %4692 = vmatpush1.msra.mxu0 %v4666
      %4693 = vmatprep.subr.mxu0 0.0
      %4694 = vmatpush1.msra.mxu0 %v4667
      %4695 = vmatprep.subr.mxu0 0.0
      %4696 = vmatpush1.msra.mxu0 %v4668
      %4697 = vmatprep.subr.mxu0 0.0
      %4698 = vmatpush1.msra.mxu0 %v4669
      %4699 = vmatprep.subr.mxu0 0.0
      %4700 = vmatpush1.msra.mxu0 %v4670
      %4701 = vmatprep.subr.mxu0 0.0
      %4702 = vmatpush1.msra.mxu0 %v4671
      %4703 = vmatprep.subr.mxu0 0.0
      %4704 = vmatpush1.msra.mxu0 %v4672
      %4705 = vmatprep.subr.mxu0 0.0
      %4706 = vmatpush1.msra.mxu0 %v4673
      %4707 = vmatprep.subr.mxu0 0.0
      %4708 = vmatpush1.msra.mxu0 %v4674
      %4709 = vmatprep.subr.mxu0 0.0
      %4710 = vmatpush1.msra.mxu0 0.0
      %4711 = vmatprep.subr.mxu0 0.0
      %4712 = vmatpush1.msra.mxu0 0.0
      %4713 = vmatprep.subr.mxu0 0.0
      %4714 = vmatpush1.msra.mxu0 0.0
      %4715 = vmatprep.subr.mxu0 0.0
      %4716 = vmatpush1.msra.mxu0 0.0
      %4717 = vmatprep.subr.mxu0 0.0
      %4718 = vmatpush1.msra.mxu0 0.0
      %4719 = vmatprep.subr.mxu0 0.0
      %4720 = vmatpush1.msra.mxu0 0.0
      %4721 = vmatprep.subr.mxu0 0.0
      %4722 = vmatpush1.msra.mxu0 0.0
      %4723 = vmatprep.subr.mxu0 0.0
      %4724 = vmatpush1.msra.mxu0 0.0
      %4725 = vmatprep.subr.mxu0 0.0
      %4726 = vmatpush1.msra.mxu0 0.0
      %4727 = vmatprep.subr.mxu0 0.0
      %4728 = vmatpush1.msra.mxu0 0.0
      %4729 = vmatprep.subr.mxu0 0.0
      %4730 = vmatpush1.msra.mxu0 0.0
      %4731 = vmatprep.subr.mxu0 0.0
      %4732 = vmatpush1.msra.mxu0 0.0
      %4733 = vmatprep.subr.mxu0 0.0
      %4734 = vmatpush1.msra.mxu0 0.0
      %4735 = vmatprep.subr.mxu0 0.0
      %4736 = vmatpush1.msra.mxu0 0.0
      %4737 = vmatprep.subr.mxu0 0.0
      %4738 = vmatpush1.msra.mxu0 0.0
      %4739 = vmatprep.subr.mxu0 0.0
      %4740 = vmatpush1.msra.mxu0 0.0
      %4741 = vmatprep.mubr.f32.mxu0 0.0
      %4742 = vmatmul.mubr.f32.gmra.mrb[0].mxu0 %v4675
      %v4743 = vpop.f32.mrb[0].mxu0
      %v4744 = vadd.f32 0.0, %v4743
      %v4745 = vpop.f32.mrb[0].mxu0
      %4746 = vdwg.mxu0
      %v4747 = vadd.f32 %v4657, %v4744
      %s4748 = scalar_lea.vmem %s9, 896
      %v4749 = vld [vmem:[%s4748] sm:$0xff]
      %v4750 = vld [vmem:[%s4748 + $0x8] sm:$0xff]
      %v4751 = vld [vmem:[%s4748 + $0x10] sm:$0xff]
      %v4752 = vld [vmem:[%s4748 + $0x18] sm:$0xff]
      %v4753 = vld [vmem:[%s4748 + $0x20] sm:$0xff]
      %v4754 = vld [vmem:[%s4748 + $0x28] sm:$0xff]
      %v4755 = vld [vmem:[%s4748 + $0x30] sm:$0xff]
      %v4756 = vld [vmem:[%s4748 + $0x38] sm:$0xff]
      %v4757 = vld [vmem:[%s4748 + $0x40] sm:$0xff]
      %v4758 = vld [vmem:[%s4748 + $0x48] sm:$0xff]
      %v4759 = vld [vmem:[%s4748 + $0x50] sm:$0xff]
      %v4760 = vld [vmem:[%s4748 + $0x58] sm:$0xff]
      %v4761 = vld [vmem:[%s4748 + $0x60] sm:$0xff]
      %v4762 = vld [vmem:[%s4748 + $0x68] sm:$0xff]
      %v4763 = vld [vmem:[%s4748 + $0x70] sm:$0xff]
      %v4764 = vld [vmem:[%s4748 + $0x78] sm:$0xff]
      %v4765 = vrot.slane %v4117, 7
      %4767 = vmatprep.subr.mxu0 0.0
      %4768 = vmatpush1.msra.mxu0 %v4749
      %4769 = vmatprep.subr.mxu0 0.0
      %4770 = vmatpush1.msra.mxu0 %v4750
      %4771 = vmatprep.subr.mxu0 0.0
      %4772 = vmatpush1.msra.mxu0 %v4751
      %4773 = vmatprep.subr.mxu0 0.0
      %4774 = vmatpush1.msra.mxu0 %v4752
      %4775 = vmatprep.subr.mxu0 0.0
      %4776 = vmatpush1.msra.mxu0 %v4753
      %4777 = vmatprep.subr.mxu0 0.0
      %4778 = vmatpush1.msra.mxu0 %v4754
      %4779 = vmatprep.subr.mxu0 0.0
      %4780 = vmatpush1.msra.mxu0 %v4755
      %4781 = vmatprep.subr.mxu0 0.0
      %4782 = vmatpush1.msra.mxu0 %v4756
      %4783 = vmatprep.subr.mxu0 0.0
      %4784 = vmatpush1.msra.mxu0 %v4757
      %4785 = vmatprep.subr.mxu0 0.0
      %4786 = vmatpush1.msra.mxu0 %v4758
      %4787 = vmatprep.subr.mxu0 0.0
      %4788 = vmatpush1.msra.mxu0 %v4759
      %4789 = vmatprep.subr.mxu0 0.0
      %4790 = vmatpush1.msra.mxu0 %v4760
      %4791 = vmatprep.subr.mxu0 0.0
      %4792 = vmatpush1.msra.mxu0 %v4761
      %4793 = vmatprep.subr.mxu0 0.0
      %4794 = vmatpush1.msra.mxu0 %v4762
      %4795 = vmatprep.subr.mxu0 0.0
      %4796 = vmatpush1.msra.mxu0 %v4763
      %4797 = vmatprep.subr.mxu0 0.0
      %4798 = vmatpush1.msra.mxu0 %v4764
      %4799 = vmatprep.subr.mxu0 0.0
      %4800 = vmatpush1.msra.mxu0 0.0
      %4801 = vmatprep.subr.mxu0 0.0
      %4802 = vmatpush1.msra.mxu0 0.0
      %4803 = vmatprep.subr.mxu0 0.0
      %4804 = vmatpush1.msra.mxu0 0.0
      %4805 = vmatprep.subr.mxu0 0.0
      %4806 = vmatpush1.msra.mxu0 0.0
      %4807 = vmatprep.subr.mxu0 0.0
      %4808 = vmatpush1.msra.mxu0 0.0
      %4809 = vmatprep.subr.mxu0 0.0
      %4810 = vmatpush1.msra.mxu0 0.0
      %4811 = vmatprep.subr.mxu0 0.0
      %4812 = vmatpush1.msra.mxu0 0.0
      %4813 = vmatprep.subr.mxu0 0.0
      %4814 = vmatpush1.msra.mxu0 0.0
      %4815 = vmatprep.subr.mxu0 0.0
      %4816 = vmatpush1.msra.mxu0 0.0
      %4817 = vmatprep.subr.mxu0 0.0
      %4818 = vmatpush1.msra.mxu0 0.0
      %4819 = vmatprep.subr.mxu0 0.0
      %4820 = vmatpush1.msra.mxu0 0.0
      %4821 = vmatprep.subr.mxu0 0.0
      %4822 = vmatpush1.msra.mxu0 0.0
      %4823 = vmatprep.subr.mxu0 0.0
      %4824 = vmatpush1.msra.mxu0 0.0
      %4825 = vmatprep.subr.mxu0 0.0
      %4826 = vmatpush1.msra.mxu0 0.0
      %4827 = vmatprep.subr.mxu0 0.0
      %4828 = vmatpush1.msra.mxu0 0.0
      %4829 = vmatprep.subr.mxu0 0.0
      %4830 = vmatpush1.msra.mxu0 0.0
      %4831 = vmatprep.mubr.f32.mxu0 0.0
      %4832 = vmatmul.mubr.f32.gmra.mrb[0].mxu0 %v4765
      %v4833 = vpop.f32.mrb[0].mxu0
      %v4834 = vadd.f32 0.0, %v4833
      %v4835 = vpop.f32.mrb[0].mxu0
      %4836 = vdwg.mxu0
      %v4837 = vadd.f32 %v4747, %v4834
      %s4838 = scalar_lea.vmem %s9, 1024
      %v4839 = vld [vmem:[%s4838] sm:$0xff]
      %v4840 = vld [vmem:[%s4838 + $0x8] sm:$0xff]
      %v4841 = vld [vmem:[%s4838 + $0x10] sm:$0xff]
      %v4842 = vld [vmem:[%s4838 + $0x18] sm:$0xff]
      %v4843 = vld [vmem:[%s4838 + $0x20] sm:$0xff]
      %v4844 = vld [vmem:[%s4838 + $0x28] sm:$0xff]
      %v4845 = vld [vmem:[%s4838 + $0x30] sm:$0xff]
      %v4846 = vld [vmem:[%s4838 + $0x38] sm:$0xff]
      %v4847 = vld [vmem:[%s4838 + $0x40] sm:$0xff]
      %v4848 = vld [vmem:[%s4838 + $0x48] sm:$0xff]
      %v4849 = vld [vmem:[%s4838 + $0x50] sm:$0xff]
      %v4850 = vld [vmem:[%s4838 + $0x58] sm:$0xff]
      %v4851 = vld [vmem:[%s4838 + $0x60] sm:$0xff]
      %v4852 = vld [vmem:[%s4838 + $0x68] sm:$0xff]
      %v4853 = vld [vmem:[%s4838 + $0x70] sm:$0xff]
      %v4854 = vld [vmem:[%s4838 + $0x78] sm:$0xff]
      %4855 = vmatprep.subr.mxu0 0.0
      %4856 = vmatpush1.msra.mxu0 %v4839
      %4857 = vmatprep.subr.mxu0 0.0
      %4858 = vmatpush1.msra.mxu0 %v4840
      %4859 = vmatprep.subr.mxu0 0.0
      %4860 = vmatpush1.msra.mxu0 %v4841
      %4861 = vmatprep.subr.mxu0 0.0
      %4862 = vmatpush1.msra.mxu0 %v4842
      %4863 = vmatprep.subr.mxu0 0.0
      %4864 = vmatpush1.msra.mxu0 %v4843
      %4865 = vmatprep.subr.mxu0 0.0
      %4866 = vmatpush1.msra.mxu0 %v4844
      %4867 = vmatprep.subr.mxu0 0.0
      %4868 = vmatpush1.msra.mxu0 %v4845
      %4869 = vmatprep.subr.mxu0 0.0
      %4870 = vmatpush1.msra.mxu0 %v4846
      %4871 = vmatprep.subr.mxu0 0.0
      %4872 = vmatpush1.msra.mxu0 %v4847
      %4873 = vmatprep.subr.mxu0 0.0
      %4874 = vmatpush1.msra.mxu0 %v4848
      %4875 = vmatprep.subr.mxu0 0.0
      %4876 = vmatpush1.msra.mxu0 %v4849
      %4877 = vmatprep.subr.mxu0 0.0
      %4878 = vmatpush1.msra.mxu0 %v4850
      %4879 = vmatprep.subr.mxu0 0.0
      %4880 = vmatpush1.msra.mxu0 %v4851
      %4881 = vmatprep.subr.mxu0 0.0
      %4882 = vmatpush1.msra.mxu0 %v4852
      %4883 = vmatprep.subr.mxu0 0.0
      %4884 = vmatpush1.msra.mxu0 %v4853
      %4885 = vmatprep.subr.mxu0 0.0
      %4886 = vmatpush1.msra.mxu0 %v4854
      %4887 = vmatprep.subr.mxu0 0.0
      %4888 = vmatpush1.msra.mxu0 0.0
      %4889 = vmatprep.subr.mxu0 0.0
      %4890 = vmatpush1.msra.mxu0 0.0
      %4891 = vmatprep.subr.mxu0 0.0
      %4892 = vmatpush1.msra.mxu0 0.0
      %4893 = vmatprep.subr.mxu0 0.0
      %4894 = vmatpush1.msra.mxu0 0.0
      %4895 = vmatprep.subr.mxu0 0.0
      %4896 = vmatpush1.msra.mxu0 0.0
      %4897 = vmatprep.subr.mxu0 0.0
      %4898 = vmatpush1.msra.mxu0 0.0
      %4899 = vmatprep.subr.mxu0 0.0
      %4900 = vmatpush1.msra.mxu0 0.0
      %4901 = vmatprep.subr.mxu0 0.0
      %4902 = vmatpush1.msra.mxu0 0.0
      %4903 = vmatprep.subr.mxu0 0.0
      %4904 = vmatpush1.msra.mxu0 0.0
      %4905 = vmatprep.subr.mxu0 0.0
      %4906 = vmatpush1.msra.mxu0 0.0
      %4907 = vmatprep.subr.mxu0 0.0
      %4908 = vmatpush1.msra.mxu0 0.0
      %4909 = vmatprep.subr.mxu0 0.0
      %4910 = vmatpush1.msra.mxu0 0.0
      %4911 = vmatprep.subr.mxu0 0.0
      %4912 = vmatpush1.msra.mxu0 0.0
      %4913 = vmatprep.subr.mxu0 0.0
      %4914 = vmatpush1.msra.mxu0 0.0
      %4915 = vmatprep.subr.mxu0 0.0
      %4916 = vmatpush1.msra.mxu0 0.0
      %4917 = vmatprep.subr.mxu0 0.0
      %4918 = vmatpush1.msra.mxu0 0.0
      %4919 = vmatprep.mubr.f32.mxu0 0.0
      %4920 = vmatmul.mubr.f32.gmra.mrb[0].mxu0 %v4118
      %v4921 = vpop.f32.mrb[0].mxu0
      %v4922 = vadd.f32 0.0, %v4921
      %v4923 = vpop.f32.mrb[0].mxu0
      %4924 = vdwg.mxu0
      %v4925 = vadd.f32 %v4837, %v4922
      %v4926 = vlaneseq
      %v4927 = vand.u32 %v4926, 127
      %vm4928 = vcmp.lt.s32.totalorder %v4927, 4
      %v4929 = vsel %vm4928, %v4925, -1e+30
      %vm4930 = vcmask 1040384
      %v4931 = vsel %vm4930, %v4929, -inf
      %4932 = vmax.xlane.f32.xlu0 %v4931
      %v4933 = vpop.xlane.xlu0 %4932
      %v4934 = vsub.f32 %v4929, %v4933
      %v4935 = vmul.f32 %v4934, 1.442695
      %v4936 = vpow.pop %v4935
      %v4937 = vsel %vm4930, %v4936, 0.0
      %4938 = vadd.xlane.f32.xlu0 %v4937
      %v4939 = vpop.xlane.xlu0 %4938
      %v4940 = vrcp.pop %v4939
      %v4941 = vmul.f32 %v4936, %v4940
      %v4942 = vsel %vm4928, %v4941, %v4925
      %4943 = vst [vmem:[%s382] sm:$0x1] %v4942
      %p4944 = scmp.lt.s32.totalorder %s22, 1
      %s4945 = scalar_select %p4944, %s22, 1
      %s4946 = scalar_lea.vmem %s11, %s4945
      // Predicated region
      $region65: #{a2c_forward.1} parent=63 // pred_check
        %p4947 = pneg %p276
      $region66: #{a2c_forward.1} parent=63 // pred_check_branch
        %4949 = sbr.rel (%p4947) target = $region68
      $region67: #{a2c_forward.1} parent=63 // pred_region
        _
      $region68: #{a2c_forward.1} parent=63 // pred_fallthru
        _
    $region64: #{a2c_forward.1} parent=5 // pred_fallthru
      _
    %p4950 = scmp.le.s32.totalorder 2, %s17
    // Predicated region
    $region69: #{a2c_forward.1} parent=5 // pred_check
      %p4951 = pneg %p4950
    $region70: #{a2c_forward.1} parent=5 // pred_check_branch
      %4953 = sbr.rel (%p4951) target = $region72
    $region71: #{a2c_forward.1} parent=5 // pred_region
      %s4954 = ssub.s32 %s17, 2
      // Predicated region
      $region73: #{a2c_forward.1} parent=71 // pred_check
        %p4955 = pneg %p282
      $region74: #{a2c_forward.1} parent=71 // pred_check_branch
        %4957 = sbr.rel (%p4955) target = $region76
      $region75: #{a2c_forward.1} parent=71 // pred_region
        %p4958 = scmp.lt.s32.totalorder %s23, 1
        %s4959 = scalar_select %p4958, %s23, 1
        %s4960 = scalar_lea.vmem %s11, %s4959
      $region76: #{a2c_forward.1} parent=71 // pred_fallthru
        _
    $region72: #{a2c_forward.1} parent=5 // pred_fallthru
      _
  $region6: #{a2c_forward.1} parent=0 // loop_footer
    %s21 = sadd.s32 1, %s17
  $region7: #{a2c_forward.1} parent=0 // loop_footer_branch
    %16 = sbr.rel target = $region3
  $region8: #{a2c_forward.1} parent=0 // loop_exit
    _

</llo_original>
